<compile_context>
chip_gen: v6e
topology: v6e:2x2x1
jax: 0.10.0
libtpu: 0.0.40
codegen_flags: <defaults>
</compile_context>

<pallas_src>
import functools

import jax
import jax.numpy as jnp
from jax.experimental import pallas as pl
from jax.experimental.pallas import tpu as pltpu


def _attention_relative_kernel(x_ref, wq_ref, wk_ref, wv_ref, bias_ref,
                               wout_ref, bout_ref, o_ref,
                               *, heads, dim_head, scale):
    """Processes a (Bt, N, dim) slab of the batch per grid step.

    x_ref    : (Bt, N, dim)        VMEM
    wq/wk/wv : (dim, inner)        VMEM
    bias_ref : (heads, N, N)       VMEM  (relative position bias, pre-gathered)
    wout_ref : (inner, dim)        VMEM
    bout_ref : (1, dim)            VMEM
    o_ref    : (Bt, N, dim)        VMEM
    """
    bt, n, dim = x_ref.shape
    inner = heads * dim_head

    # ---- qkv projection: (Bt*N, dim) @ (dim, inner) fills the MXU M-dim ----
    x2 = x_ref[...].reshape(bt * n, dim)
    q = jnp.dot(x2, wq_ref[...], preferred_element_type=jnp.float32) * scale
    k = jnp.dot(x2, wk_ref[...], preferred_element_type=jnp.float32)
    v = jnp.dot(x2, wv_ref[...], preferred_element_type=jnp.float32)

    q3 = q.reshape(bt, n, inner)
    k3 = k.reshape(bt, n, inner)
    v3 = v.reshape(bt, n, inner)

    # ---- per-head attention, batched over the fused batch dim ----
    # TODO(synk): fold the head axis into the dot_general batch dims once
    # multi-batch-dim dot_general lowering is reliable; with dim_head < 128
    # the per-head slices are sub-vreg either way.
    head_outs = []
    for h in range(heads):                       # static, small
        lo = h * dim_head
        hi = lo + dim_head
        qh = q3[:, :, lo:hi]                     # (Bt, N, dh)
        kh = k3[:, :, lo:hi]
        vh = v3[:, :, lo:hi]

        s = jnp.einsum('bqd,bkd->bqk', qh, kh,
                       preferred_element_type=jnp.float32)   # (Bt, N, N)
        s = s + bias_ref[h]                      # (N, N) broadcasts over batch

        # numerically-stable softmax; the divide goes to the EUP
        s = s - jnp.max(s, axis=-1, keepdims=True)
        p = jnp.exp(s)
        denom = jnp.sum(p, axis=-1, keepdims=True)
        inv = pl.reciprocal(denom, approx=True)
        inv = inv * (2.0 - denom * inv)          # one Newton step: full f32 accuracy
        p = p * inv

        head_outs.append(jnp.einsum('bqk,bkd->bqd', p, vh,
                                    preferred_element_type=jnp.float32))

    out = jnp.concatenate(head_outs, axis=-1).reshape(bt * n, inner)

    # ---- output projection (to_out Linear; Dropout(p=0) is identity) ----
    y = jnp.dot(out, wout_ref[...], preferred_element_type=jnp.float32) + bout_ref[...]
    o_ref[...] = y.reshape(bt, n, dim).astype(o_ref.dtype)


def _pick_batch_tile(batch, n_tokens, rows_target=256):
    """Fuse enough batch elements that the projection M-dim fills the MXU,
    while keeping >= 2 grid steps when possible (v7x has 2 TensorCores)."""
    bt = max(1, min(batch, pl.cdiv(rows_target, n_tokens)))
    if batch >= 2:
        bt = min(bt, max(1, batch // 2))
    while batch % bt:
        bt -= 1
    return bt


def attention_relative_pallas(x, w_qkv, bias_hnn, w_out, b_out,
                              *, heads, dim_head):
    """x: (B, N, dim); bias_hnn: (heads, N, N) dense relative position bias."""
    B, N, dim = x.shape
    inner = heads * dim_head
    scale = dim_head ** (-0.5)

    # Split the fused qkv weight once in the wrapper (layout-free in-kernel).
    wq = w_qkv[:, :inner]
    wk = w_qkv[:, inner:2 * inner]
    wv = w_qkv[:, 2 * inner:]
    b_out2d = b_out.reshape(1, dim)

    Bt = _pick_batch_tile(B, N)
    grid = (B // Bt,)

    # VMEM budget: double-buffered x/out blocks + resident weights/bias +
    # in-kernel intermediates (q/k/v, per-head scores, concat).  Headroom x2,
    # clamped to stay under the smallest physical VMEM (v7x: 64 MiB).
    isz = jnp.dtype(x.dtype).itemsize
    blocks = 2 * (2 * Bt * N * dim) * isz
    consts = 2 * (3 * dim * inner + inner * dim + dim + heads * N * N) * isz
    interm = (4 * Bt * N * inner + 2 * Bt * N * N) * 4
    vmem_limit = int(min(64 * 1024 * 1024,
                         max(2 * (blocks + consts + interm), 32 * 1024 * 1024)))

    kernel = functools.partial(_attention_relative_kernel,
                               heads=heads, dim_head=dim_head, scale=scale)

    return pl.pallas_call(
        kernel,
        out_shape=jax.ShapeDtypeStruct((B, N, dim), x.dtype),
        grid_spec=pltpu.PrefetchScalarGridSpec(
            num_scalar_prefetch=0,
            grid=grid,
            in_specs=[
                pl.BlockSpec((Bt, N, dim), lambda b: (b, 0, 0)),
                pl.BlockSpec((dim, inner), lambda b: (0, 0)),
                pl.BlockSpec((dim, inner), lambda b: (0, 0)),
                pl.BlockSpec((dim, inner), lambda b: (0, 0)),
                pl.BlockSpec((heads, N, N), lambda b: (0, 0, 0)),
                pl.BlockSpec((inner, dim), lambda b: (0, 0)),
                pl.BlockSpec((1, dim), lambda b: (0, 0)),
            ],
            out_specs=pl.BlockSpec((Bt, N, dim), lambda b: (b, 0, 0)),
        ),
        compiler_params=pltpu.CompilerParams(
            dimension_semantics=("parallel",),
            vmem_limit_bytes=vmem_limit),
    )(x, wq, wk, wv, bias_hnn, w_out, b_out2d)


def build_relative_position_bias(table, after_patch_height, after_patch_width):
    """Replicates the PyTorch index construction exactly (pure glue, plain JAX)."""
    H, W = after_patch_height, after_patch_width
    N = H * W
    coords_h = jnp.arange(H)
    coords_w = jnp.arange(W)
    coords = jnp.stack(jnp.meshgrid(coords_h, coords_w, indexing="ij"))   # (2, H, W)
    coords_flatten = coords.reshape(2, -1)                                # (2, N)
    relative_coords = coords_flatten[:, :, None] - coords_flatten[:, None, :]  # (2, N, N)
    relative_coords = jnp.transpose(relative_coords, (1, 2, 0))           # (N, N, 2)
    rc0 = (relative_coords[..., 0] + (H - 1)) * (2 * H - 1)
    rc1 = relative_coords[..., 1] + (W - 1)
    relative_position_index = rc0 + rc1                                   # (N, N)

    bias = table[relative_position_index.reshape(-1)]                     # (N*N, heads)
    bias = bias.reshape(N, N, -1)
    bias = jnp.transpose(bias, (2, 0, 1))                                 # (heads, N, N)
    return bias


def reference_forward(x, w_qkv, bias_hnn, w_out, b_out, *, heads, dim_head):
    """Plain-JAX reference mirroring the PyTorch forward (for verification)."""
    B, N, dim = x.shape
    inner = heads * dim_head
    scale = dim_head ** (-0.5)
    qkv = x @ w_qkv                                                       # (B, N, 3*inner)
    q, k, v = jnp.split(qkv, 3, axis=-1)

    def split_heads(t):
        return jnp.transpose(t.reshape(B, N, heads, dim_head), (0, 2, 1, 3))

    q, k, v = map(split_heads, (q, k, v))
    dots = jnp.einsum("bhnd,bhmd->bhnm", q, k) * scale
    dots = dots + bias_hnn[None]
    attn = jax.nn.softmax(dots, axis=-1)
    out = jnp.einsum("bhnm,bhmd->bhnd", attn, v)
    out = jnp.transpose(out, (0, 2, 1, 3)).reshape(B, N, inner)
    return out @ w_out + b_out


if __name__ == "__main__":
    # Small, module-consistent shapes (B large enough to exercise batch fusion
    # while still keeping >= 2 grid steps).
    B = 8
    dim = 32
    heads = 4
    dim_head = 16
    after_patch_height = 4
    after_patch_width = 4
    N = after_patch_height * after_patch_width          # 16 tokens
    inner = heads * dim_head                             # 64

    key = jax.random.PRNGKey(0)
    k_x, k_tab, k_qkv, k_out, k_b = jax.random.split(key, 5)

    x = jax.random.normal(k_x, (B, N, dim), dtype=jnp.float32)

    # Deterministic synthetic parameters (shapes match nn.Module __init__).
    table = 0.02 * jax.random.normal(
        k_tab, ((2 * after_patch_height - 1) * (2 * after_patch_width - 1), heads),
        dtype=jnp.float32)
    w_qkv = 0.05 * jax.random.normal(k_qkv, (dim, 3 * inner), dtype=jnp.float32)
    w_out = 0.05 * jax.random.normal(k_out, (inner, dim), dtype=jnp.float32)
    b_out = 0.01 * jax.random.normal(k_b, (dim,), dtype=jnp.float32)

    bias_hnn = build_relative_position_bias(table, after_patch_height, after_patch_width)

    out = attention_relative_pallas(x, w_qkv, bias_hnn, w_out, b_out,
                                    heads=heads, dim_head=dim_head)
    out = jax.block_until_ready(out)

    ref = reference_forward(x, w_qkv, bias_hnn, w_out, b_out,
                            heads=heads, dim_head=dim_head)
    assert out.shape == (B, N, dim)
    assert jnp.allclose(out, ref, atol=2e-4, rtol=2e-4), "mismatch vs reference"

    print("KERNEL_OK")
</pallas_src>

<mosaic_0001>
module attributes {stable_mosaic.version = 11 : i64} {
  func.func @_attention_relative_kernel(%arg0: i32, %arg1: memref<4x16x32xf32, #tpu.memory_space<vmem>>, %arg2: memref<32x64xf32, #tpu.memory_space<vmem>>, %arg3: memref<32x64xf32, #tpu.memory_space<vmem>>, %arg4: memref<32x64xf32, #tpu.memory_space<vmem>>, %arg5: memref<4x16x16xf32, #tpu.memory_space<vmem>>, %arg6: memref<64x32xf32, #tpu.memory_space<vmem>>, %arg7: memref<1x32xf32, #tpu.memory_space<vmem>>, %arg8: memref<4x16x32xf32, #tpu.memory_space<vmem>>) attributes {dimension_semantics = [#tpu.dimension_semantics<parallel>], iteration_bounds = array<i64: 2>, scalar_prefetch = 0 : i64, scratch_operands = 0 : i64, tpu.core_type = #tpu.core_type<tc>, window_params = [{transform_indices = @transform_0, window_bounds = array<i64: 4, 16, 32>}, {pipeline_mode = #tpu.pipeline_mode<synchronous>, transform_indices = @transform_1, window_bounds = array<i64: 32, 64>}, {pipeline_mode = #tpu.pipeline_mode<synchronous>, transform_indices = @transform_2, window_bounds = array<i64: 32, 64>}, {pipeline_mode = #tpu.pipeline_mode<synchronous>, transform_indices = @transform_3, window_bounds = array<i64: 32, 64>}, {pipeline_mode = #tpu.pipeline_mode<synchronous>, transform_indices = @transform_4, window_bounds = array<i64: 4, 16, 16>}, {pipeline_mode = #tpu.pipeline_mode<synchronous>, transform_indices = @transform_5, window_bounds = array<i64: 64, 32>}, {pipeline_mode = #tpu.pipeline_mode<synchronous>, transform_indices = @transform_6, window_bounds = array<i64: 1, 32>}, {transform_indices = @transform_7, window_bounds = array<i64: 4, 16, 32>}]} {
    %c0 = arith.constant 0 : index
    %c0_0 = arith.constant 0 : index
    %c0_1 = arith.constant 0 : index
    %0 = vector.load %arg1[%c0, %c0_0, %c0_1] : memref<4x16x32xf32, #tpu.memory_space<vmem>>, vector<4x16x32xf32>
    %1 = vector.shape_cast %0 : vector<4x16x32xf32> to vector<64x32xf32>
    %c0_2 = arith.constant 0 : index
    %c0_3 = arith.constant 0 : index
    %2 = vector.load %arg2[%c0_2, %c0_3] : memref<32x64xf32, #tpu.memory_space<vmem>>, vector<32x64xf32>
    %cst = arith.constant dense<0.000000e+00> : vector<64x64xf32>
    %3 = tpu.matmul %1, %2, %cst {dimension_numbers = #tpu.dot_dimension_numbers<[1], [0], [0], [1], [0, 0, 1, 1], [], []>} : vector<64x32xf32>, vector<32x64xf32>, vector<64x64xf32> -> vector<64x64xf32>
    %cst_4 = arith.constant 2.500000e-01 : f32
    %4 = vector.broadcast %cst_4 : f32 to vector<64x64xf32>
    %5 = arith.mulf %3, %4 : vector<64x64xf32>
    %c0_5 = arith.constant 0 : index
    %c0_6 = arith.constant 0 : index
    %6 = vector.load %arg3[%c0_5, %c0_6] : memref<32x64xf32, #tpu.memory_space<vmem>>, vector<32x64xf32>
    %cst_7 = arith.constant dense<0.000000e+00> : vector<64x64xf32>
    %7 = tpu.matmul %1, %6, %cst_7 {dimension_numbers = #tpu.dot_dimension_numbers<[1], [0], [0], [1], [0, 0, 1, 1], [], []>} : vector<64x32xf32>, vector<32x64xf32>, vector<64x64xf32> -> vector<64x64xf32>
    %c0_8 = arith.constant 0 : index
    %c0_9 = arith.constant 0 : index
    %8 = vector.load %arg4[%c0_8, %c0_9] : memref<32x64xf32, #tpu.memory_space<vmem>>, vector<32x64xf32>
    %cst_10 = arith.constant dense<0.000000e+00> : vector<64x64xf32>
    %9 = tpu.matmul %1, %8, %cst_10 {dimension_numbers = #tpu.dot_dimension_numbers<[1], [0], [0], [1], [0, 0, 1, 1], [], []>} : vector<64x32xf32>, vector<32x64xf32>, vector<64x64xf32> -> vector<64x64xf32>
    %10 = vector.shape_cast %5 : vector<64x64xf32> to vector<4x16x64xf32>
    %11 = vector.shape_cast %7 : vector<64x64xf32> to vector<4x16x64xf32>
    %12 = vector.shape_cast %9 : vector<64x64xf32> to vector<4x16x64xf32>
    %13 = vector.extract_strided_slice %10 {offsets = [0, 0, 0], sizes = [4, 16, 16], strides = [1, 1, 1]} : vector<4x16x64xf32> to vector<4x16x16xf32>
    %14 = vector.extract_strided_slice %11 {offsets = [0, 0, 0], sizes = [4, 16, 16], strides = [1, 1, 1]} : vector<4x16x64xf32> to vector<4x16x16xf32>
    %15 = vector.extract_strided_slice %12 {offsets = [0, 0, 0], sizes = [4, 16, 16], strides = [1, 1, 1]} : vector<4x16x64xf32> to vector<4x16x16xf32>
    "tpu.trace_start"() <{level = 10 : i32, message = "bqd,bkd->bqk"}> : () -> ()
    %cst_11 = arith.constant dense<0.000000e+00> : vector<4x16x16xf32>
    %16 = tpu.matmul %13, %14, %cst_11 {dimension_numbers = #tpu.dot_dimension_numbers<[2], [2], [1], [1], [0, 0, 0, 1, 1, 1], [0], [0]>} : vector<4x16x16xf32>, vector<4x16x16xf32>, vector<4x16x16xf32> -> vector<4x16x16xf32>
    "tpu.trace_stop"() : () -> ()
    %c0_12 = arith.constant 0 : index
    %c0_13 = arith.constant 0 : index
    %c0_14 = arith.constant 0 : index
    %17 = vector.load %arg5[%c0_12, %c0_13, %c0_14] : memref<4x16x16xf32, #tpu.memory_space<vmem>>, vector<1x16x16xf32>
    %18 = vector.shape_cast %17 : vector<1x16x16xf32> to vector<16x16xf32>
    %19 = vector.shape_cast %18 : vector<16x16xf32> to vector<1x16x16xf32>
    %20 = vector.broadcast %19 : vector<1x16x16xf32> to vector<4x16x16xf32>
    %21 = arith.addf %16, %20 : vector<4x16x16xf32>
    %cst_15 = arith.constant dense<0xFF800000> : vector<4x16xf32>
    %22 = vector.multi_reduction <maximumf>, %21, %cst_15 [2] : vector<4x16x16xf32> to vector<4x16xf32>
    %23 = vector.shape_cast %22 : vector<4x16xf32> to vector<4x16x1xf32>
    %24 = vector.broadcast %23 : vector<4x16x1xf32> to vector<4x16x16xf32>
    %25 = arith.subf %21, %24 : vector<4x16x16xf32>
    %26 = math.exp %25 : vector<4x16x16xf32>
    %cst_16 = arith.constant dense<0.000000e+00> : vector<4x16xf32>
    %27 = vector.multi_reduction <add>, %26, %cst_16 [2] : vector<4x16x16xf32> to vector<4x16xf32>
    %28 = vector.shape_cast %27 : vector<4x16xf32> to vector<4x16x1xf32>
    %29 = tpu.reciprocal %28 {approx = true} : vector<4x16x1xf32> -> vector<4x16x1xf32>
    %30 = arith.mulf %28, %29 : vector<4x16x1xf32>
    %cst_17 = arith.constant 2.000000e+00 : f32
    %31 = vector.broadcast %cst_17 : f32 to vector<4x16x1xf32>
    %32 = arith.subf %31, %30 : vector<4x16x1xf32>
    %33 = arith.mulf %29, %32 : vector<4x16x1xf32>
    %34 = vector.broadcast %33 : vector<4x16x1xf32> to vector<4x16x16xf32>
    %35 = arith.mulf %26, %34 : vector<4x16x16xf32>
    "tpu.trace_start"() <{level = 10 : i32, message = "bqk,bkd->bqd"}> : () -> ()
    %cst_18 = arith.constant dense<0.000000e+00> : vector<4x16x16xf32>
    %36 = tpu.matmul %35, %15, %cst_18 {dimension_numbers = #tpu.dot_dimension_numbers<[2], [1], [1], [2], [0, 0, 0, 1, 1, 2], [0], [0]>} : vector<4x16x16xf32>, vector<4x16x16xf32>, vector<4x16x16xf32> -> vector<4x16x16xf32>
    "tpu.trace_stop"() : () -> ()
    %37 = vector.extract_strided_slice %10 {offsets = [0, 0, 16], sizes = [4, 16, 16], strides = [1, 1, 1]} : vector<4x16x64xf32> to vector<4x16x16xf32>
    %38 = vector.extract_strided_slice %11 {offsets = [0, 0, 16], sizes = [4, 16, 16], strides = [1, 1, 1]} : vector<4x16x64xf32> to vector<4x16x16xf32>
    %39 = vector.extract_strided_slice %12 {offsets = [0, 0, 16], sizes = [4, 16, 16], strides = [1, 1, 1]} : vector<4x16x64xf32> to vector<4x16x16xf32>
    "tpu.trace_start"() <{level = 10 : i32, message = "bqd,bkd->bqk"}> : () -> ()
    %cst_19 = arith.constant dense<0.000000e+00> : vector<4x16x16xf32>
    %40 = tpu.matmul %37, %38, %cst_19 {dimension_numbers = #tpu.dot_dimension_numbers<[2], [2], [1], [1], [0, 0, 0, 1, 1, 1], [0], [0]>} : vector<4x16x16xf32>, vector<4x16x16xf32>, vector<4x16x16xf32> -> vector<4x16x16xf32>
    "tpu.trace_stop"() : () -> ()
    %c1 = arith.constant 1 : index
    %c0_20 = arith.constant 0 : index
    %c0_21 = arith.constant 0 : index
    %41 = vector.load %arg5[%c1, %c0_20, %c0_21] : memref<4x16x16xf32, #tpu.memory_space<vmem>>, vector<1x16x16xf32>
    %42 = vector.shape_cast %41 : vector<1x16x16xf32> to vector<16x16xf32>
    %43 = vector.shape_cast %42 : vector<16x16xf32> to vector<1x16x16xf32>
    %44 = vector.broadcast %43 : vector<1x16x16xf32> to vector<4x16x16xf32>
    %45 = arith.addf %40, %44 : vector<4x16x16xf32>
    %cst_22 = arith.constant dense<0xFF800000> : vector<4x16xf32>
    %46 = vector.multi_reduction <maximumf>, %45, %cst_22 [2] : vector<4x16x16xf32> to vector<4x16xf32>
    %47 = vector.shape_cast %46 : vector<4x16xf32> to vector<4x16x1xf32>
    %48 = vector.broadcast %47 : vector<4x16x1xf32> to vector<4x16x16xf32>
    %49 = arith.subf %45, %48 : vector<4x16x16xf32>
    %50 = math.exp %49 : vector<4x16x16xf32>
    %cst_23 = arith.constant dense<0.000000e+00> : vector<4x16xf32>
    %51 = vector.multi_reduction <add>, %50, %cst_23 [2] : vector<4x16x16xf32> to vector<4x16xf32>
    %52 = vector.shape_cast %51 : vector<4x16xf32> to vector<4x16x1xf32>
    %53 = tpu.reciprocal %52 {approx = true} : vector<4x16x1xf32> -> vector<4x16x1xf32>
    %54 = arith.mulf %52, %53 : vector<4x16x1xf32>
    %cst_24 = arith.constant 2.000000e+00 : f32
    %55 = vector.broadcast %cst_24 : f32 to vector<4x16x1xf32>
    %56 = arith.subf %55, %54 : vector<4x16x1xf32>
    %57 = arith.mulf %53, %56 : vector<4x16x1xf32>
    %58 = vector.broadcast %57 : vector<4x16x1xf32> to vector<4x16x16xf32>
    %59 = arith.mulf %50, %58 : vector<4x16x16xf32>
    "tpu.trace_start"() <{level = 10 : i32, message = "bqk,bkd->bqd"}> : () -> ()
    %cst_25 = arith.constant dense<0.000000e+00> : vector<4x16x16xf32>
    %60 = tpu.matmul %59, %39, %cst_25 {dimension_numbers = #tpu.dot_dimension_numbers<[2], [1], [1], [2], [0, 0, 0, 1, 1, 2], [0], [0]>} : vector<4x16x16xf32>, vector<4x16x16xf32>, vector<4x16x16xf32> -> vector<4x16x16xf32>
    "tpu.trace_stop"() : () -> ()
    %61 = vector.extract_strided_slice %10 {offsets = [0, 0, 32], sizes = [4, 16, 16], strides = [1, 1, 1]} : vector<4x16x64xf32> to vector<4x16x16xf32>
    %62 = vector.extract_strided_slice %11 {offsets = [0, 0, 32], sizes = [4, 16, 16], strides = [1, 1, 1]} : vector<4x16x64xf32> to vector<4x16x16xf32>
    %63 = vector.extract_strided_slice %12 {offsets = [0, 0, 32], sizes = [4, 16, 16], strides = [1, 1, 1]} : vector<4x16x64xf32> to vector<4x16x16xf32>
    "tpu.trace_start"() <{level = 10 : i32, message = "bqd,bkd->bqk"}> : () -> ()
    %cst_26 = arith.constant dense<0.000000e+00> : vector<4x16x16xf32>
    %64 = tpu.matmul %61, %62, %cst_26 {dimension_numbers = #tpu.dot_dimension_numbers<[2], [2], [1], [1], [0, 0, 0, 1, 1, 1], [0], [0]>} : vector<4x16x16xf32>, vector<4x16x16xf32>, vector<4x16x16xf32> -> vector<4x16x16xf32>
    "tpu.trace_stop"() : () -> ()
    %c2 = arith.constant 2 : index
    %c0_27 = arith.constant 0 : index
    %c0_28 = arith.constant 0 : index
    %65 = vector.load %arg5[%c2, %c0_27, %c0_28] : memref<4x16x16xf32, #tpu.memory_space<vmem>>, vector<1x16x16xf32>
    %66 = vector.shape_cast %65 : vector<1x16x16xf32> to vector<16x16xf32>
    %67 = vector.shape_cast %66 : vector<16x16xf32> to vector<1x16x16xf32>
    %68 = vector.broadcast %67 : vector<1x16x16xf32> to vector<4x16x16xf32>
    %69 = arith.addf %64, %68 : vector<4x16x16xf32>
    %cst_29 = arith.constant dense<0xFF800000> : vector<4x16xf32>
    %70 = vector.multi_reduction <maximumf>, %69, %cst_29 [2] : vector<4x16x16xf32> to vector<4x16xf32>
    %71 = vector.shape_cast %70 : vector<4x16xf32> to vector<4x16x1xf32>
    %72 = vector.broadcast %71 : vector<4x16x1xf32> to vector<4x16x16xf32>
    %73 = arith.subf %69, %72 : vector<4x16x16xf32>
    %74 = math.exp %73 : vector<4x16x16xf32>
    %cst_30 = arith.constant dense<0.000000e+00> : vector<4x16xf32>
    %75 = vector.multi_reduction <add>, %74, %cst_30 [2] : vector<4x16x16xf32> to vector<4x16xf32>
    %76 = vector.shape_cast %75 : vector<4x16xf32> to vector<4x16x1xf32>
    %77 = tpu.reciprocal %76 {approx = true} : vector<4x16x1xf32> -> vector<4x16x1xf32>
    %78 = arith.mulf %76, %77 : vector<4x16x1xf32>
    %cst_31 = arith.constant 2.000000e+00 : f32
    %79 = vector.broadcast %cst_31 : f32 to vector<4x16x1xf32>
    %80 = arith.subf %79, %78 : vector<4x16x1xf32>
    %81 = arith.mulf %77, %80 : vector<4x16x1xf32>
    %82 = vector.broadcast %81 : vector<4x16x1xf32> to vector<4x16x16xf32>
    %83 = arith.mulf %74, %82 : vector<4x16x16xf32>
    "tpu.trace_start"() <{level = 10 : i32, message = "bqk,bkd->bqd"}> : () -> ()
    %cst_32 = arith.constant dense<0.000000e+00> : vector<4x16x16xf32>
    %84 = tpu.matmul %83, %63, %cst_32 {dimension_numbers = #tpu.dot_dimension_numbers<[2], [1], [1], [2], [0, 0, 0, 1, 1, 2], [0], [0]>} : vector<4x16x16xf32>, vector<4x16x16xf32>, vector<4x16x16xf32> -> vector<4x16x16xf32>
    "tpu.trace_stop"() : () -> ()
    %85 = vector.extract_strided_slice %10 {offsets = [0, 0, 48], sizes = [4, 16, 16], strides = [1, 1, 1]} : vector<4x16x64xf32> to vector<4x16x16xf32>
    %86 = vector.extract_strided_slice %11 {offsets = [0, 0, 48], sizes = [4, 16, 16], strides = [1, 1, 1]} : vector<4x16x64xf32> to vector<4x16x16xf32>
    %87 = vector.extract_strided_slice %12 {offsets = [0, 0, 48], sizes = [4, 16, 16], strides = [1, 1, 1]} : vector<4x16x64xf32> to vector<4x16x16xf32>
    "tpu.trace_start"() <{level = 10 : i32, message = "bqd,bkd->bqk"}> : () -> ()
    %cst_33 = arith.constant dense<0.000000e+00> : vector<4x16x16xf32>
    %88 = tpu.matmul %85, %86, %cst_33 {dimension_numbers = #tpu.dot_dimension_numbers<[2], [2], [1], [1], [0, 0, 0, 1, 1, 1], [0], [0]>} : vector<4x16x16xf32>, vector<4x16x16xf32>, vector<4x16x16xf32> -> vector<4x16x16xf32>
    "tpu.trace_stop"() : () -> ()
    %c3 = arith.constant 3 : index
    %c0_34 = arith.constant 0 : index
    %c0_35 = arith.constant 0 : index
    %89 = vector.load %arg5[%c3, %c0_34, %c0_35] : memref<4x16x16xf32, #tpu.memory_space<vmem>>, vector<1x16x16xf32>
    %90 = vector.shape_cast %89 : vector<1x16x16xf32> to vector<16x16xf32>
    %91 = vector.shape_cast %90 : vector<16x16xf32> to vector<1x16x16xf32>
    %92 = vector.broadcast %91 : vector<1x16x16xf32> to vector<4x16x16xf32>
    %93 = arith.addf %88, %92 : vector<4x16x16xf32>
    %cst_36 = arith.constant dense<0xFF800000> : vector<4x16xf32>
    %94 = vector.multi_reduction <maximumf>, %93, %cst_36 [2] : vector<4x16x16xf32> to vector<4x16xf32>
    %95 = vector.shape_cast %94 : vector<4x16xf32> to vector<4x16x1xf32>
    %96 = vector.broadcast %95 : vector<4x16x1xf32> to vector<4x16x16xf32>
    %97 = arith.subf %93, %96 : vector<4x16x16xf32>
    %98 = math.exp %97 : vector<4x16x16xf32>
    %cst_37 = arith.constant dense<0.000000e+00> : vector<4x16xf32>
    %99 = vector.multi_reduction <add>, %98, %cst_37 [2] : vector<4x16x16xf32> to vector<4x16xf32>
    %100 = vector.shape_cast %99 : vector<4x16xf32> to vector<4x16x1xf32>
    %101 = tpu.reciprocal %100 {approx = true} : vector<4x16x1xf32> -> vector<4x16x1xf32>
    %102 = arith.mulf %100, %101 : vector<4x16x1xf32>
    %cst_38 = arith.constant 2.000000e+00 : f32
    %103 = vector.broadcast %cst_38 : f32 to vector<4x16x1xf32>
    %104 = arith.subf %103, %102 : vector<4x16x1xf32>
    %105 = arith.mulf %101, %104 : vector<4x16x1xf32>
    %106 = vector.broadcast %105 : vector<4x16x1xf32> to vector<4x16x16xf32>
    %107 = arith.mulf %98, %106 : vector<4x16x16xf32>
    "tpu.trace_start"() <{level = 10 : i32, message = "bqk,bkd->bqd"}> : () -> ()
    %cst_39 = arith.constant dense<0.000000e+00> : vector<4x16x16xf32>
    %108 = tpu.matmul %107, %87, %cst_39 {dimension_numbers = #tpu.dot_dimension_numbers<[2], [1], [1], [2], [0, 0, 0, 1, 1, 2], [0], [0]>} : vector<4x16x16xf32>, vector<4x16x16xf32>, vector<4x16x16xf32> -> vector<4x16x16xf32>
    "tpu.trace_stop"() : () -> ()
    %109 = tpu.concatenate %36, %60, %84, %108 in 2 : vector<4x16x16xf32>, vector<4x16x16xf32>, vector<4x16x16xf32>, vector<4x16x16xf32> -> vector<4x16x64xf32>
    %110 = vector.shape_cast %109 : vector<4x16x64xf32> to vector<64x64xf32>
    %c0_40 = arith.constant 0 : index
    %c0_41 = arith.constant 0 : index
    %111 = vector.load %arg6[%c0_40, %c0_41] : memref<64x32xf32, #tpu.memory_space<vmem>>, vector<64x32xf32>
    %cst_42 = arith.constant dense<0.000000e+00> : vector<64x32xf32>
    %112 = tpu.matmul %110, %111, %cst_42 {dimension_numbers = #tpu.dot_dimension_numbers<[1], [0], [0], [1], [0, 0, 1, 1], [], []>} : vector<64x64xf32>, vector<64x32xf32>, vector<64x32xf32> -> vector<64x32xf32>
    %c0_43 = arith.constant 0 : index
    %c0_44 = arith.constant 0 : index
    %113 = vector.load %arg7[%c0_43, %c0_44] : memref<1x32xf32, #tpu.memory_space<vmem>>, vector<1x32xf32>
    %114 = vector.broadcast %113 : vector<1x32xf32> to vector<64x32xf32>
    %115 = arith.addf %112, %114 : vector<64x32xf32>
    %116 = vector.shape_cast %115 : vector<64x32xf32> to vector<4x16x32xf32>
    %c0_45 = arith.constant 0 : index
    %c0_46 = arith.constant 0 : index
    %c0_47 = arith.constant 0 : index
    %117 = vector.load %arg8[%c0_45, %c0_46, %c0_47] : memref<4x16x32xf32, #tpu.memory_space<vmem>>, vector<4x16x32xf32>
    tpu.vector_store %arg8[%c0_45, %c0_46, %c0_47], %116 {strides = array<i32>} : memref<4x16x32xf32, #tpu.memory_space<vmem>>, vector<4x16x32xf32>,
    return
  }
  func.func @transform_0(%arg0: i32) -> (i32, i32, i32) {
    %c0_i32 = arith.constant 0 : i32
    %c0_i32_0 = arith.constant 0 : i32
    %c0_i32_1 = arith.constant 0 : i32
    return %arg0, %c0_i32, %c0_i32_0 : i32, i32, i32
  }
  func.func @transform_1(%arg0: i32) -> (i32, i32) {
    %c0_i32 = arith.constant 0 : i32
    %c0_i32_0 = arith.constant 0 : i32
    %c0_i32_1 = arith.constant 0 : i32
    return %c0_i32, %c0_i32_0 : i32, i32
  }
  func.func @transform_2(%arg0: i32) -> (i32, i32) {
    %c0_i32 = arith.constant 0 : i32
    %c0_i32_0 = arith.constant 0 : i32
    %c0_i32_1 = arith.constant 0 : i32
    return %c0_i32, %c0_i32_0 : i32, i32
  }
  func.func @transform_3(%arg0: i32) -> (i32, i32) {
    %c0_i32 = arith.constant 0 : i32
    %c0_i32_0 = arith.constant 0 : i32
    %c0_i32_1 = arith.constant 0 : i32
    return %c0_i32, %c0_i32_0 : i32, i32
  }
  func.func @transform_4(%arg0: i32) -> (i32, i32, i32) {
    %c0_i32 = arith.constant 0 : i32
    %c0_i32_0 = arith.constant 0 : i32
    %c0_i32_1 = arith.constant 0 : i32
    %c0_i32_2 = arith.constant 0 : i32
    return %c0_i32, %c0_i32_0, %c0_i32_1 : i32, i32, i32
  }
  func.func @transform_5(%arg0: i32) -> (i32, i32) {
    %c0_i32 = arith.constant 0 : i32
    %c0_i32_0 = arith.constant 0 : i32
    %c0_i32_1 = arith.constant 0 : i32
    return %c0_i32, %c0_i32_0 : i32, i32
  }
  func.func @transform_6(%arg0: i32) -> (i32, i32) {
    %c0_i32 = arith.constant 0 : i32
    %c0_i32_0 = arith.constant 0 : i32
    %c0_i32_1 = arith.constant 0 : i32
    return %c0_i32, %c0_i32_0 : i32, i32
  }
  func.func @transform_7(%arg0: i32) -> (i32, i32, i32) {
    %c0_i32 = arith.constant 0 : i32
    %c0_i32_0 = arith.constant 0 : i32
    %c0_i32_1 = arith.constant 0 : i32
    return %arg0, %c0_i32, %c0_i32_0 : i32, i32, i32
  }
}

</mosaic_0001>

<llo_original>
// kernel: tpu_custom_call.1
$region0: #{tpu_custom_call.1}
  #allocation0 [shape = 'u32[]', space=smem, size = 0x4, offset = 0x4, fixed_abs, tag = 'smem constant byte address 0x4 - core index']
  #allocation1 [shape = 'u32[144,128]{1,0:T(1,128)}', space=vmem, size = 0x12000, scoped, tag = 'internal scratch']
  %s0 = inlined_call_operand.hbm [shape: f32[8,16,32], index: 0, kind: input, shape index: {}]
  %s1 = inlined_call_operand.vmem [shape: f32[32,64], index: 1, kind: input, shape index: {}]
  %s2 = inlined_call_operand.hbm [shape: f32[32,64], index: 2, kind: input, shape index: {}]
  %s3 = inlined_call_operand.hbm [shape: f32[32,64], index: 3, kind: input, shape index: {}]
  %s4 = inlined_call_operand.vmem [shape: f32[4,16,16], index: 4, kind: input, shape index: {}]
  %s5 = inlined_call_operand.vmem [shape: f32[64,32], index: 5, kind: input, shape index: {}]
  %s6 = inlined_call_operand.vmem [shape: f32[1,32], index: 6, kind: input, shape index: {}]
  %s7 = inlined_call_operand.hbm [shape: f32[8,16,32], index: 7, kind: output, shape index: {}]
  %s8 = sld [smem:[#allocation0]]
  $region73: #{tpu_custom_call.1} parent=0
    _
  %s10 = ssub.s32 1, %s8
  %s11 = scalar_select 0, %s10, %s8
  $region1: #{tpu_custom_call.1} parent=0
    #allocation2 [shape = 'u8[65536]{0}', space=vmem, size = 0x10000, scoped, tag = 'input window, operand 0']
    #allocation3 [shape = 's32[2]{0}', space=sflag, size = 0x8, scoped, tag = 'scoped memory for tpu_custom_call.1']
    #allocation4 [shape = 's32[2]{0}', space=sflag, size = 0x8, scoped, tag = 'scoped memory for tpu_custom_call.1']
    #allocation5 [shape = 'u8[16384]{0}', space=vmem, size = 0x4000, scoped, tag = 'input window, operand 2, single buffered']
    #allocation6 [shape = 's32[1]{0}', space=sflag, size = 0x4, scoped, tag = 'scoped memory for tpu_custom_call.1']
    #allocation7 [shape = 'u8[16384]{0}', space=vmem, size = 0x4000, scoped, tag = 'input window, operand 3, single buffered']
    #allocation8 [shape = 'u8[65536]{0}', space=vmem, size = 0x10000, scoped, tag = 'output window, operand 0']
    %12 = vsyncpa [#allocation3], 0
    %s13 = scalar_lea.sflag [#allocation3], 1
    %14 = vsyncpa %s13, 0
    %15 = vsyncpa [#allocation6], 0
    %16 = vsyncpa [#allocation4], 0
    %s17 = scalar_lea.sflag [#allocation4], 1
    %18 = vsyncpa %s17, 0
    loop: start=0, step=1, limit=4
    $region2: #{tpu_custom_call.1} parent=1 // loop_pre_header
      _
    $region3: #{tpu_custom_call.1} parent=1 // loop_header
      %s20 = sphi 0, %s24
      %p21 = scmp.ge.s32.totalorder %s20, 4
      %s30 = sphi 0, %s32
      %s33 = sphi 0, %s30
      %s34 = sphi 0, %s33
      %s50 = sphi 0, %s34
      %s54 = sphi 0, %s54
      %s56 = sphi 0, %s54
      %s57 = sphi 0, %s56
      %s71 = sphi 0, %s57
      %s75 = sphi 0, %s75
      %s77 = sphi 0, %s75
      %s78 = sphi 0, %s77
      %s92 = sphi 0, %s78
      %s96 = sphi 0, %s96
      %s98 = sphi 0, %s96
      %s99 = sphi 0, %s98
      %s113 = sphi 0, %s99
      %s117 = sphi 0, %s117
      %s119 = sphi 0, %s117
      %s120 = sphi 0, %s119
      %s134 = sphi 0, %s120
      %s138 = sphi 0, %s138
      %s140 = sphi 0, %s138
      %s141 = sphi 0, %s140
      %s155 = sphi 0, %s141
      %s159 = sphi 0, %s159
      %s161 = sphi 0, %s159
      %s162 = sphi 0, %s161
      %s176 = sphi 0, %s162
      %s182 = sphi 0, %s184
      %s185 = sphi 0, %s182
      %s186 = sphi 0, %s185
      %s202 = sphi 0, %s186
    $region4: #{tpu_custom_call.1} parent=1 // loop_header_branch
      %23 = sbr.rel (%p21) target = $region8
    $region5: #{tpu_custom_call.1} parent=1 // loop_body
      %s25 = ssub.s32 %s20, 1
      %s26 = ssub.s32 %s20, 2
      %s27 = sadd.s32 %s20, 1
      %s28 = ssub.s32 %s20, %s27
      %p29 = scmp.eq.s32.totalorder %s28, 0
      %s31 = sadd.s32 %s30, 1
      %s32 = scalar_select %p29, %s30, %s31
      %p35 = pneg %p29
      %p36 = scmp.eq.s32.totalorder %s20, 1
      %p37 = por %p35, %p36
      %p38 = scmp.ne.s32.totalorder %s30, %s33
      %p39 = scmp.eq.s32.totalorder %s20, 0
      %p40 = por %p38, %p39
      %p41 = scmp.ne.s32.totalorder %s30, %s33
      %p42 = scmp.eq.s32.totalorder %s25, 1
      %p43 = por %p41, %p42
      %p44 = scmp.ne.s32.totalorder %s33, %s34
      %p45 = scmp.eq.s32.totalorder %s25, 0
      %p46 = por %p44, %p45
      %p47 = scmp.ne.s32.totalorder %s33, %s34
      %p48 = scmp.eq.s32.totalorder %s26, 1
      %p49 = por %p47, %p48
      %p51 = scmp.ne.s32.totalorder %s34, %s50
      %p52 = scmp.eq.s32.totalorder %s26, 0
      %p53 = por %p51, %p52
      %s55 = sadd.s32 %s54, 1
      %p58 = scmp.eq.s32.totalorder %s20, 1
      %p59 = scmp.ne.s32.totalorder %s54, %s56
      %p60 = scmp.eq.s32.totalorder %s20, 0
      %p61 = por %p59, %p60
      %p62 = scmp.ne.s32.totalorder %s54, %s56
      %p63 = scmp.eq.s32.totalorder %s25, 1
      %p64 = por %p62, %p63
      %p65 = scmp.ne.s32.totalorder %s56, %s57
      %p66 = scmp.eq.s32.totalorder %s25, 0
      %p67 = por %p65, %p66
      %p68 = scmp.ne.s32.totalorder %s56, %s57
      %p69 = scmp.eq.s32.totalorder %s26, 1
      %p70 = por %p68, %p69
      %p72 = scmp.ne.s32.totalorder %s57, %s71
      %p73 = scmp.eq.s32.totalorder %s26, 0
      %p74 = por %p72, %p73
      %s76 = sadd.s32 %s75, 1
      %p79 = scmp.eq.s32.totalorder %s20, 1
      %p80 = scmp.ne.s32.totalorder %s75, %s77
      %p81 = scmp.eq.s32.totalorder %s20, 0
      %p82 = por %p80, %p81
      %p83 = scmp.ne.s32.totalorder %s75, %s77
      %p84 = scmp.eq.s32.totalorder %s25, 1
      %p85 = por %p83, %p84
      %p86 = scmp.ne.s32.totalorder %s77, %s78
      %p87 = scmp.eq.s32.totalorder %s25, 0
      %p88 = por %p86, %p87
      %p89 = scmp.ne.s32.totalorder %s77, %s78
      %p90 = scmp.eq.s32.totalorder %s26, 1
      %p91 = por %p89, %p90
      %p93 = scmp.ne.s32.totalorder %s78, %s92
      %p94 = scmp.eq.s32.totalorder %s26, 0
      %p95 = por %p93, %p94
      %s97 = sadd.s32 %s96, 1
      %p100 = scmp.eq.s32.totalorder %s20, 1
      %p101 = scmp.ne.s32.totalorder %s96, %s98
      %p102 = scmp.eq.s32.totalorder %s20, 0
      %p103 = por %p101, %p102
      %p104 = scmp.ne.s32.totalorder %s96, %s98
      %p105 = scmp.eq.s32.totalorder %s25, 1
      %p106 = por %p104, %p105
      %p107 = scmp.ne.s32.totalorder %s98, %s99
      %p108 = scmp.eq.s32.totalorder %s25, 0
      %p109 = por %p107, %p108
      %p110 = scmp.ne.s32.totalorder %s98, %s99
      %p111 = scmp.eq.s32.totalorder %s26, 1
      %p112 = por %p110, %p111
      %p114 = scmp.ne.s32.totalorder %s99, %s113
      %p115 = scmp.eq.s32.totalorder %s26, 0
      %p116 = por %p114, %p115
      %s118 = sadd.s32 %s117, 1
      %p121 = scmp.eq.s32.totalorder %s20, 1
      %p122 = scmp.ne.s32.totalorder %s117, %s119
      %p123 = scmp.eq.s32.totalorder %s20, 0
      %p124 = por %p122, %p123
      %p125 = scmp.ne.s32.totalorder %s117, %s119
      %p126 = scmp.eq.s32.totalorder %s25, 1
      %p127 = por %p125, %p126
      %p128 = scmp.ne.s32.totalorder %s119, %s120
      %p129 = scmp.eq.s32.totalorder %s25, 0
      %p130 = por %p128, %p129
      %p131 = scmp.ne.s32.totalorder %s119, %s120
      %p132 = scmp.eq.s32.totalorder %s26, 1
      %p133 = por %p131, %p132
      %p135 = scmp.ne.s32.totalorder %s120, %s134
      %p136 = scmp.eq.s32.totalorder %s26, 0
      %p137 = por %p135, %p136
      %s139 = sadd.s32 %s138, 1
      %p142 = scmp.eq.s32.totalorder %s20, 1
      %p143 = scmp.ne.s32.totalorder %s138, %s140
      %p144 = scmp.eq.s32.totalorder %s20, 0
      %p145 = por %p143, %p144
      %p146 = scmp.ne.s32.totalorder %s138, %s140
      %p147 = scmp.eq.s32.totalorder %s25, 1
      %p148 = por %p146, %p147
      %p149 = scmp.ne.s32.totalorder %s140, %s141
      %p150 = scmp.eq.s32.totalorder %s25, 0
      %p151 = por %p149, %p150
      %p152 = scmp.ne.s32.totalorder %s140, %s141
      %p153 = scmp.eq.s32.totalorder %s26, 1
      %p154 = por %p152, %p153
      %p156 = scmp.ne.s32.totalorder %s141, %s155
      %p157 = scmp.eq.s32.totalorder %s26, 0
      %p158 = por %p156, %p157
      %s160 = sadd.s32 %s159, 1
      %p163 = scmp.eq.s32.totalorder %s20, 1
      %p164 = scmp.ne.s32.totalorder %s159, %s161
      %p165 = scmp.eq.s32.totalorder %s20, 0
      %p166 = por %p164, %p165
      %p167 = scmp.ne.s32.totalorder %s159, %s161
      %p168 = scmp.eq.s32.totalorder %s25, 1
      %p169 = por %p167, %p168
      %p170 = scmp.ne.s32.totalorder %s161, %s162
      %p171 = scmp.eq.s32.totalorder %s25, 0
      %p172 = por %p170, %p171
      %p173 = scmp.ne.s32.totalorder %s161, %s162
      %p174 = scmp.eq.s32.totalorder %s26, 1
      %p175 = por %p173, %p174
      %p177 = scmp.ne.s32.totalorder %s162, %s176
      %p178 = scmp.eq.s32.totalorder %s26, 0
      %p179 = por %p177, %p178
      %s180 = ssub.s32 %s20, %s27
      %p181 = scmp.eq.s32.totalorder %s180, 0
      %s183 = sadd.s32 %s182, 1
      %s184 = scalar_select %p181, %s182, %s183
      %p187 = pneg %p181
      %p188 = scmp.eq.s32.totalorder %s20, 1
      %p189 = por %p187, %p188
      %p190 = scmp.ne.s32.totalorder %s182, %s185
      %p191 = scmp.eq.s32.totalorder %s20, 0
      %p192 = por %p190, %p191
      %p193 = scmp.ne.s32.totalorder %s182, %s185
      %p194 = scmp.eq.s32.totalorder %s25, 1
      %p195 = por %p193, %p194
      %p196 = scmp.ne.s32.totalorder %s185, %s186
      %p197 = scmp.eq.s32.totalorder %s25, 0
      %p198 = por %p196, %p197
      %p199 = scmp.ne.s32.totalorder %s185, %s186
      %p200 = scmp.eq.s32.totalorder %s26, 1
      %p201 = por %p199, %p200
      %p203 = scmp.ne.s32.totalorder %s186, %s202
      %p204 = scmp.eq.s32.totalorder %s26, 0
      %p205 = por %p203, %p204
      %p206 = scmp.le.s32.totalorder 1, %s20
      %p207 = scmp.lt.s32.totalorder %s20, 3
      %p208 = pnand %p206, %p207
      %p209 = pneg %p208
      // Predicated region
      $region9: #{tpu_custom_call.1} parent=5 // pred_check
        _
      $region10: #{tpu_custom_call.1} parent=5 // pred_check_branch
        %211 = sbr.rel (%p208) target = $region12
      $region11: #{tpu_custom_call.1} parent=5 // pred_region
        %s212 = ssub.s32 %s20, 1
        // Predicated region
        $region13: #{tpu_custom_call.1} parent=11 // pred_check
          %p213 = pneg %p67
        $region14: #{tpu_custom_call.1} parent=11 // pred_check_branch
          %215 = sbr.rel (%p213) target = $region16
        $region15: #{tpu_custom_call.1} parent=11 // pred_region
          _
        $region16: #{tpu_custom_call.1} parent=11 // pred_fallthru
          _
        // Predicated region
        $region17: #{tpu_custom_call.1} parent=11 // pred_check
          %p216 = pneg %p88
        $region18: #{tpu_custom_call.1} parent=11 // pred_check_branch
          %218 = sbr.rel (%p216) target = $region20
        $region19: #{tpu_custom_call.1} parent=11 // pred_region
          %s220 = ssub.s32 512, 512
          %221 = vsyncadd [#allocation6], %s220
          %s222 = sshll.u32 [#allocation5], 4
          %s223 = int_to_ptr.vmem [resolvable:$true] %s222
          %228 = dma.hbm_to_vmem [thread:$0]  %s2, 512, %s223, [#allocation6], 128, 128, 8
        $region20: #{tpu_custom_call.1} parent=11 // pred_fallthru
          _
        // Predicated region
        $region21: #{tpu_custom_call.1} parent=11 // pred_check
          %p229 = pneg %p109
        $region22: #{tpu_custom_call.1} parent=11 // pred_check_branch
          %231 = sbr.rel (%p229) target = $region24
        $region23: #{tpu_custom_call.1} parent=11 // pred_region
          %s233 = ssub.s32 512, 512
          %234 = vsyncadd [#allocation6], %s233
          %s235 = sshll.u32 [#allocation7], 4
          %s236 = int_to_ptr.vmem [resolvable:$true] %s235
          %241 = dma.hbm_to_vmem [thread:$0]  %s3, 512, %s236, [#allocation6], 128, 128, 8
        $region24: #{tpu_custom_call.1} parent=11 // pred_fallthru
          _
        // Predicated region
        $region25: #{tpu_custom_call.1} parent=11 // pred_check
          %p242 = pneg %p130
        $region26: #{tpu_custom_call.1} parent=11 // pred_check_branch
          %244 = sbr.rel (%p242) target = $region28
        $region27: #{tpu_custom_call.1} parent=11 // pred_region
          _
        $region28: #{tpu_custom_call.1} parent=11 // pred_fallthru
          _
        // Predicated region
        $region29: #{tpu_custom_call.1} parent=11 // pred_check
          %p245 = pneg %p151
        $region30: #{tpu_custom_call.1} parent=11 // pred_check_branch
          %247 = sbr.rel (%p245) target = $region32
        $region31: #{tpu_custom_call.1} parent=11 // pred_region
          _
        $region32: #{tpu_custom_call.1} parent=11 // pred_fallthru
          _
        // Predicated region
        $region33: #{tpu_custom_call.1} parent=11 // pred_check
          %p248 = pneg %p172
        $region34: #{tpu_custom_call.1} parent=11 // pred_check_branch
          %250 = sbr.rel (%p248) target = $region36
        $region35: #{tpu_custom_call.1} parent=11 // pred_region
          _
        $region36: #{tpu_custom_call.1} parent=11 // pred_fallthru
          _
      $region12: #{tpu_custom_call.1} parent=5 // pred_fallthru
        _
      %p251 = scmp.lt.s32.totalorder %s20, 2
      // Predicated region
      $region37: #{tpu_custom_call.1} parent=5 // pred_check
        %p252 = pneg %p251
      $region38: #{tpu_custom_call.1} parent=5 // pred_check_branch
        %254 = sbr.rel (%p252) target = $region40
      $region39: #{tpu_custom_call.1} parent=5 // pred_region
        // Predicated region
        $region41: #{tpu_custom_call.1} parent=39 // pred_check
          %p255 = pneg %p40
        $region42: #{tpu_custom_call.1} parent=39 // pred_check_branch
          %257 = sbr.rel (%p255) target = $region44
        $region43: #{tpu_custom_call.1} parent=39 // pred_region
          %s258 = sand.u32 %s30, 1
          %s259 = scalar_lea.sflag [#allocation3], %s258
          %s260 = sand.u32 %s30, 1
          %s261 = smul.addr %s260, 64
          %s262 = scalar_lea.vmem [#allocation2], %s261
          %s263 = smul.u32 4, %s20
          %s265 = ssub.s32 1024, 1024
          %266 = vsyncadd %s259, %s265
          %s267 = smul.addr %s263, 2
          %s268 = smul.addr %s267, 128
          %s269 = scalar_lea.hbm %s0, %s268
          %s270 = sshll.u32 %s262, 4
          %s271 = int_to_ptr.vmem [resolvable:$true] %s270
          %276 = dma.hbm_to_vmem [thread:$0]  %s269, 1024, %s271, %s259, 128, 128, 8
        $region44: #{tpu_custom_call.1} parent=39 // pred_fallthru
          _
      $region40: #{tpu_custom_call.1} parent=5 // pred_fallthru
        _
      %p277 = scmp.le.s32.totalorder 1, %s20
      %p278 = scmp.lt.s32.totalorder %s20, 3
      %p279 = pnand %p277, %p278
      %p280 = pneg %p279
      // Predicated region
      $region45: #{tpu_custom_call.1} parent=5 // pred_check
        _
      $region46: #{tpu_custom_call.1} parent=5 // pred_check_branch
        %282 = sbr.rel (%p279) target = $region48
      $region47: #{tpu_custom_call.1} parent=5 // pred_region
        %s283 = ssub.s32 %s20, 1
        %s284 = sand.u32 %s33, 1
        %s285 = scalar_lea.sflag [#allocation3], %s284
        %s286 = sand.u32 %s33, 1
        %s287 = smul.addr %s286, 64
        %s288 = scalar_lea.vmem [#allocation2], %s287
        // Predicated region
        $region49: #{tpu_custom_call.1} parent=47 // pred_check
          %p289 = pneg %p46
        $region50: #{tpu_custom_call.1} parent=47 // pred_check_branch
          %291 = sbr.rel (%p289) target = $region52
        $region51: #{tpu_custom_call.1} parent=47 // pred_region
          %292 = dma.done %s285, 1024
        $region52: #{tpu_custom_call.1} parent=47 // pred_fallthru
          _
        // Predicated region
        $region53: #{tpu_custom_call.1} parent=47 // pred_check
          %p293 = pneg %p88
        $region54: #{tpu_custom_call.1} parent=47 // pred_check_branch
          %295 = sbr.rel (%p293) target = $region56
        $region55: #{tpu_custom_call.1} parent=47 // pred_region
          %296 = dma.done [#allocation6], 512
        $region56: #{tpu_custom_call.1} parent=47 // pred_fallthru
          _
        // Predicated region
        $region57: #{tpu_custom_call.1} parent=47 // pred_check
          %p297 = pneg %p109
        $region58: #{tpu_custom_call.1} parent=47 // pred_check_branch
          %299 = sbr.rel (%p297) target = $region60
        $region59: #{tpu_custom_call.1} parent=47 // pred_region
          %300 = dma.done [#allocation6], 512
        $region60: #{tpu_custom_call.1} parent=47 // pred_fallthru
          _
        %s301 = sand.u32 %s33, 1
        %s302 = scalar_lea.sflag [#allocation3], %s301
        %s303 = sand.u32 %s33, 1
        %s304 = smul.addr %s303, 64
        %s305 = scalar_lea.vmem [#allocation2], %s304
        %p306 = pneg %p46
        %p307 = pneg %p43
        %p308 = pneg %p67
        %p309 = pneg %p64
        %p310 = pneg %p88
        %p311 = pneg %p85
        %p312 = pneg %p109
        %p313 = pneg %p106
        %p314 = pneg %p130
        %p315 = pneg %p127
        %p316 = pneg %p151
        %p317 = pneg %p148
        %p318 = pneg %p172
        %p319 = pneg %p169
        %p320 = pneg %p198
        %p321 = pneg %p195
        %s322 = sand.u32 %s185, 1
        %s323 = scalar_lea.sflag [#allocation4], %s322
        %s324 = sand.u32 %s185, 1
        %s325 = smul.addr %s324, 64
        %s326 = scalar_lea.vmem [#allocation8], %s325
        %s327 = smul.u32 4, %s25
        %s328 = smul.u32 4, %s25
        %v329 = vld [vmem:[%s288] sm:$0xff]
        %v330 = vld [vmem:[%s288 + $0x8] sm:$0xff]
        %v331 = vld [vmem:[%s288 + $0x10] sm:$0xff]
        %v332 = vld [vmem:[%s288 + $0x18] sm:$0xff]
        %v333 = vld [vmem:[%s288 + $0x20] sm:$0xff]
        %v334 = vld [vmem:[%s288 + $0x28] sm:$0xff]
        %v335 = vld [vmem:[%s288 + $0x30] sm:$0xff]
        %v336 = vld [vmem:[%s288 + $0x38] sm:$0xff]
        %v337 = vld [vmem:[%s1] sm:$0xff]
        %v338 = vld [vmem:[%s1 + $0x8] sm:$0xff]
        %v339 = vld [vmem:[%s1 + $0x10] sm:$0xff]
        %v340 = vld [vmem:[%s1 + $0x18] sm:$0xff]
        %vm341 = vcmask 261120
        %v343 = vsel %vm341, %v329, 0
        %v346 = vsel %vm341, %v330, 0
        %v349 = vsel %vm341, %v331, 0
        %v352 = vsel %vm341, %v332, 0
        %v355 = vsel %vm341, %v333, 0
        %v358 = vsel %vm341, %v334, 0
        %v361 = vsel %vm341, %v335, 0
        %v364 = vsel %vm341, %v336, 0
        %366 = vmatprep.subr.mxu0 0.0
        %367 = vmatpush1.msra.mxu0 0.0
        %368 = vmatprep.subr.mxu0 0.0
        %369 = vmatpush1.msra.mxu0 0.0
        %370 = vmatprep.subr.mxu0 0.0
        %371 = vmatpush1.msra.mxu0 0.0
        %372 = vmatprep.subr.mxu0 0.0
        %373 = vmatpush1.msra.mxu0 0.0
        %374 = vmatprep.subr.mxu0 0.0
        %375 = vmatpush1.msra.mxu0 0.0
        %376 = vmatprep.subr.mxu0 0.0
        %377 = vmatpush1.msra.mxu0 0.0
        %378 = vmatprep.subr.mxu0 0.0
        %379 = vmatpush1.msra.mxu0 0.0
        %380 = vmatprep.subr.mxu0 0.0
        %381 = vmatpush1.msra.mxu0 0.0
        %382 = vmatprep.subr.mxu0 0.0
        %383 = vmatpush1.msra.mxu0 0.0
        %384 = vmatprep.subr.mxu0 0.0
        %385 = vmatpush1.msra.mxu0 0.0
        %386 = vmatprep.subr.mxu0 0.0
        %387 = vmatpush1.msra.mxu0 0.0
        %388 = vmatprep.subr.mxu0 0.0
        %389 = vmatpush1.msra.mxu0 0.0
        %390 = vmatprep.subr.mxu0 0.0
        %391 = vmatpush1.msra.mxu0 %v340
        %392 = vmatprep.subr.mxu0 0.0
        %393 = vmatpush1.msra.mxu0 %v339
        %394 = vmatprep.subr.mxu0 0.0
        %395 = vmatpush1.msra.mxu0 %v338
        %396 = vmatprep.subr.mxu0 0.0
        %397 = vmatpush1.msra.mxu0 %v337
        %398 = vmatprep.subr.mxu0 0.0
        %399 = vmatpush2.msra.mxu0 0.0
        %400 = vmatprep.subr.mxu0 0.0
        %401 = vmatpush2.msra.mxu0 0.0
        %402 = vmatprep.subr.mxu0 0.0
        %403 = vmatpush2.msra.mxu0 0.0
        %404 = vmatprep.subr.mxu0 0.0
        %405 = vmatpush2.msra.mxu0 0.0
        %406 = vmatprep.subr.mxu0 0.0
        %407 = vmatpush2.msra.mxu0 0.0
        %408 = vmatprep.subr.mxu0 0.0
        %409 = vmatpush2.msra.mxu0 0.0
        %410 = vmatprep.subr.mxu0 0.0
        %411 = vmatpush2.msra.mxu0 0.0
        %412 = vmatprep.subr.mxu0 0.0
        %413 = vmatpush2.msra.mxu0 0.0
        %414 = vmatprep.subr.mxu0 0.0
        %415 = vmatpush2.msra.mxu0 0.0
        %416 = vmatprep.subr.mxu0 0.0
        %417 = vmatpush2.msra.mxu0 0.0
        %418 = vmatprep.subr.mxu0 0.0
        %419 = vmatpush2.msra.mxu0 0.0
        %420 = vmatprep.subr.mxu0 0.0
        %421 = vmatpush2.msra.mxu0 0.0
        %422 = vmatprep.subr.mxu0 0.0
        %423 = vmatpush2.msra.mxu0 0.0
        %424 = vmatprep.subr.mxu0 0.0
        %425 = vmatpush2.msra.mxu0 0.0
        %426 = vmatprep.subr.mxu0 0.0
        %427 = vmatpush2.msra.mxu0 0.0
        %428 = vmatprep.subr.mxu0 0.0
        %429 = vmatpush2.msra.mxu0 0.0
        %430 = vmatprep.mubr.f32.mxu0 0.0
        %431 = vmatmul.mubr.f32.gmra.mxu0 %v343
        %v432 = vpop.f32.mrf.mxu0
        %v433 = vadd.f32 0.0, %v432
        %v434 = vpop.f32.mrf.mxu0
        %435 = vmatprep.mubr.f32.mxu0 0.0
        %436 = vmatmul.mubr.f32.gmra.mxu0 %v346
        %v437 = vpop.f32.mrf.mxu0
        %v438 = vadd.f32 0.0, %v437
        %v439 = vpop.f32.mrf.mxu0
        %440 = vmatprep.mubr.f32.mxu0 0.0
        %441 = vmatmul.mubr.f32.gmra.mxu0 %v349
        %v442 = vpop.f32.mrf.mxu0
        %v443 = vadd.f32 0.0, %v442
        %v444 = vpop.f32.mrf.mxu0
        %445 = vmatprep.mubr.f32.mxu0 0.0
        %446 = vmatmul.mubr.f32.gmra.mxu0 %v352
        %v447 = vpop.f32.mrf.mxu0
        %v448 = vadd.f32 0.0, %v447
        %v449 = vpop.f32.mrf.mxu0
        %450 = vmatprep.mubr.f32.mxu0 0.0
        %451 = vmatmul.mubr.f32.gmra.mxu0 %v355
        %v452 = vpop.f32.mrf.mxu0
        %v453 = vadd.f32 0.0, %v452
        %v454 = vpop.f32.mrf.mxu0
        %455 = vmatprep.mubr.f32.mxu0 0.0
        %456 = vmatmul.mubr.f32.gmra.mxu0 %v358
        %v457 = vpop.f32.mrf.mxu0
        %v458 = vadd.f32 0.0, %v457
        %v459 = vpop.f32.mrf.mxu0
        %460 = vmatprep.mubr.f32.mxu0 0.0
        %461 = vmatmul.mubr.f32.gmra.mxu0 %v361
        %v462 = vpop.f32.mrf.mxu0
        %v463 = vadd.f32 0.0, %v462
        %v464 = vpop.f32.mrf.mxu0
        %465 = vmatprep.mubr.f32.mxu0 0.0
        %466 = vmatmul.mubr.f32.gmra.mxu0 %v364
        %v467 = vpop.f32.mrf.mxu0
        %v468 = vadd.f32 0.0, %v467
        %v469 = vpop.f32.mrf.mxu0
        %470 = vdwg.mxu0
        %v471 = vmul.f32 %v433, 0.25
        %v472 = vmul.f32 %v438, 0.25
        %v473 = vmul.f32 %v443, 0.25
        %v474 = vmul.f32 %v448, 0.25
        %v475 = vmul.f32 %v453, 0.25
        %v476 = vmul.f32 %v458, 0.25
        %v477 = vmul.f32 %v463, 0.25
        %v478 = vmul.f32 %v468, 0.25
        %v479 = vld [vmem:[#allocation5] sm:$0xff]
        %v480 = vld [vmem:[#allocation5 + $0x8] sm:$0xff]
        %v481 = vld [vmem:[#allocation5 + $0x10] sm:$0xff]
        %v482 = vld [vmem:[#allocation5 + $0x18] sm:$0xff]
        %483 = vmatprep.subr.mxu0 0.0
        %484 = vmatpush1.msra.mxu0 0.0
        %485 = vmatprep.subr.mxu0 0.0
        %486 = vmatpush1.msra.mxu0 0.0
        %487 = vmatprep.subr.mxu0 0.0
        %488 = vmatpush1.msra.mxu0 0.0
        %489 = vmatprep.subr.mxu0 0.0
        %490 = vmatpush1.msra.mxu0 0.0
        %491 = vmatprep.subr.mxu0 0.0
        %492 = vmatpush1.msra.mxu0 0.0
        %493 = vmatprep.subr.mxu0 0.0
        %494 = vmatpush1.msra.mxu0 0.0
        %495 = vmatprep.subr.mxu0 0.0
        %496 = vmatpush1.msra.mxu0 0.0
        %497 = vmatprep.subr.mxu0 0.0
        %498 = vmatpush1.msra.mxu0 0.0
        %499 = vmatprep.subr.mxu0 0.0
        %500 = vmatpush1.msra.mxu0 0.0
        %501 = vmatprep.subr.mxu0 0.0
        %502 = vmatpush1.msra.mxu0 0.0
        %503 = vmatprep.subr.mxu0 0.0
        %504 = vmatpush1.msra.mxu0 0.0
        %505 = vmatprep.subr.mxu0 0.0
        %506 = vmatpush1.msra.mxu0 0.0
        %507 = vmatprep.subr.mxu0 0.0
        %508 = vmatpush1.msra.mxu0 %v482
        %509 = vmatprep.subr.mxu0 0.0
        %510 = vmatpush1.msra.mxu0 %v481
        %511 = vmatprep.subr.mxu0 0.0
        %512 = vmatpush1.msra.mxu0 %v480
        %513 = vmatprep.subr.mxu0 0.0
        %514 = vmatpush1.msra.mxu0 %v479
        %515 = vmatprep.subr.mxu0 0.0
        %516 = vmatpush2.msra.mxu0 0.0
        %517 = vmatprep.subr.mxu0 0.0
        %518 = vmatpush2.msra.mxu0 0.0
        %519 = vmatprep.subr.mxu0 0.0
        %520 = vmatpush2.msra.mxu0 0.0
        %521 = vmatprep.subr.mxu0 0.0
        %522 = vmatpush2.msra.mxu0 0.0
        %523 = vmatprep.subr.mxu0 0.0
        %524 = vmatpush2.msra.mxu0 0.0
        %525 = vmatprep.subr.mxu0 0.0
        %526 = vmatpush2.msra.mxu0 0.0
        %527 = vmatprep.subr.mxu0 0.0
        %528 = vmatpush2.msra.mxu0 0.0
        %529 = vmatprep.subr.mxu0 0.0
        %530 = vmatpush2.msra.mxu0 0.0
        %531 = vmatprep.subr.mxu0 0.0
        %532 = vmatpush2.msra.mxu0 0.0
        %533 = vmatprep.subr.mxu0 0.0
        %534 = vmatpush2.msra.mxu0 0.0
        %535 = vmatprep.subr.mxu0 0.0
        %536 = vmatpush2.msra.mxu0 0.0
        %537 = vmatprep.subr.mxu0 0.0
        %538 = vmatpush2.msra.mxu0 0.0
        %539 = vmatprep.subr.mxu0 0.0
        %540 = vmatpush2.msra.mxu0 0.0
        %541 = vmatprep.subr.mxu0 0.0
        %542 = vmatpush2.msra.mxu0 0.0
        %543 = vmatprep.subr.mxu0 0.0
        %544 = vmatpush2.msra.mxu0 0.0
        %545 = vmatprep.subr.mxu0 0.0
        %546 = vmatpush2.msra.mxu0 0.0
        %547 = vmatprep.mubr.f32.mxu0 0.0
        %548 = vmatmul.mubr.f32.gmra.mxu0 %v343
        %v549 = vpop.f32.mrf.mxu0
        %v550 = vadd.f32 0.0, %v549
        %v551 = vpop.f32.mrf.mxu0
        %552 = vmatprep.mubr.f32.mxu0 0.0
        %553 = vmatmul.mubr.f32.gmra.mxu0 %v346
        %v554 = vpop.f32.mrf.mxu0
        %v555 = vadd.f32 0.0, %v554
        %v556 = vpop.f32.mrf.mxu0
        %557 = vmatprep.mubr.f32.mxu0 0.0
        %558 = vmatmul.mubr.f32.gmra.mxu0 %v349
        %v559 = vpop.f32.mrf.mxu0
        %v560 = vadd.f32 0.0, %v559
        %v561 = vpop.f32.mrf.mxu0
        %562 = vmatprep.mubr.f32.mxu0 0.0
        %563 = vmatmul.mubr.f32.gmra.mxu0 %v352
        %v564 = vpop.f32.mrf.mxu0
        %v565 = vadd.f32 0.0, %v564
        %v566 = vpop.f32.mrf.mxu0
        %567 = vmatprep.mubr.f32.mxu0 0.0
        %568 = vmatmul.mubr.f32.gmra.mxu0 %v355
        %v569 = vpop.f32.mrf.mxu0
        %v570 = vadd.f32 0.0, %v569
        %v571 = vpop.f32.mrf.mxu0
        %572 = vmatprep.mubr.f32.mxu0 0.0
        %573 = vmatmul.mubr.f32.gmra.mxu0 %v358
        %v574 = vpop.f32.mrf.mxu0
        %v575 = vadd.f32 0.0, %v574
        %v576 = vpop.f32.mrf.mxu0
        %577 = vmatprep.mubr.f32.mxu0 0.0
        %578 = vmatmul.mubr.f32.gmra.mxu0 %v361
        %v579 = vpop.f32.mrf.mxu0
        %v580 = vadd.f32 0.0, %v579
        %v581 = vpop.f32.mrf.mxu0
        %582 = vmatprep.mubr.f32.mxu0 0.0
        %583 = vmatmul.mubr.f32.gmra.mxu0 %v364
        %v584 = vpop.f32.mrf.mxu0
        %v585 = vadd.f32 0.0, %v584
        %v586 = vpop.f32.mrf.mxu0
        %587 = vdwg.mxu0
        %v588 = vld [vmem:[#allocation7] sm:$0xff]
        %v589 = vld [vmem:[#allocation7 + $0x8] sm:$0xff]
        %v590 = vld [vmem:[#allocation7 + $0x10] sm:$0xff]
        %v591 = vld [vmem:[#allocation7 + $0x18] sm:$0xff]
        %592 = vmatprep.subr.mxu0 0.0
        %593 = vmatpush1.msra.mxu0 0.0
        %594 = vmatprep.subr.mxu0 0.0
        %595 = vmatpush1.msra.mxu0 0.0
        %596 = vmatprep.subr.mxu0 0.0
        %597 = vmatpush1.msra.mxu0 0.0
        %598 = vmatprep.subr.mxu0 0.0
        %599 = vmatpush1.msra.mxu0 0.0
        %600 = vmatprep.subr.mxu0 0.0
        %601 = vmatpush1.msra.mxu0 0.0
        %602 = vmatprep.subr.mxu0 0.0
        %603 = vmatpush1.msra.mxu0 0.0
        %604 = vmatprep.subr.mxu0 0.0
        %605 = vmatpush1.msra.mxu0 0.0
        %606 = vmatprep.subr.mxu0 0.0
        %607 = vmatpush1.msra.mxu0 0.0
        %608 = vmatprep.subr.mxu0 0.0
        %609 = vmatpush1.msra.mxu0 0.0
        %610 = vmatprep.subr.mxu0 0.0
        %611 = vmatpush1.msra.mxu0 0.0
        %612 = vmatprep.subr.mxu0 0.0
        %613 = vmatpush1.msra.mxu0 0.0
        %614 = vmatprep.subr.mxu0 0.0
        %615 = vmatpush1.msra.mxu0 0.0
        %616 = vmatprep.subr.mxu0 0.0
        %617 = vmatpush1.msra.mxu0 %v591
        %618 = vmatprep.subr.mxu0 0.0
        %619 = vmatpush1.msra.mxu0 %v590
        %620 = vmatprep.subr.mxu0 0.0
        %621 = vmatpush1.msra.mxu0 %v589
        %622 = vmatprep.subr.mxu0 0.0
        %623 = vmatpush1.msra.mxu0 %v588
        %624 = vmatprep.subr.mxu0 0.0
        %625 = vmatpush2.msra.mxu0 0.0
        %626 = vmatprep.subr.mxu0 0.0
        %627 = vmatpush2.msra.mxu0 0.0
        %628 = vmatprep.subr.mxu0 0.0
        %629 = vmatpush2.msra.mxu0 0.0
        %630 = vmatprep.subr.mxu0 0.0
        %631 = vmatpush2.msra.mxu0 0.0
        %632 = vmatprep.subr.mxu0 0.0
        %633 = vmatpush2.msra.mxu0 0.0
        %634 = vmatprep.subr.mxu0 0.0
        %635 = vmatpush2.msra.mxu0 0.0
        %636 = vmatprep.subr.mxu0 0.0
        %637 = vmatpush2.msra.mxu0 0.0
        %638 = vmatprep.subr.mxu0 0.0
        %639 = vmatpush2.msra.mxu0 0.0
        %640 = vmatprep.subr.mxu0 0.0
        %641 = vmatpush2.msra.mxu0 0.0
        %642 = vmatprep.subr.mxu0 0.0
        %643 = vmatpush2.msra.mxu0 0.0
        %644 = vmatprep.subr.mxu0 0.0
        %645 = vmatpush2.msra.mxu0 0.0
        %646 = vmatprep.subr.mxu0 0.0
        %647 = vmatpush2.msra.mxu0 0.0
        %648 = vmatprep.subr.mxu0 0.0
        %649 = vmatpush2.msra.mxu0 0.0
        %650 = vmatprep.subr.mxu0 0.0
        %651 = vmatpush2.msra.mxu0 0.0
        %652 = vmatprep.subr.mxu0 0.0
        %653 = vmatpush2.msra.mxu0 0.0
        %654 = vmatprep.subr.mxu0 0.0
        %655 = vmatpush2.msra.mxu0 0.0
        %656 = vmatprep.mubr.f32.mxu0 0.0
        %657 = vmatmul.mubr.f32.gmra.mxu0 %v343
        %v658 = vpop.f32.mrf.mxu0
        %v659 = vadd.f32 0.0, %v658
        %v660 = vpop.f32.mrf.mxu0
        %661 = vmatprep.mubr.f32.mxu0 0.0
        %662 = vmatmul.mubr.f32.gmra.mxu0 %v346
        %v663 = vpop.f32.mrf.mxu0
        %v664 = vadd.f32 0.0, %v663
        %v665 = vpop.f32.mrf.mxu0
        %666 = vmatprep.mubr.f32.mxu0 0.0
        %667 = vmatmul.mubr.f32.gmra.mxu0 %v349
        %v668 = vpop.f32.mrf.mxu0
        %v669 = vadd.f32 0.0, %v668
        %v670 = vpop.f32.mrf.mxu0
        %671 = vmatprep.mubr.f32.mxu0 0.0
        %672 = vmatmul.mubr.f32.gmra.mxu0 %v352
        %v673 = vpop.f32.mrf.mxu0
        %v674 = vadd.f32 0.0, %v673
        %v675 = vpop.f32.mrf.mxu0
        %676 = vmatprep.mubr.f32.mxu0 0.0
        %677 = vmatmul.mubr.f32.gmra.mxu0 %v355
        %v678 = vpop.f32.mrf.mxu0
        %v679 = vadd.f32 0.0, %v678
        %v680 = vpop.f32.mrf.mxu0
        %681 = vmatprep.mubr.f32.mxu0 0.0
        %682 = vmatmul.mubr.f32.gmra.mxu0 %v358
        %v683 = vpop.f32.mrf.mxu0
        %v684 = vadd.f32 0.0, %v683
        %v685 = vpop.f32.mrf.mxu0
        %686 = vmatprep.mubr.f32.mxu0 0.0
        %687 = vmatmul.mubr.f32.gmra.mxu0 %v361
        %v688 = vpop.f32.mrf.mxu0
        %v689 = vadd.f32 0.0, %v688
        %v690 = vpop.f32.mrf.mxu0
        %691 = vmatprep.mubr.f32.mxu0 0.0
        %692 = vmatmul.mubr.f32.gmra.mxu0 %v364
        %v693 = vpop.f32.mrf.mxu0
        %v694 = vadd.f32 0.0, %v693
        %v695 = vpop.f32.mrf.mxu0
        %696 = vdwg.mxu0
        %v697 = vld [vmem:[%s4] sm:$0xff]
        %v698 = vld [vmem:[%s4 + $0x8] sm:$0xff]
        %vm699 = vcmask 130048
        %v701 = vsel %vm699, %v471, 0
        %v704 = vsel %vm699, %v472, 0
        %v707 = vsel %vm699, %v550, 0
        %v710 = vsel %vm699, %v555, 0
        %712 = vmatprep.subr.mxu0 0.0
        %713 = vmatpush1.xpose.msra.mxu0 0.0
        %714 = vmatprep.subr.mxu0 0.0
        %715 = vmatpush1.xpose.msra.mxu0 0.0
        %716 = vmatprep.subr.mxu0 0.0
        %717 = vmatpush1.xpose.msra.mxu0 0.0
        %718 = vmatprep.subr.mxu0 0.0
        %719 = vmatpush1.xpose.msra.mxu0 0.0
        %720 = vmatprep.subr.mxu0 0.0
        %721 = vmatpush1.xpose.msra.mxu0 0.0
        %722 = vmatprep.subr.mxu0 0.0
        %723 = vmatpush1.xpose.msra.mxu0 0.0
        %724 = vmatprep.subr.mxu0 0.0
        %725 = vmatpush1.xpose.msra.mxu0 0.0
        %726 = vmatprep.subr.mxu0 0.0
        %727 = vmatpush1.xpose.msra.mxu0 0.0
        %728 = vmatprep.subr.mxu0 0.0
        %729 = vmatpush1.xpose.msra.mxu0 0.0
        %730 = vmatprep.subr.mxu0 0.0
        %731 = vmatpush1.xpose.msra.mxu0 0.0
        %732 = vmatprep.subr.mxu0 0.0
        %733 = vmatpush1.xpose.msra.mxu0 0.0
        %734 = vmatprep.subr.mxu0 0.0
        %735 = vmatpush1.xpose.msra.mxu0 0.0
        %736 = vmatprep.subr.mxu0 0.0
        %737 = vmatpush1.xpose.msra.mxu0 0.0
        %738 = vmatprep.subr.mxu0 0.0
        %739 = vmatpush1.xpose.msra.mxu0 0.0
        %740 = vmatprep.subr.mxu0 0.0
        %741 = vmatpush1.xpose.msra.mxu0 %v710
        %742 = vmatprep.subr.mxu0 0.0
        %743 = vmatpush1.xpose.msra.mxu0 %v707
        %744 = vmatprep.subr.mxu0 0.0
        %745 = vmatpush2.xpose.msra.mxu0 0.0
        %746 = vmatprep.subr.mxu0 0.0
        %747 = vmatpush2.xpose.msra.mxu0 0.0
        %748 = vmatprep.subr.mxu0 0.0
        %749 = vmatpush2.xpose.msra.mxu0 0.0
        %750 = vmatprep.subr.mxu0 0.0
        %751 = vmatpush2.xpose.msra.mxu0 0.0
        %752 = vmatprep.subr.mxu0 0.0
        %753 = vmatpush2.xpose.msra.mxu0 0.0
        %754 = vmatprep.subr.mxu0 0.0
        %755 = vmatpush2.xpose.msra.mxu0 0.0
        %756 = vmatprep.subr.mxu0 0.0
        %757 = vmatpush2.xpose.msra.mxu0 0.0
        %758 = vmatprep.subr.mxu0 0.0
        %759 = vmatpush2.xpose.msra.mxu0 0.0
        %760 = vmatprep.subr.mxu0 0.0
        %761 = vmatpush2.xpose.msra.mxu0 0.0
        %762 = vmatprep.subr.mxu0 0.0
        %763 = vmatpush2.xpose.msra.mxu0 0.0
        %764 = vmatprep.subr.mxu0 0.0
        %765 = vmatpush2.xpose.msra.mxu0 0.0
        %766 = vmatprep.subr.mxu0 0.0
        %767 = vmatpush2.xpose.msra.mxu0 0.0
        %768 = vmatprep.subr.mxu0 0.0
        %769 = vmatpush2.xpose.msra.mxu0 0.0
        %770 = vmatprep.subr.mxu0 0.0
        %771 = vmatpush2.xpose.msra.mxu0 0.0
        %772 = vmatprep.subr.mxu0 0.0
        %773 = vmatpush2.xpose.msra.mxu0 0.0
        %774 = vmatprep.subr.mxu0 0.0
        %775 = vmatpush2.xpose.msra.mxu0 0.0
        %776 = vmatprep.mubr.f32.mxu0 0.0
        %777 = vmatmul.mubr.f32.gmra.mxu0 %v701
        %v778 = vpop.f32.mrf.mxu0
        %v779 = vadd.f32 %v697, %v778
        %v780 = vpop.f32.mrf.mxu0
        %781 = vmatprep.mubr.f32.mxu0 0.0
        %782 = vmatmul.mubr.f32.gmra.mxu0 %v704
        %v783 = vpop.f32.mrf.mxu0
        %v784 = vadd.f32 %v698, %v783
        %v785 = vpop.f32.mrf.mxu0
        %786 = vdwg.mxu0
        %v788 = vsel %vm699, %v473, 0
        %v791 = vsel %vm699, %v474, 0
        %v794 = vsel %vm699, %v560, 0
        %v797 = vsel %vm699, %v565, 0
        %799 = vmatprep.subr.mxu0 0.0
        %800 = vmatpush1.xpose.msra.mxu0 0.0
        %801 = vmatprep.subr.mxu0 0.0
        %802 = vmatpush1.xpose.msra.mxu0 0.0
        %803 = vmatprep.subr.mxu0 0.0
        %804 = vmatpush1.xpose.msra.mxu0 0.0
        %805 = vmatprep.subr.mxu0 0.0
        %806 = vmatpush1.xpose.msra.mxu0 0.0
        %807 = vmatprep.subr.mxu0 0.0
        %808 = vmatpush1.xpose.msra.mxu0 0.0
        %809 = vmatprep.subr.mxu0 0.0
        %810 = vmatpush1.xpose.msra.mxu0 0.0
        %811 = vmatprep.subr.mxu0 0.0
        %812 = vmatpush1.xpose.msra.mxu0 0.0
        %813 = vmatprep.subr.mxu0 0.0
        %814 = vmatpush1.xpose.msra.mxu0 0.0
        %815 = vmatprep.subr.mxu0 0.0
        %816 = vmatpush1.xpose.msra.mxu0 0.0
        %817 = vmatprep.subr.mxu0 0.0
        %818 = vmatpush1.xpose.msra.mxu0 0.0
        %819 = vmatprep.subr.mxu0 0.0
        %820 = vmatpush1.xpose.msra.mxu0 0.0
        %821 = vmatprep.subr.mxu0 0.0
        %822 = vmatpush1.xpose.msra.mxu0 0.0
        %823 = vmatprep.subr.mxu0 0.0
        %824 = vmatpush1.xpose.msra.mxu0 0.0
        %825 = vmatprep.subr.mxu0 0.0
        %826 = vmatpush1.xpose.msra.mxu0 0.0
        %827 = vmatprep.subr.mxu0 0.0
        %828 = vmatpush1.xpose.msra.mxu0 %v797
        %829 = vmatprep.subr.mxu0 0.0
        %830 = vmatpush1.xpose.msra.mxu0 %v794
        %831 = vmatprep.subr.mxu0 0.0
        %832 = vmatpush2.xpose.msra.mxu0 0.0
        %833 = vmatprep.subr.mxu0 0.0
        %834 = vmatpush2.xpose.msra.mxu0 0.0
        %835 = vmatprep.subr.mxu0 0.0
        %836 = vmatpush2.xpose.msra.mxu0 0.0
        %837 = vmatprep.subr.mxu0 0.0
        %838 = vmatpush2.xpose.msra.mxu0 0.0
        %839 = vmatprep.subr.mxu0 0.0
        %840 = vmatpush2.xpose.msra.mxu0 0.0
        %841 = vmatprep.subr.mxu0 0.0
        %842 = vmatpush2.xpose.msra.mxu0 0.0
        %843 = vmatprep.subr.mxu0 0.0
        %844 = vmatpush2.xpose.msra.mxu0 0.0
        %845 = vmatprep.subr.mxu0 0.0
        %846 = vmatpush2.xpose.msra.mxu0 0.0
        %847 = vmatprep.subr.mxu0 0.0
        %848 = vmatpush2.xpose.msra.mxu0 0.0
        %849 = vmatprep.subr.mxu0 0.0
        %850 = vmatpush2.xpose.msra.mxu0 0.0
        %851 = vmatprep.subr.mxu0 0.0
        %852 = vmatpush2.xpose.msra.mxu0 0.0
        %853 = vmatprep.subr.mxu0 0.0
        %854 = vmatpush2.xpose.msra.mxu0 0.0
        %855 = vmatprep.subr.mxu0 0.0
        %856 = vmatpush2.xpose.msra.mxu0 0.0
        %857 = vmatprep.subr.mxu0 0.0
        %858 = vmatpush2.xpose.msra.mxu0 0.0
        %859 = vmatprep.subr.mxu0 0.0
        %860 = vmatpush2.xpose.msra.mxu0 0.0
        %861 = vmatprep.subr.mxu0 0.0
        %862 = vmatpush2.xpose.msra.mxu0 0.0
        %863 = vmatprep.mubr.f32.mxu0 0.0
        %864 = vmatmul.mubr.f32.gmra.mxu0 %v788
        %v865 = vpop.f32.mrf.mxu0
        %v866 = vadd.f32 %v697, %v865
        %v867 = vpop.f32.mrf.mxu0
        %868 = vmatprep.mubr.f32.mxu0 0.0
        %869 = vmatmul.mubr.f32.gmra.mxu0 %v791
        %v870 = vpop.f32.mrf.mxu0
        %v871 = vadd.f32 %v698, %v870
        %v872 = vpop.f32.mrf.mxu0
        %873 = vdwg.mxu0
        %v875 = vsel %vm699, %v475, 0
        %v878 = vsel %vm699, %v476, 0
        %v881 = vsel %vm699, %v570, 0
        %v884 = vsel %vm699, %v575, 0
        %886 = vmatprep.subr.mxu0 0.0
        %887 = vmatpush1.xpose.msra.mxu0 0.0
        %888 = vmatprep.subr.mxu0 0.0
        %889 = vmatpush1.xpose.msra.mxu0 0.0
        %890 = vmatprep.subr.mxu0 0.0
        %891 = vmatpush1.xpose.msra.mxu0 0.0
        %892 = vmatprep.subr.mxu0 0.0
        %893 = vmatpush1.xpose.msra.mxu0 0.0
        %894 = vmatprep.subr.mxu0 0.0
        %895 = vmatpush1.xpose.msra.mxu0 0.0
        %896 = vmatprep.subr.mxu0 0.0
        %897 = vmatpush1.xpose.msra.mxu0 0.0
        %898 = vmatprep.subr.mxu0 0.0
        %899 = vmatpush1.xpose.msra.mxu0 0.0
        %900 = vmatprep.subr.mxu0 0.0
        %901 = vmatpush1.xpose.msra.mxu0 0.0
        %902 = vmatprep.subr.mxu0 0.0
        %903 = vmatpush1.xpose.msra.mxu0 0.0
        %904 = vmatprep.subr.mxu0 0.0
        %905 = vmatpush1.xpose.msra.mxu0 0.0
        %906 = vmatprep.subr.mxu0 0.0
        %907 = vmatpush1.xpose.msra.mxu0 0.0
        %908 = vmatprep.subr.mxu0 0.0
        %909 = vmatpush1.xpose.msra.mxu0 0.0
        %910 = vmatprep.subr.mxu0 0.0
        %911 = vmatpush1.xpose.msra.mxu0 0.0
        %912 = vmatprep.subr.mxu0 0.0
        %913 = vmatpush1.xpose.msra.mxu0 0.0
        %914 = vmatprep.subr.mxu0 0.0
        %915 = vmatpush1.xpose.msra.mxu0 %v884
        %916 = vmatprep.subr.mxu0 0.0
        %917 = vmatpush1.xpose.msra.mxu0 %v881
        %918 = vmatprep.subr.mxu0 0.0
        %919 = vmatpush2.xpose.msra.mxu0 0.0
        %920 = vmatprep.subr.mxu0 0.0
        %921 = vmatpush2.xpose.msra.mxu0 0.0
        %922 = vmatprep.subr.mxu0 0.0
        %923 = vmatpush2.xpose.msra.mxu0 0.0
        %924 = vmatprep.subr.mxu0 0.0
        %925 = vmatpush2.xpose.msra.mxu0 0.0
        %926 = vmatprep.subr.mxu0 0.0
        %927 = vmatpush2.xpose.msra.mxu0 0.0
        %928 = vmatprep.subr.mxu0 0.0
        %929 = vmatpush2.xpose.msra.mxu0 0.0
        %930 = vmatprep.subr.mxu0 0.0
        %931 = vmatpush2.xpose.msra.mxu0 0.0
        %932 = vmatprep.subr.mxu0 0.0
        %933 = vmatpush2.xpose.msra.mxu0 0.0
        %934 = vmatprep.subr.mxu0 0.0
        %935 = vmatpush2.xpose.msra.mxu0 0.0
        %936 = vmatprep.subr.mxu0 0.0
        %937 = vmatpush2.xpose.msra.mxu0 0.0
        %938 = vmatprep.subr.mxu0 0.0
        %939 = vmatpush2.xpose.msra.mxu0 0.0
        %940 = vmatprep.subr.mxu0 0.0
        %941 = vmatpush2.xpose.msra.mxu0 0.0
        %942 = vmatprep.subr.mxu0 0.0
        %943 = vmatpush2.xpose.msra.mxu0 0.0
        %944 = vmatprep.subr.mxu0 0.0
        %945 = vmatpush2.xpose.msra.mxu0 0.0
        %946 = vmatprep.subr.mxu0 0.0
        %947 = vmatpush2.xpose.msra.mxu0 0.0
        %948 = vmatprep.subr.mxu0 0.0
        %949 = vmatpush2.xpose.msra.mxu0 0.0
        %950 = vmatprep.mubr.f32.mxu0 0.0
        %951 = vmatmul.mubr.f32.gmra.mxu0 %v875
        %v952 = vpop.f32.mrf.mxu0
        %v953 = vadd.f32 %v697, %v952
        %v954 = vpop.f32.mrf.mxu0
        %955 = vmatprep.mubr.f32.mxu0 0.0
        %956 = vmatmul.mubr.f32.gmra.mxu0 %v878
        %v957 = vpop.f32.mrf.mxu0
        %v958 = vadd.f32 %v698, %v957
        %v959 = vpop.f32.mrf.mxu0
        %960 = vdwg.mxu0
        %v962 = vsel %vm699, %v477, 0
        %v965 = vsel %vm699, %v478, 0
        %v968 = vsel %vm699, %v580, 0
        %v971 = vsel %vm699, %v585, 0
        %973 = vmatprep.subr.mxu0 0.0
        %974 = vmatpush1.xpose.msra.mxu0 0.0
        %975 = vmatprep.subr.mxu0 0.0
        %976 = vmatpush1.xpose.msra.mxu0 0.0
        %977 = vmatprep.subr.mxu0 0.0
        %978 = vmatpush1.xpose.msra.mxu0 0.0
        %979 = vmatprep.subr.mxu0 0.0
        %980 = vmatpush1.xpose.msra.mxu0 0.0
        %981 = vmatprep.subr.mxu0 0.0
        %982 = vmatpush1.xpose.msra.mxu0 0.0
        %983 = vmatprep.subr.mxu0 0.0
        %984 = vmatpush1.xpose.msra.mxu0 0.0
        %985 = vmatprep.subr.mxu0 0.0
        %986 = vmatpush1.xpose.msra.mxu0 0.0
        %987 = vmatprep.subr.mxu0 0.0
        %988 = vmatpush1.xpose.msra.mxu0 0.0
        %989 = vmatprep.subr.mxu0 0.0
        %990 = vmatpush1.xpose.msra.mxu0 0.0
        %991 = vmatprep.subr.mxu0 0.0
        %992 = vmatpush1.xpose.msra.mxu0 0.0
        %993 = vmatprep.subr.mxu0 0.0
        %994 = vmatpush1.xpose.msra.mxu0 0.0
        %995 = vmatprep.subr.mxu0 0.0
        %996 = vmatpush1.xpose.msra.mxu0 0.0
        %997 = vmatprep.subr.mxu0 0.0
        %998 = vmatpush1.xpose.msra.mxu0 0.0
        %999 = vmatprep.subr.mxu0 0.0
        %1000 = vmatpush1.xpose.msra.mxu0 0.0
        %1001 = vmatprep.subr.mxu0 0.0
        %1002 = vmatpush1.xpose.msra.mxu0 %v971
        %1003 = vmatprep.subr.mxu0 0.0
        %1004 = vmatpush1.xpose.msra.mxu0 %v968
        %1005 = vmatprep.subr.mxu0 0.0
        %1006 = vmatpush2.xpose.msra.mxu0 0.0
        %1007 = vmatprep.subr.mxu0 0.0
        %1008 = vmatpush2.xpose.msra.mxu0 0.0
        %1009 = vmatprep.subr.mxu0 0.0
        %1010 = vmatpush2.xpose.msra.mxu0 0.0
        %1011 = vmatprep.subr.mxu0 0.0
        %1012 = vmatpush2.xpose.msra.mxu0 0.0
        %1013 = vmatprep.subr.mxu0 0.0
        %1014 = vmatpush2.xpose.msra.mxu0 0.0
        %1015 = vmatprep.subr.mxu0 0.0
        %1016 = vmatpush2.xpose.msra.mxu0 0.0
        %1017 = vmatprep.subr.mxu0 0.0
        %1018 = vmatpush2.xpose.msra.mxu0 0.0
        %1019 = vmatprep.subr.mxu0 0.0
        %1020 = vmatpush2.xpose.msra.mxu0 0.0
        %1021 = vmatprep.subr.mxu0 0.0
        %1022 = vmatpush2.xpose.msra.mxu0 0.0
        %1023 = vmatprep.subr.mxu0 0.0
        %1024 = vmatpush2.xpose.msra.mxu0 0.0
        %1025 = vmatprep.subr.mxu0 0.0
        %1026 = vmatpush2.xpose.msra.mxu0 0.0
        %1027 = vmatprep.subr.mxu0 0.0
        %1028 = vmatpush2.xpose.msra.mxu0 0.0
        %1029 = vmatprep.subr.mxu0 0.0
        %1030 = vmatpush2.xpose.msra.mxu0 0.0
        %1031 = vmatprep.subr.mxu0 0.0
        %1032 = vmatpush2.xpose.msra.mxu0 0.0
        %1033 = vmatprep.subr.mxu0 0.0
        %1034 = vmatpush2.xpose.msra.mxu0 0.0
        %1035 = vmatprep.subr.mxu0 0.0
        %1036 = vmatpush2.xpose.msra.mxu0 0.0
        %1037 = vmatprep.mubr.f32.mxu0 0.0
        %1038 = vmatmul.mubr.f32.gmra.mxu0 %v962
        %v1039 = vpop.f32.mrf.mxu0
        %v1040 = vadd.f32 %v697, %v1039
        %v1041 = vpop.f32.mrf.mxu0
        %1042 = vmatprep.mubr.f32.mxu0 0.0
        %1043 = vmatmul.mubr.f32.gmra.mxu0 %v965
        %v1044 = vpop.f32.mrf.mxu0
        %v1045 = vadd.f32 %v698, %v1044
        %v1046 = vpop.f32.mrf.mxu0
        %1047 = vdwg.mxu0
        %v1048 = vsel %vm699, %v779, -inf
        %1049 = vmax.xlane.f32.xlu0 %v1048
        %v1050 = vpop.xlane.xlu0 %1049
        %v1051 = vsel %vm699, %v784, -inf
        %1052 = vmax.xlane.f32.xlu0 %v1051
        %v1053 = vpop.xlane.xlu0 %1052
        %v1054 = vsel %vm699, %v866, -inf
        %1055 = vmax.xlane.f32.xlu0 %v1054
        %v1056 = vpop.xlane.xlu0 %1055
        %v1057 = vsel %vm699, %v871, -inf
        %1058 = vmax.xlane.f32.xlu0 %v1057
        %v1059 = vpop.xlane.xlu0 %1058
        %v1060 = vsel %vm699, %v953, -inf
        %1061 = vmax.xlane.f32.xlu0 %v1060
        %v1062 = vpop.xlane.xlu0 %1061
        %v1063 = vsel %vm699, %v958, -inf
        %1064 = vmax.xlane.f32.xlu0 %v1063
        %v1065 = vpop.xlane.xlu0 %1064
        %v1066 = vsel %vm699, %v1040, -inf
        %1067 = vmax.xlane.f32.xlu0 %v1066
        %v1068 = vpop.xlane.xlu0 %1067
        %v1069 = vsel %vm699, %v1045, -inf
        %1070 = vmax.xlane.f32.xlu0 %v1069
        %v1071 = vpop.xlane.xlu0 %1070
        %v1072 = vsub.f32 %v779, %v1050
        %v1073 = vsub.f32 %v784, %v1053
        %v1074 = vsub.f32 %v866, %v1056
        %v1075 = vsub.f32 %v871, %v1059
        %v1076 = vsub.f32 %v953, %v1062
        %v1077 = vsub.f32 %v958, %v1065
        %v1078 = vsub.f32 %v1040, %v1068
        %v1079 = vsub.f32 %v1045, %v1071
        %v1080 = vmul.f32 %v1072, 1.442695
        %v1081 = vpow.pop %v1080
        %v1082 = vmul.f32 %v1073, 1.442695
        %v1083 = vpow.pop %v1082
        %v1084 = vmul.f32 %v1074, 1.442695
        %v1085 = vpow.pop %v1084
        %v1086 = vmul.f32 %v1075, 1.442695
        %v1087 = vpow.pop %v1086
        %v1088 = vmul.f32 %v1076, 1.442695
        %v1089 = vpow.pop %v1088
        %v1090 = vmul.f32 %v1077, 1.442695
        %v1091 = vpow.pop %v1090
        %v1092 = vmul.f32 %v1078, 1.442695
        %v1093 = vpow.pop %v1092
        %v1094 = vmul.f32 %v1079, 1.442695
        %v1095 = vpow.pop %v1094
        %v1096 = vsel %vm699, %v1081, 0.0
        %1097 = vadd.xlane.f32.xlu0 %v1096
        %v1098 = vpop.xlane.xlu0 %1097
        %v1099 = vsel %vm699, %v1083, 0.0
        %1100 = vadd.xlane.f32.xlu0 %v1099
        %v1101 = vpop.xlane.xlu0 %1100
        %v1102 = vsel %vm699, %v1085, 0.0
        %1103 = vadd.xlane.f32.xlu0 %v1102
        %v1104 = vpop.xlane.xlu0 %1103
        %v1105 = vsel %vm699, %v1087, 0.0
        %1106 = vadd.xlane.f32.xlu0 %v1105
        %v1107 = vpop.xlane.xlu0 %1106
        %v1108 = vsel %vm699, %v1089, 0.0
        %1109 = vadd.xlane.f32.xlu0 %v1108
        %v1110 = vpop.xlane.xlu0 %1109
        %v1111 = vsel %vm699, %v1091, 0.0
        %1112 = vadd.xlane.f32.xlu0 %v1111
        %v1113 = vpop.xlane.xlu0 %1112
        %v1114 = vsel %vm699, %v1093, 0.0
        %1115 = vadd.xlane.f32.xlu0 %v1114
        %v1116 = vpop.xlane.xlu0 %1115
        %v1117 = vsel %vm699, %v1095, 0.0
        %1118 = vadd.xlane.f32.xlu0 %v1117
        %v1119 = vpop.xlane.xlu0 %1118
        %v1120 = vrcp.pop %v1098
        %v1121 = vrcp.pop %v1101
        %v1122 = vrcp.pop %v1104
        %v1123 = vrcp.pop %v1107
        %v1124 = vrcp.pop %v1110
        %v1125 = vrcp.pop %v1113
        %v1126 = vrcp.pop %v1116
        %v1127 = vrcp.pop %v1119
        %v1128 = vmul.f32 %v1098, %v1120
        %v1129 = vmul.f32 %v1101, %v1121
        %v1130 = vmul.f32 %v1104, %v1122
        %v1131 = vmul.f32 %v1107, %v1123
        %v1132 = vmul.f32 %v1110, %v1124
        %v1133 = vmul.f32 %v1113, %v1125
        %v1134 = vmul.f32 %v1116, %v1126
        %v1135 = vmul.f32 %v1119, %v1127
        %v1136 = vsub.f32 2.0, %v1128
        %v1137 = vsub.f32 2.0, %v1129
        %v1138 = vsub.f32 2.0, %v1130
        %v1139 = vsub.f32 2.0, %v1131
        %v1140 = vsub.f32 2.0, %v1132
        %v1141 = vsub.f32 2.0, %v1133
        %v1142 = vsub.f32 2.0, %v1134
        %v1143 = vsub.f32 2.0, %v1135
        %v1144 = vmul.f32 %v1120, %v1136
        %v1145 = vmul.f32 %v1121, %v1137
        %v1146 = vmul.f32 %v1122, %v1138
        %v1147 = vmul.f32 %v1123, %v1139
        %v1148 = vmul.f32 %v1124, %v1140
        %v1149 = vmul.f32 %v1125, %v1141
        %v1150 = vmul.f32 %v1126, %v1142
        %v1151 = vmul.f32 %v1127, %v1143
        %v1152 = vmul.f32 %v1081, %v1144
        %v1153 = vmul.f32 %v1083, %v1145
        %v1154 = vmul.f32 %v1085, %v1146
        %v1155 = vmul.f32 %v1087, %v1147
        %v1156 = vmul.f32 %v1089, %v1148
        %v1157 = vmul.f32 %v1091, %v1149
        %v1158 = vmul.f32 %v1093, %v1150
        %v1159 = vmul.f32 %v1095, %v1151
        %v1161 = vsel %vm699, %v1152, 0
        %v1164 = vsel %vm699, %v1153, 0
        %1166 = vmatprep.subr.mxu0 0.0
        %1167 = vmatpush1.msra.mxu0 0.0
        %1168 = vmatprep.subr.mxu0 0.0
        %1169 = vmatpush1.msra.mxu0 0.0
        %1170 = vmatprep.subr.mxu0 0.0
        %1171 = vmatpush1.msra.mxu0 0.0
        %1172 = vmatprep.subr.mxu0 0.0
        %1173 = vmatpush1.msra.mxu0 0.0
        %1174 = vmatprep.subr.mxu0 0.0
        %1175 = vmatpush1.msra.mxu0 0.0
        %1176 = vmatprep.subr.mxu0 0.0
        %1177 = vmatpush1.msra.mxu0 0.0
        %1178 = vmatprep.subr.mxu0 0.0
        %1179 = vmatpush1.msra.mxu0 0.0
        %1180 = vmatprep.subr.mxu0 0.0
        %1181 = vmatpush1.msra.mxu0 0.0
        %1182 = vmatprep.subr.mxu0 0.0
        %1183 = vmatpush1.msra.mxu0 0.0
        %1184 = vmatprep.subr.mxu0 0.0
        %1185 = vmatpush1.msra.mxu0 0.0
        %1186 = vmatprep.subr.mxu0 0.0
        %1187 = vmatpush1.msra.mxu0 0.0
        %1188 = vmatprep.subr.mxu0 0.0
        %1189 = vmatpush1.msra.mxu0 0.0
        %1190 = vmatprep.subr.mxu0 0.0
        %1191 = vmatpush1.msra.mxu0 0.0
        %1192 = vmatprep.subr.mxu0 0.0
        %1193 = vmatpush1.msra.mxu0 0.0
        %1194 = vmatprep.subr.mxu0 0.0
        %1195 = vmatpush1.msra.mxu0 %v664
        %1196 = vmatprep.subr.mxu0 0.0
        %1197 = vmatpush1.msra.mxu0 %v659
        %1198 = vmatprep.subr.mxu0 0.0
        %1199 = vmatpush2.msra.mxu0 0.0
        %1200 = vmatprep.subr.mxu0 0.0
        %1201 = vmatpush2.msra.mxu0 0.0
        %1202 = vmatprep.subr.mxu0 0.0
        %1203 = vmatpush2.msra.mxu0 0.0
        %1204 = vmatprep.subr.mxu0 0.0
        %1205 = vmatpush2.msra.mxu0 0.0
        %1206 = vmatprep.subr.mxu0 0.0
        %1207 = vmatpush2.msra.mxu0 0.0
        %1208 = vmatprep.subr.mxu0 0.0
        %1209 = vmatpush2.msra.mxu0 0.0
        %1210 = vmatprep.subr.mxu0 0.0
        %1211 = vmatpush2.msra.mxu0 0.0
        %1212 = vmatprep.subr.mxu0 0.0
        %1213 = vmatpush2.msra.mxu0 0.0
        %1214 = vmatprep.subr.mxu0 0.0
        %1215 = vmatpush2.msra.mxu0 0.0
        %1216 = vmatprep.subr.mxu0 0.0
        %1217 = vmatpush2.msra.mxu0 0.0
        %1218 = vmatprep.subr.mxu0 0.0
        %1219 = vmatpush2.msra.mxu0 0.0
        %1220 = vmatprep.subr.mxu0 0.0
        %1221 = vmatpush2.msra.mxu0 0.0
        %1222 = vmatprep.subr.mxu0 0.0
        %1223 = vmatpush2.msra.mxu0 0.0
        %1224 = vmatprep.subr.mxu0 0.0
        %1225 = vmatpush2.msra.mxu0 0.0
        %1226 = vmatprep.subr.mxu0 0.0
        %1227 = vmatpush2.msra.mxu0 0.0
        %1228 = vmatprep.subr.mxu0 0.0
        %1229 = vmatpush2.msra.mxu0 0.0
        %1230 = vmatprep.mubr.f32.mxu0 0.0
        %1231 = vmatmul.mubr.f32.gmra.mxu0 %v1161
        %v1232 = vpop.f32.mrf.mxu0
        %v1233 = vadd.f32 0.0, %v1232
        %v1234 = vpop.f32.mrf.mxu0
        %1235 = vmatprep.mubr.f32.mxu0 0.0
        %1236 = vmatmul.mubr.f32.gmra.mxu0 %v1164
        %v1237 = vpop.f32.mrf.mxu0
        %v1238 = vadd.f32 0.0, %v1237
        %v1239 = vpop.f32.mrf.mxu0
        %1240 = vdwg.mxu0
        %v1242 = vsel %vm699, %v1154, 0
        %v1245 = vsel %vm699, %v1155, 0
        %1247 = vmatprep.subr.mxu0 0.0
        %1248 = vmatpush1.msra.mxu0 0.0
        %1249 = vmatprep.subr.mxu0 0.0
        %1250 = vmatpush1.msra.mxu0 0.0
        %1251 = vmatprep.subr.mxu0 0.0
        %1252 = vmatpush1.msra.mxu0 0.0
        %1253 = vmatprep.subr.mxu0 0.0
        %1254 = vmatpush1.msra.mxu0 0.0
        %1255 = vmatprep.subr.mxu0 0.0
        %1256 = vmatpush1.msra.mxu0 0.0
        %1257 = vmatprep.subr.mxu0 0.0
        %1258 = vmatpush1.msra.mxu0 0.0
        %1259 = vmatprep.subr.mxu0 0.0
        %1260 = vmatpush1.msra.mxu0 0.0
        %1261 = vmatprep.subr.mxu0 0.0
        %1262 = vmatpush1.msra.mxu0 0.0
        %1263 = vmatprep.subr.mxu0 0.0
        %1264 = vmatpush1.msra.mxu0 0.0
        %1265 = vmatprep.subr.mxu0 0.0
        %1266 = vmatpush1.msra.mxu0 0.0
        %1267 = vmatprep.subr.mxu0 0.0
        %1268 = vmatpush1.msra.mxu0 0.0
        %1269 = vmatprep.subr.mxu0 0.0
        %1270 = vmatpush1.msra.mxu0 0.0
        %1271 = vmatprep.subr.mxu0 0.0
        %1272 = vmatpush1.msra.mxu0 0.0
        %1273 = vmatprep.subr.mxu0 0.0
        %1274 = vmatpush1.msra.mxu0 0.0
        %1275 = vmatprep.subr.mxu0 0.0
        %1276 = vmatpush1.msra.mxu0 %v674
        %1277 = vmatprep.subr.mxu0 0.0
        %1278 = vmatpush1.msra.mxu0 %v669
        %1279 = vmatprep.subr.mxu0 0.0
        %1280 = vmatpush2.msra.mxu0 0.0
        %1281 = vmatprep.subr.mxu0 0.0
        %1282 = vmatpush2.msra.mxu0 0.0
        %1283 = vmatprep.subr.mxu0 0.0
        %1284 = vmatpush2.msra.mxu0 0.0
        %1285 = vmatprep.subr.mxu0 0.0
        %1286 = vmatpush2.msra.mxu0 0.0
        %1287 = vmatprep.subr.mxu0 0.0
        %1288 = vmatpush2.msra.mxu0 0.0
        %1289 = vmatprep.subr.mxu0 0.0
        %1290 = vmatpush2.msra.mxu0 0.0
        %1291 = vmatprep.subr.mxu0 0.0
        %1292 = vmatpush2.msra.mxu0 0.0
        %1293 = vmatprep.subr.mxu0 0.0
        %1294 = vmatpush2.msra.mxu0 0.0
        %1295 = vmatprep.subr.mxu0 0.0
        %1296 = vmatpush2.msra.mxu0 0.0
        %1297 = vmatprep.subr.mxu0 0.0
        %1298 = vmatpush2.msra.mxu0 0.0
        %1299 = vmatprep.subr.mxu0 0.0
        %1300 = vmatpush2.msra.mxu0 0.0
        %1301 = vmatprep.subr.mxu0 0.0
        %1302 = vmatpush2.msra.mxu0 0.0
        %1303 = vmatprep.subr.mxu0 0.0
        %1304 = vmatpush2.msra.mxu0 0.0
        %1305 = vmatprep.subr.mxu0 0.0
        %1306 = vmatpush2.msra.mxu0 0.0
        %1307 = vmatprep.subr.mxu0 0.0
        %1308 = vmatpush2.msra.mxu0 0.0
        %1309 = vmatprep.subr.mxu0 0.0
        %1310 = vmatpush2.msra.mxu0 0.0
        %1311 = vmatprep.mubr.f32.mxu0 0.0
        %1312 = vmatmul.mubr.f32.gmra.mxu0 %v1242
        %v1313 = vpop.f32.mrf.mxu0
        %v1314 = vadd.f32 0.0, %v1313
        %v1315 = vpop.f32.mrf.mxu0
        %1316 = vmatprep.mubr.f32.mxu0 0.0
        %1317 = vmatmul.mubr.f32.gmra.mxu0 %v1245
        %v1318 = vpop.f32.mrf.mxu0
        %v1319 = vadd.f32 0.0, %v1318
        %v1320 = vpop.f32.mrf.mxu0
        %1321 = vdwg.mxu0
        %v1323 = vsel %vm699, %v1156, 0
        %v1326 = vsel %vm699, %v1157, 0
        %1328 = vmatprep.subr.mxu0 0.0
        %1329 = vmatpush1.msra.mxu0 0.0
        %1330 = vmatprep.subr.mxu0 0.0
        %1331 = vmatpush1.msra.mxu0 0.0
        %1332 = vmatprep.subr.mxu0 0.0
        %1333 = vmatpush1.msra.mxu0 0.0
        %1334 = vmatprep.subr.mxu0 0.0
        %1335 = vmatpush1.msra.mxu0 0.0
        %1336 = vmatprep.subr.mxu0 0.0
        %1337 = vmatpush1.msra.mxu0 0.0
        %1338 = vmatprep.subr.mxu0 0.0
        %1339 = vmatpush1.msra.mxu0 0.0
        %1340 = vmatprep.subr.mxu0 0.0
        %1341 = vmatpush1.msra.mxu0 0.0
        %1342 = vmatprep.subr.mxu0 0.0
        %1343 = vmatpush1.msra.mxu0 0.0
        %1344 = vmatprep.subr.mxu0 0.0
        %1345 = vmatpush1.msra.mxu0 0.0
        %1346 = vmatprep.subr.mxu0 0.0
        %1347 = vmatpush1.msra.mxu0 0.0
        %1348 = vmatprep.subr.mxu0 0.0
        %1349 = vmatpush1.msra.mxu0 0.0
        %1350 = vmatprep.subr.mxu0 0.0
        %1351 = vmatpush1.msra.mxu0 0.0
        %1352 = vmatprep.subr.mxu0 0.0
        %1353 = vmatpush1.msra.mxu0 0.0
        %1354 = vmatprep.subr.mxu0 0.0
        %1355 = vmatpush1.msra.mxu0 0.0
        %1356 = vmatprep.subr.mxu0 0.0
        %1357 = vmatpush1.msra.mxu0 %v684
        %1358 = vmatprep.subr.mxu0 0.0
        %1359 = vmatpush1.msra.mxu0 %v679
        %1360 = vmatprep.subr.mxu0 0.0
        %1361 = vmatpush2.msra.mxu0 0.0
        %1362 = vmatprep.subr.mxu0 0.0
        %1363 = vmatpush2.msra.mxu0 0.0
        %1364 = vmatprep.subr.mxu0 0.0
        %1365 = vmatpush2.msra.mxu0 0.0
        %1366 = vmatprep.subr.mxu0 0.0
        %1367 = vmatpush2.msra.mxu0 0.0
        %1368 = vmatprep.subr.mxu0 0.0
        %1369 = vmatpush2.msra.mxu0 0.0
        %1370 = vmatprep.subr.mxu0 0.0
        %1371 = vmatpush2.msra.mxu0 0.0
        %1372 = vmatprep.subr.mxu0 0.0
        %1373 = vmatpush2.msra.mxu0 0.0
        %1374 = vmatprep.subr.mxu0 0.0
        %1375 = vmatpush2.msra.mxu0 0.0
        %1376 = vmatprep.subr.mxu0 0.0
        %1377 = vmatpush2.msra.mxu0 0.0
        %1378 = vmatprep.subr.mxu0 0.0
        %1379 = vmatpush2.msra.mxu0 0.0
        %1380 = vmatprep.subr.mxu0 0.0
        %1381 = vmatpush2.msra.mxu0 0.0
        %1382 = vmatprep.subr.mxu0 0.0
        %1383 = vmatpush2.msra.mxu0 0.0
        %1384 = vmatprep.subr.mxu0 0.0
        %1385 = vmatpush2.msra.mxu0 0.0
        %1386 = vmatprep.subr.mxu0 0.0
        %1387 = vmatpush2.msra.mxu0 0.0
        %1388 = vmatprep.subr.mxu0 0.0
        %1389 = vmatpush2.msra.mxu0 0.0
        %1390 = vmatprep.subr.mxu0 0.0
        %1391 = vmatpush2.msra.mxu0 0.0
        %1392 = vmatprep.mubr.f32.mxu0 0.0
        %1393 = vmatmul.mubr.f32.gmra.mxu0 %v1323
        %v1394 = vpop.f32.mrf.mxu0
        %v1395 = vadd.f32 0.0, %v1394
        %v1396 = vpop.f32.mrf.mxu0
        %1397 = vmatprep.mubr.f32.mxu0 0.0
        %1398 = vmatmul.mubr.f32.gmra.mxu0 %v1326
        %v1399 = vpop.f32.mrf.mxu0
        %v1400 = vadd.f32 0.0, %v1399
        %v1401 = vpop.f32.mrf.mxu0
        %1402 = vdwg.mxu0
        %v1404 = vsel %vm699, %v1158, 0
        %v1407 = vsel %vm699, %v1159, 0
        %1409 = vmatprep.subr.mxu0 0.0
        %1410 = vmatpush1.msra.mxu0 0.0
        %1411 = vmatprep.subr.mxu0 0.0
        %1412 = vmatpush1.msra.mxu0 0.0
        %1413 = vmatprep.subr.mxu0 0.0
        %1414 = vmatpush1.msra.mxu0 0.0
        %1415 = vmatprep.subr.mxu0 0.0
        %1416 = vmatpush1.msra.mxu0 0.0
        %1417 = vmatprep.subr.mxu0 0.0
        %1418 = vmatpush1.msra.mxu0 0.0
        %1419 = vmatprep.subr.mxu0 0.0
        %1420 = vmatpush1.msra.mxu0 0.0
        %1421 = vmatprep.subr.mxu0 0.0
        %1422 = vmatpush1.msra.mxu0 0.0
        %1423 = vmatprep.subr.mxu0 0.0
        %1424 = vmatpush1.msra.mxu0 0.0
        %1425 = vmatprep.subr.mxu0 0.0
        %1426 = vmatpush1.msra.mxu0 0.0
        %1427 = vmatprep.subr.mxu0 0.0
        %1428 = vmatpush1.msra.mxu0 0.0
        %1429 = vmatprep.subr.mxu0 0.0
        %1430 = vmatpush1.msra.mxu0 0.0
        %1431 = vmatprep.subr.mxu0 0.0
        %1432 = vmatpush1.msra.mxu0 0.0
        %1433 = vmatprep.subr.mxu0 0.0
        %1434 = vmatpush1.msra.mxu0 0.0
        %1435 = vmatprep.subr.mxu0 0.0
        %1436 = vmatpush1.msra.mxu0 0.0
        %1437 = vmatprep.subr.mxu0 0.0
        %1438 = vmatpush1.msra.mxu0 %v694
        %1439 = vmatprep.subr.mxu0 0.0
        %1440 = vmatpush1.msra.mxu0 %v689
        %1441 = vmatprep.subr.mxu0 0.0
        %1442 = vmatpush2.msra.mxu0 0.0
        %1443 = vmatprep.subr.mxu0 0.0
        %1444 = vmatpush2.msra.mxu0 0.0
        %1445 = vmatprep.subr.mxu0 0.0
        %1446 = vmatpush2.msra.mxu0 0.0
        %1447 = vmatprep.subr.mxu0 0.0
        %1448 = vmatpush2.msra.mxu0 0.0
        %1449 = vmatprep.subr.mxu0 0.0
        %1450 = vmatpush2.msra.mxu0 0.0
        %1451 = vmatprep.subr.mxu0 0.0
        %1452 = vmatpush2.msra.mxu0 0.0
        %1453 = vmatprep.subr.mxu0 0.0
        %1454 = vmatpush2.msra.mxu0 0.0
        %1455 = vmatprep.subr.mxu0 0.0
        %1456 = vmatpush2.msra.mxu0 0.0
        %1457 = vmatprep.subr.mxu0 0.0
        %1458 = vmatpush2.msra.mxu0 0.0
        %1459 = vmatprep.subr.mxu0 0.0
        %1460 = vmatpush2.msra.mxu0 0.0
        %1461 = vmatprep.subr.mxu0 0.0
        %1462 = vmatpush2.msra.mxu0 0.0
        %1463 = vmatprep.subr.mxu0 0.0
        %1464 = vmatpush2.msra.mxu0 0.0
        %1465 = vmatprep.subr.mxu0 0.0
        %1466 = vmatpush2.msra.mxu0 0.0
        %1467 = vmatprep.subr.mxu0 0.0
        %1468 = vmatpush2.msra.mxu0 0.0
        %1469 = vmatprep.subr.mxu0 0.0
        %1470 = vmatpush2.msra.mxu0 0.0
        %1471 = vmatprep.subr.mxu0 0.0
        %1472 = vmatpush2.msra.mxu0 0.0
        %1473 = vmatprep.mubr.f32.mxu0 0.0
        %1474 = vmatmul.mubr.f32.gmra.mxu0 %v1404
        %v1475 = vpop.f32.mrf.mxu0
        %v1476 = vadd.f32 0.0, %v1475
        %v1477 = vpop.f32.mrf.mxu0
        %1478 = vmatprep.mubr.f32.mxu0 0.0
        %1479 = vmatmul.mubr.f32.gmra.mxu0 %v1407
        %v1480 = vpop.f32.mrf.mxu0
        %v1481 = vadd.f32 0.0, %v1480
        %v1482 = vpop.f32.mrf.mxu0
        %1483 = vdwg.mxu0
        %s1484 = scalar_lea.vmem %s4, 16
        %v1485 = vld [vmem:[%s1484] sm:$0xff]
        %v1486 = vld [vmem:[%s1484 + $0x8] sm:$0xff]
        %1487 = vrot.lane.b32.xlu0 %v471, 112
        %v1488 = vpop.permute.xlu0 %1487
        %1489 = vrot.lane.b32.xlu0 %v472, 112
        %v1490 = vpop.permute.xlu0 %1489
        %1491 = vrot.lane.b32.xlu0 %v550, 112
        %v1492 = vpop.permute.xlu0 %1491
        %1493 = vrot.lane.b32.xlu0 %v555, 112
        %v1494 = vpop.permute.xlu0 %1493
        %v1495 = vsel %vm699, %v1488, 0
        %v1497 = vsel %vm699, %v1490, 0
        %v1499 = vsel %vm699, %v1492, 0
        %v1501 = vsel %vm699, %v1494, 0
        %1503 = vmatprep.subr.mxu0 0.0
        %1504 = vmatpush1.xpose.msra.mxu0 0.0
        %1505 = vmatprep.subr.mxu0 0.0
        %1506 = vmatpush1.xpose.msra.mxu0 0.0
        %1507 = vmatprep.subr.mxu0 0.0
        %1508 = vmatpush1.xpose.msra.mxu0 0.0
        %1509 = vmatprep.subr.mxu0 0.0
        %1510 = vmatpush1.xpose.msra.mxu0 0.0
        %1511 = vmatprep.subr.mxu0 0.0
        %1512 = vmatpush1.xpose.msra.mxu0 0.0
        %1513 = vmatprep.subr.mxu0 0.0
        %1514 = vmatpush1.xpose.msra.mxu0 0.0
        %1515 = vmatprep.subr.mxu0 0.0
        %1516 = vmatpush1.xpose.msra.mxu0 0.0
        %1517 = vmatprep.subr.mxu0 0.0
        %1518 = vmatpush1.xpose.msra.mxu0 0.0
        %1519 = vmatprep.subr.mxu0 0.0
        %1520 = vmatpush1.xpose.msra.mxu0 0.0
        %1521 = vmatprep.subr.mxu0 0.0
        %1522 = vmatpush1.xpose.msra.mxu0 0.0
        %1523 = vmatprep.subr.mxu0 0.0
        %1524 = vmatpush1.xpose.msra.mxu0 0.0
        %1525 = vmatprep.subr.mxu0 0.0
        %1526 = vmatpush1.xpose.msra.mxu0 0.0
        %1527 = vmatprep.subr.mxu0 0.0
        %1528 = vmatpush1.xpose.msra.mxu0 0.0
        %1529 = vmatprep.subr.mxu0 0.0
        %1530 = vmatpush1.xpose.msra.mxu0 0.0
        %1531 = vmatprep.subr.mxu0 0.0
        %1532 = vmatpush1.xpose.msra.mxu0 %v1501
        %1533 = vmatprep.subr.mxu0 0.0
        %1534 = vmatpush1.xpose.msra.mxu0 %v1499
        %1535 = vmatprep.subr.mxu0 0.0
        %1536 = vmatpush2.xpose.msra.mxu0 0.0
        %1537 = vmatprep.subr.mxu0 0.0
        %1538 = vmatpush2.xpose.msra.mxu0 0.0
        %1539 = vmatprep.subr.mxu0 0.0
        %1540 = vmatpush2.xpose.msra.mxu0 0.0
        %1541 = vmatprep.subr.mxu0 0.0
        %1542 = vmatpush2.xpose.msra.mxu0 0.0
        %1543 = vmatprep.subr.mxu0 0.0
        %1544 = vmatpush2.xpose.msra.mxu0 0.0
        %1545 = vmatprep.subr.mxu0 0.0
        %1546 = vmatpush2.xpose.msra.mxu0 0.0
        %1547 = vmatprep.subr.mxu0 0.0
        %1548 = vmatpush2.xpose.msra.mxu0 0.0
        %1549 = vmatprep.subr.mxu0 0.0
        %1550 = vmatpush2.xpose.msra.mxu0 0.0
        %1551 = vmatprep.subr.mxu0 0.0
        %1552 = vmatpush2.xpose.msra.mxu0 0.0
        %1553 = vmatprep.subr.mxu0 0.0
        %1554 = vmatpush2.xpose.msra.mxu0 0.0
        %1555 = vmatprep.subr.mxu0 0.0
        %1556 = vmatpush2.xpose.msra.mxu0 0.0
        %1557 = vmatprep.subr.mxu0 0.0
        %1558 = vmatpush2.xpose.msra.mxu0 0.0
        %1559 = vmatprep.subr.mxu0 0.0
        %1560 = vmatpush2.xpose.msra.mxu0 0.0
        %1561 = vmatprep.subr.mxu0 0.0
        %1562 = vmatpush2.xpose.msra.mxu0 0.0
        %1563 = vmatprep.subr.mxu0 0.0
        %1564 = vmatpush2.xpose.msra.mxu0 0.0
        %1565 = vmatprep.subr.mxu0 0.0
        %1566 = vmatpush2.xpose.msra.mxu0 0.0
        %1567 = vmatprep.mubr.f32.mxu0 0.0
        %1568 = vmatmul.mubr.f32.gmra.mxu0 %v1495
        %v1569 = vpop.f32.mrf.mxu0
        %v1570 = vadd.f32 %v1485, %v1569
        %v1571 = vpop.f32.mrf.mxu0
        %1572 = vmatprep.mubr.f32.mxu0 0.0
        %1573 = vmatmul.mubr.f32.gmra.mxu0 %v1497
        %v1574 = vpop.f32.mrf.mxu0
        %v1575 = vadd.f32 %v1486, %v1574
        %v1576 = vpop.f32.mrf.mxu0
        %1577 = vdwg.mxu0
        %1578 = vrot.lane.b32.xlu0 %v473, 112
        %v1579 = vpop.permute.xlu0 %1578
        %1580 = vrot.lane.b32.xlu0 %v474, 112
        %v1581 = vpop.permute.xlu0 %1580
        %1582 = vrot.lane.b32.xlu0 %v560, 112
        %v1583 = vpop.permute.xlu0 %1582
        %1584 = vrot.lane.b32.xlu0 %v565, 112
        %v1585 = vpop.permute.xlu0 %1584
        %v1586 = vsel %vm699, %v1579, 0
        %v1588 = vsel %vm699, %v1581, 0
        %v1590 = vsel %vm699, %v1583, 0
        %v1592 = vsel %vm699, %v1585, 0
        %1594 = vmatprep.subr.mxu0 0.0
        %1595 = vmatpush1.xpose.msra.mxu0 0.0
        %1596 = vmatprep.subr.mxu0 0.0
        %1597 = vmatpush1.xpose.msra.mxu0 0.0
        %1598 = vmatprep.subr.mxu0 0.0
        %1599 = vmatpush1.xpose.msra.mxu0 0.0
        %1600 = vmatprep.subr.mxu0 0.0
        %1601 = vmatpush1.xpose.msra.mxu0 0.0
        %1602 = vmatprep.subr.mxu0 0.0
        %1603 = vmatpush1.xpose.msra.mxu0 0.0
        %1604 = vmatprep.subr.mxu0 0.0
        %1605 = vmatpush1.xpose.msra.mxu0 0.0
        %1606 = vmatprep.subr.mxu0 0.0
        %1607 = vmatpush1.xpose.msra.mxu0 0.0
        %1608 = vmatprep.subr.mxu0 0.0
        %1609 = vmatpush1.xpose.msra.mxu0 0.0
        %1610 = vmatprep.subr.mxu0 0.0
        %1611 = vmatpush1.xpose.msra.mxu0 0.0
        %1612 = vmatprep.subr.mxu0 0.0
        %1613 = vmatpush1.xpose.msra.mxu0 0.0
        %1614 = vmatprep.subr.mxu0 0.0
        %1615 = vmatpush1.xpose.msra.mxu0 0.0
        %1616 = vmatprep.subr.mxu0 0.0
        %1617 = vmatpush1.xpose.msra.mxu0 0.0
        %1618 = vmatprep.subr.mxu0 0.0
        %1619 = vmatpush1.xpose.msra.mxu0 0.0
        %1620 = vmatprep.subr.mxu0 0.0
        %1621 = vmatpush1.xpose.msra.mxu0 0.0
        %1622 = vmatprep.subr.mxu0 0.0
        %1623 = vmatpush1.xpose.msra.mxu0 %v1592
        %1624 = vmatprep.subr.mxu0 0.0
        %1625 = vmatpush1.xpose.msra.mxu0 %v1590
        %1626 = vmatprep.subr.mxu0 0.0
        %1627 = vmatpush2.xpose.msra.mxu0 0.0
        %1628 = vmatprep.subr.mxu0 0.0
        %1629 = vmatpush2.xpose.msra.mxu0 0.0
        %1630 = vmatprep.subr.mxu0 0.0
        %1631 = vmatpush2.xpose.msra.mxu0 0.0
        %1632 = vmatprep.subr.mxu0 0.0
        %1633 = vmatpush2.xpose.msra.mxu0 0.0
        %1634 = vmatprep.subr.mxu0 0.0
        %1635 = vmatpush2.xpose.msra.mxu0 0.0
        %1636 = vmatprep.subr.mxu0 0.0
        %1637 = vmatpush2.xpose.msra.mxu0 0.0
        %1638 = vmatprep.subr.mxu0 0.0
        %1639 = vmatpush2.xpose.msra.mxu0 0.0
        %1640 = vmatprep.subr.mxu0 0.0
        %1641 = vmatpush2.xpose.msra.mxu0 0.0
        %1642 = vmatprep.subr.mxu0 0.0
        %1643 = vmatpush2.xpose.msra.mxu0 0.0
        %1644 = vmatprep.subr.mxu0 0.0
        %1645 = vmatpush2.xpose.msra.mxu0 0.0
        %1646 = vmatprep.subr.mxu0 0.0
        %1647 = vmatpush2.xpose.msra.mxu0 0.0
        %1648 = vmatprep.subr.mxu0 0.0
        %1649 = vmatpush2.xpose.msra.mxu0 0.0
        %1650 = vmatprep.subr.mxu0 0.0
        %1651 = vmatpush2.xpose.msra.mxu0 0.0
        %1652 = vmatprep.subr.mxu0 0.0
        %1653 = vmatpush2.xpose.msra.mxu0 0.0
        %1654 = vmatprep.subr.mxu0 0.0
        %1655 = vmatpush2.xpose.msra.mxu0 0.0
        %1656 = vmatprep.subr.mxu0 0.0
        %1657 = vmatpush2.xpose.msra.mxu0 0.0
        %1658 = vmatprep.mubr.f32.mxu0 0.0
        %1659 = vmatmul.mubr.f32.gmra.mxu0 %v1586
        %v1660 = vpop.f32.mrf.mxu0
        %v1661 = vadd.f32 %v1485, %v1660
        %v1662 = vpop.f32.mrf.mxu0
        %1663 = vmatprep.mubr.f32.mxu0 0.0
        %1664 = vmatmul.mubr.f32.gmra.mxu0 %v1588
        %v1665 = vpop.f32.mrf.mxu0
        %v1666 = vadd.f32 %v1486, %v1665
        %v1667 = vpop.f32.mrf.mxu0
        %1668 = vdwg.mxu0
        %1669 = vrot.lane.b32.xlu0 %v475, 112
        %v1670 = vpop.permute.xlu0 %1669
        %1671 = vrot.lane.b32.xlu0 %v476, 112
        %v1672 = vpop.permute.xlu0 %1671
        %1673 = vrot.lane.b32.xlu0 %v570, 112
        %v1674 = vpop.permute.xlu0 %1673
        %1675 = vrot.lane.b32.xlu0 %v575, 112
        %v1676 = vpop.permute.xlu0 %1675
        %v1677 = vsel %vm699, %v1670, 0
        %v1679 = vsel %vm699, %v1672, 0
        %v1681 = vsel %vm699, %v1674, 0
        %v1683 = vsel %vm699, %v1676, 0
        %1685 = vmatprep.subr.mxu0 0.0
        %1686 = vmatpush1.xpose.msra.mxu0 0.0
        %1687 = vmatprep.subr.mxu0 0.0
        %1688 = vmatpush1.xpose.msra.mxu0 0.0
        %1689 = vmatprep.subr.mxu0 0.0
        %1690 = vmatpush1.xpose.msra.mxu0 0.0
        %1691 = vmatprep.subr.mxu0 0.0
        %1692 = vmatpush1.xpose.msra.mxu0 0.0
        %1693 = vmatprep.subr.mxu0 0.0
        %1694 = vmatpush1.xpose.msra.mxu0 0.0
        %1695 = vmatprep.subr.mxu0 0.0
        %1696 = vmatpush1.xpose.msra.mxu0 0.0
        %1697 = vmatprep.subr.mxu0 0.0
        %1698 = vmatpush1.xpose.msra.mxu0 0.0
        %1699 = vmatprep.subr.mxu0 0.0
        %1700 = vmatpush1.xpose.msra.mxu0 0.0
        %1701 = vmatprep.subr.mxu0 0.0
        %1702 = vmatpush1.xpose.msra.mxu0 0.0
        %1703 = vmatprep.subr.mxu0 0.0
        %1704 = vmatpush1.xpose.msra.mxu0 0.0
        %1705 = vmatprep.subr.mxu0 0.0
        %1706 = vmatpush1.xpose.msra.mxu0 0.0
        %1707 = vmatprep.subr.mxu0 0.0
        %1708 = vmatpush1.xpose.msra.mxu0 0.0
        %1709 = vmatprep.subr.mxu0 0.0
        %1710 = vmatpush1.xpose.msra.mxu0 0.0
        %1711 = vmatprep.subr.mxu0 0.0
        %1712 = vmatpush1.xpose.msra.mxu0 0.0
        %1713 = vmatprep.subr.mxu0 0.0
        %1714 = vmatpush1.xpose.msra.mxu0 %v1683
        %1715 = vmatprep.subr.mxu0 0.0
        %1716 = vmatpush1.xpose.msra.mxu0 %v1681
        %1717 = vmatprep.subr.mxu0 0.0
        %1718 = vmatpush2.xpose.msra.mxu0 0.0
        %1719 = vmatprep.subr.mxu0 0.0
        %1720 = vmatpush2.xpose.msra.mxu0 0.0
        %1721 = vmatprep.subr.mxu0 0.0
        %1722 = vmatpush2.xpose.msra.mxu0 0.0
        %1723 = vmatprep.subr.mxu0 0.0
        %1724 = vmatpush2.xpose.msra.mxu0 0.0
        %1725 = vmatprep.subr.mxu0 0.0
        %1726 = vmatpush2.xpose.msra.mxu0 0.0
        %1727 = vmatprep.subr.mxu0 0.0
        %1728 = vmatpush2.xpose.msra.mxu0 0.0
        %1729 = vmatprep.subr.mxu0 0.0
        %1730 = vmatpush2.xpose.msra.mxu0 0.0
        %1731 = vmatprep.subr.mxu0 0.0
        %1732 = vmatpush2.xpose.msra.mxu0 0.0
        %1733 = vmatprep.subr.mxu0 0.0
        %1734 = vmatpush2.xpose.msra.mxu0 0.0
        %1735 = vmatprep.subr.mxu0 0.0
        %1736 = vmatpush2.xpose.msra.mxu0 0.0
        %1737 = vmatprep.subr.mxu0 0.0
        %1738 = vmatpush2.xpose.msra.mxu0 0.0
        %1739 = vmatprep.subr.mxu0 0.0
        %1740 = vmatpush2.xpose.msra.mxu0 0.0
        %1741 = vmatprep.subr.mxu0 0.0
        %1742 = vmatpush2.xpose.msra.mxu0 0.0
        %1743 = vmatprep.subr.mxu0 0.0
        %1744 = vmatpush2.xpose.msra.mxu0 0.0
        %1745 = vmatprep.subr.mxu0 0.0
        %1746 = vmatpush2.xpose.msra.mxu0 0.0
        %1747 = vmatprep.subr.mxu0 0.0
        %1748 = vmatpush2.xpose.msra.mxu0 0.0
        %1749 = vmatprep.mubr.f32.mxu0 0.0
        %1750 = vmatmul.mubr.f32.gmra.mxu0 %v1677
        %v1751 = vpop.f32.mrf.mxu0
        %v1752 = vadd.f32 %v1485, %v1751
        %v1753 = vpop.f32.mrf.mxu0
        %1754 = vmatprep.mubr.f32.mxu0 0.0
        %1755 = vmatmul.mubr.f32.gmra.mxu0 %v1679
        %v1756 = vpop.f32.mrf.mxu0
        %v1757 = vadd.f32 %v1486, %v1756
        %v1758 = vpop.f32.mrf.mxu0
        %1759 = vdwg.mxu0
        %1760 = vrot.lane.b32.xlu0 %v477, 112
        %v1761 = vpop.permute.xlu0 %1760
        %1762 = vrot.lane.b32.xlu0 %v478, 112
        %v1763 = vpop.permute.xlu0 %1762
        %1764 = vrot.lane.b32.xlu0 %v580, 112
        %v1765 = vpop.permute.xlu0 %1764
        %1766 = vrot.lane.b32.xlu0 %v585, 112
        %v1767 = vpop.permute.xlu0 %1766
        %v1768 = vsel %vm699, %v1761, 0
        %v1770 = vsel %vm699, %v1763, 0
        %v1772 = vsel %vm699, %v1765, 0
        %v1774 = vsel %vm699, %v1767, 0
        %1776 = vmatprep.subr.mxu0 0.0
        %1777 = vmatpush1.xpose.msra.mxu0 0.0
        %1778 = vmatprep.subr.mxu0 0.0
        %1779 = vmatpush1.xpose.msra.mxu0 0.0
        %1780 = vmatprep.subr.mxu0 0.0
        %1781 = vmatpush1.xpose.msra.mxu0 0.0
        %1782 = vmatprep.subr.mxu0 0.0
        %1783 = vmatpush1.xpose.msra.mxu0 0.0
        %1784 = vmatprep.subr.mxu0 0.0
        %1785 = vmatpush1.xpose.msra.mxu0 0.0
        %1786 = vmatprep.subr.mxu0 0.0
        %1787 = vmatpush1.xpose.msra.mxu0 0.0
        %1788 = vmatprep.subr.mxu0 0.0
        %1789 = vmatpush1.xpose.msra.mxu0 0.0
        %1790 = vmatprep.subr.mxu0 0.0
        %1791 = vmatpush1.xpose.msra.mxu0 0.0
        %1792 = vmatprep.subr.mxu0 0.0
        %1793 = vmatpush1.xpose.msra.mxu0 0.0
        %1794 = vmatprep.subr.mxu0 0.0
        %1795 = vmatpush1.xpose.msra.mxu0 0.0
        %1796 = vmatprep.subr.mxu0 0.0
        %1797 = vmatpush1.xpose.msra.mxu0 0.0
        %1798 = vmatprep.subr.mxu0 0.0
        %1799 = vmatpush1.xpose.msra.mxu0 0.0
        %1800 = vmatprep.subr.mxu0 0.0
        %1801 = vmatpush1.xpose.msra.mxu0 0.0
        %1802 = vmatprep.subr.mxu0 0.0
        %1803 = vmatpush1.xpose.msra.mxu0 0.0
        %1804 = vmatprep.subr.mxu0 0.0
        %1805 = vmatpush1.xpose.msra.mxu0 %v1774
        %1806 = vmatprep.subr.mxu0 0.0
        %1807 = vmatpush1.xpose.msra.mxu0 %v1772
        %1808 = vmatprep.subr.mxu0 0.0
        %1809 = vmatpush2.xpose.msra.mxu0 0.0
        %1810 = vmatprep.subr.mxu0 0.0
        %1811 = vmatpush2.xpose.msra.mxu0 0.0
        %1812 = vmatprep.subr.mxu0 0.0
        %1813 = vmatpush2.xpose.msra.mxu0 0.0
        %1814 = vmatprep.subr.mxu0 0.0
        %1815 = vmatpush2.xpose.msra.mxu0 0.0
        %1816 = vmatprep.subr.mxu0 0.0
        %1817 = vmatpush2.xpose.msra.mxu0 0.0
        %1818 = vmatprep.subr.mxu0 0.0
        %1819 = vmatpush2.xpose.msra.mxu0 0.0
        %1820 = vmatprep.subr.mxu0 0.0
        %1821 = vmatpush2.xpose.msra.mxu0 0.0
        %1822 = vmatprep.subr.mxu0 0.0
        %1823 = vmatpush2.xpose.msra.mxu0 0.0
        %1824 = vmatprep.subr.mxu0 0.0
        %1825 = vmatpush2.xpose.msra.mxu0 0.0
        %1826 = vmatprep.subr.mxu0 0.0
        %1827 = vmatpush2.xpose.msra.mxu0 0.0
        %1828 = vmatprep.subr.mxu0 0.0
        %1829 = vmatpush2.xpose.msra.mxu0 0.0
        %1830 = vmatprep.subr.mxu0 0.0
        %1831 = vmatpush2.xpose.msra.mxu0 0.0
        %1832 = vmatprep.subr.mxu0 0.0
        %1833 = vmatpush2.xpose.msra.mxu0 0.0
        %1834 = vmatprep.subr.mxu0 0.0
        %1835 = vmatpush2.xpose.msra.mxu0 0.0
        %1836 = vmatprep.subr.mxu0 0.0
        %1837 = vmatpush2.xpose.msra.mxu0 0.0
        %1838 = vmatprep.subr.mxu0 0.0
        %1839 = vmatpush2.xpose.msra.mxu0 0.0
        %1840 = vmatprep.mubr.f32.mxu0 0.0
        %1841 = vmatmul.mubr.f32.gmra.mxu0 %v1768
        %v1842 = vpop.f32.mrf.mxu0
        %v1843 = vadd.f32 %v1485, %v1842
        %v1844 = vpop.f32.mrf.mxu0
        %1845 = vmatprep.mubr.f32.mxu0 0.0
        %1846 = vmatmul.mubr.f32.gmra.mxu0 %v1770
        %v1847 = vpop.f32.mrf.mxu0
        %v1848 = vadd.f32 %v1486, %v1847
        %v1849 = vpop.f32.mrf.mxu0
        %1850 = vdwg.mxu0
        %v1851 = vsel %vm699, %v1570, -inf
        %1852 = vmax.xlane.f32.xlu0 %v1851
        %v1853 = vpop.xlane.xlu0 %1852
        %v1854 = vsel %vm699, %v1575, -inf
        %1855 = vmax.xlane.f32.xlu0 %v1854
        %v1856 = vpop.xlane.xlu0 %1855
        %v1857 = vsel %vm699, %v1661, -inf
        %1858 = vmax.xlane.f32.xlu0 %v1857
        %v1859 = vpop.xlane.xlu0 %1858
        %v1860 = vsel %vm699, %v1666, -inf
        %1861 = vmax.xlane.f32.xlu0 %v1860
        %v1862 = vpop.xlane.xlu0 %1861
        %v1863 = vsel %vm699, %v1752, -inf
        %1864 = vmax.xlane.f32.xlu0 %v1863
        %v1865 = vpop.xlane.xlu0 %1864
        %v1866 = vsel %vm699, %v1757, -inf
        %1867 = vmax.xlane.f32.xlu0 %v1866
        %v1868 = vpop.xlane.xlu0 %1867
        %v1869 = vsel %vm699, %v1843, -inf
        %1870 = vmax.xlane.f32.xlu0 %v1869
        %v1871 = vpop.xlane.xlu0 %1870
        %v1872 = vsel %vm699, %v1848, -inf
        %1873 = vmax.xlane.f32.xlu0 %v1872
        %v1874 = vpop.xlane.xlu0 %1873
        %v1875 = vsub.f32 %v1570, %v1853
        %v1876 = vsub.f32 %v1575, %v1856
        %v1877 = vsub.f32 %v1661, %v1859
        %v1878 = vsub.f32 %v1666, %v1862
        %v1879 = vsub.f32 %v1752, %v1865
        %v1880 = vsub.f32 %v1757, %v1868
        %v1881 = vsub.f32 %v1843, %v1871
        %v1882 = vsub.f32 %v1848, %v1874
        %v1883 = vmul.f32 %v1875, 1.442695
        %v1884 = vpow.pop %v1883
        %v1885 = vmul.f32 %v1876, 1.442695
        %v1886 = vpow.pop %v1885
        %v1887 = vmul.f32 %v1877, 1.442695
        %v1888 = vpow.pop %v1887
        %v1889 = vmul.f32 %v1878, 1.442695
        %v1890 = vpow.pop %v1889
        %v1891 = vmul.f32 %v1879, 1.442695
        %v1892 = vpow.pop %v1891
        %v1893 = vmul.f32 %v1880, 1.442695
        %v1894 = vpow.pop %v1893
        %v1895 = vmul.f32 %v1881, 1.442695
        %v1896 = vpow.pop %v1895
        %v1897 = vmul.f32 %v1882, 1.442695
        %v1898 = vpow.pop %v1897
        %v1899 = vsel %vm699, %v1884, 0.0
        %1900 = vadd.xlane.f32.xlu0 %v1899
        %v1901 = vpop.xlane.xlu0 %1900
        %v1902 = vsel %vm699, %v1886, 0.0
        %1903 = vadd.xlane.f32.xlu0 %v1902
        %v1904 = vpop.xlane.xlu0 %1903
        %v1905 = vsel %vm699, %v1888, 0.0
        %1906 = vadd.xlane.f32.xlu0 %v1905
        %v1907 = vpop.xlane.xlu0 %1906
        %v1908 = vsel %vm699, %v1890, 0.0
        %1909 = vadd.xlane.f32.xlu0 %v1908
        %v1910 = vpop.xlane.xlu0 %1909
        %v1911 = vsel %vm699, %v1892, 0.0
        %1912 = vadd.xlane.f32.xlu0 %v1911
        %v1913 = vpop.xlane.xlu0 %1912
        %v1914 = vsel %vm699, %v1894, 0.0
        %1915 = vadd.xlane.f32.xlu0 %v1914
        %v1916 = vpop.xlane.xlu0 %1915
        %v1917 = vsel %vm699, %v1896, 0.0
        %1918 = vadd.xlane.f32.xlu0 %v1917
        %v1919 = vpop.xlane.xlu0 %1918
        %v1920 = vsel %vm699, %v1898, 0.0
        %1921 = vadd.xlane.f32.xlu0 %v1920
        %v1922 = vpop.xlane.xlu0 %1921
        %v1923 = vrcp.pop %v1901
        %v1924 = vrcp.pop %v1904
        %v1925 = vrcp.pop %v1907
        %v1926 = vrcp.pop %v1910
        %v1927 = vrcp.pop %v1913
        %v1928 = vrcp.pop %v1916
        %v1929 = vrcp.pop %v1919
        %v1930 = vrcp.pop %v1922
        %v1931 = vmul.f32 %v1901, %v1923
        %v1932 = vmul.f32 %v1904, %v1924
        %v1933 = vmul.f32 %v1907, %v1925
        %v1934 = vmul.f32 %v1910, %v1926
        %v1935 = vmul.f32 %v1913, %v1927
        %v1936 = vmul.f32 %v1916, %v1928
        %v1937 = vmul.f32 %v1919, %v1929
        %v1938 = vmul.f32 %v1922, %v1930
        %v1939 = vsub.f32 2.0, %v1931
        %v1940 = vsub.f32 2.0, %v1932
        %v1941 = vsub.f32 2.0, %v1933
        %v1942 = vsub.f32 2.0, %v1934
        %v1943 = vsub.f32 2.0, %v1935
        %v1944 = vsub.f32 2.0, %v1936
        %v1945 = vsub.f32 2.0, %v1937
        %v1946 = vsub.f32 2.0, %v1938
        %v1947 = vmul.f32 %v1923, %v1939
        %v1948 = vmul.f32 %v1924, %v1940
        %v1949 = vmul.f32 %v1925, %v1941
        %v1950 = vmul.f32 %v1926, %v1942
        %v1951 = vmul.f32 %v1927, %v1943
        %v1952 = vmul.f32 %v1928, %v1944
        %v1953 = vmul.f32 %v1929, %v1945
        %v1954 = vmul.f32 %v1930, %v1946
        %v1955 = vmul.f32 %v1884, %v1947
        %v1956 = vmul.f32 %v1886, %v1948
        %v1957 = vmul.f32 %v1888, %v1949
        %v1958 = vmul.f32 %v1890, %v1950
        %v1959 = vmul.f32 %v1892, %v1951
        %v1960 = vmul.f32 %v1894, %v1952
        %v1961 = vmul.f32 %v1896, %v1953
        %v1962 = vmul.f32 %v1898, %v1954
        %1965 = vrot.lane.b32.xlu0 %v659, 112
        %v1966 = vpop.permute.xlu0 %1965
        %1967 = vrot.lane.b32.xlu0 %v664, 112
        %v1968 = vpop.permute.xlu0 %1967
        %v1972 = vsel %vm699, %v1955, 0
        %v1975 = vsel %vm699, %v1956, 0
        %1977 = vmatprep.subr.mxu0 0.0
        %1978 = vmatpush1.msra.mxu0 0.0
        %1979 = vmatprep.subr.mxu0 0.0
        %1980 = vmatpush1.msra.mxu0 0.0
        %1981 = vmatprep.subr.mxu0 0.0
        %1982 = vmatpush1.msra.mxu0 0.0
        %1983 = vmatprep.subr.mxu0 0.0
        %1984 = vmatpush1.msra.mxu0 0.0
        %1985 = vmatprep.subr.mxu0 0.0
        %1986 = vmatpush1.msra.mxu0 0.0
        %1987 = vmatprep.subr.mxu0 0.0
        %1988 = vmatpush1.msra.mxu0 0.0
        %1989 = vmatprep.subr.mxu0 0.0
        %1990 = vmatpush1.msra.mxu0 0.0
        %1991 = vmatprep.subr.mxu0 0.0
        %1992 = vmatpush1.msra.mxu0 0.0
        %1993 = vmatprep.subr.mxu0 0.0
        %1994 = vmatpush1.msra.mxu0 0.0
        %1995 = vmatprep.subr.mxu0 0.0
        %1996 = vmatpush1.msra.mxu0 0.0
        %1997 = vmatprep.subr.mxu0 0.0
        %1998 = vmatpush1.msra.mxu0 0.0
        %1999 = vmatprep.subr.mxu0 0.0
        %2000 = vmatpush1.msra.mxu0 0.0
        %2001 = vmatprep.subr.mxu0 0.0
        %2002 = vmatpush1.msra.mxu0 0.0
        %2003 = vmatprep.subr.mxu0 0.0
        %2004 = vmatpush1.msra.mxu0 0.0
        %2005 = vmatprep.subr.mxu0 0.0
        %2006 = vmatpush1.msra.mxu0 %v1968
        %2007 = vmatprep.subr.mxu0 0.0
        %2008 = vmatpush1.msra.mxu0 %v1966
        %2009 = vmatprep.subr.mxu0 0.0
        %2010 = vmatpush2.msra.mxu0 0.0
        %2011 = vmatprep.subr.mxu0 0.0
        %2012 = vmatpush2.msra.mxu0 0.0
        %2013 = vmatprep.subr.mxu0 0.0
        %2014 = vmatpush2.msra.mxu0 0.0
        %2015 = vmatprep.subr.mxu0 0.0
        %2016 = vmatpush2.msra.mxu0 0.0
        %2017 = vmatprep.subr.mxu0 0.0
        %2018 = vmatpush2.msra.mxu0 0.0
        %2019 = vmatprep.subr.mxu0 0.0
        %2020 = vmatpush2.msra.mxu0 0.0
        %2021 = vmatprep.subr.mxu0 0.0
        %2022 = vmatpush2.msra.mxu0 0.0
        %2023 = vmatprep.subr.mxu0 0.0
        %2024 = vmatpush2.msra.mxu0 0.0
        %2025 = vmatprep.subr.mxu0 0.0
        %2026 = vmatpush2.msra.mxu0 0.0
        %2027 = vmatprep.subr.mxu0 0.0
        %2028 = vmatpush2.msra.mxu0 0.0
        %2029 = vmatprep.subr.mxu0 0.0
        %2030 = vmatpush2.msra.mxu0 0.0
        %2031 = vmatprep.subr.mxu0 0.0
        %2032 = vmatpush2.msra.mxu0 0.0
        %2033 = vmatprep.subr.mxu0 0.0
        %2034 = vmatpush2.msra.mxu0 0.0
        %2035 = vmatprep.subr.mxu0 0.0
        %2036 = vmatpush2.msra.mxu0 0.0
        %2037 = vmatprep.subr.mxu0 0.0
        %2038 = vmatpush2.msra.mxu0 0.0
        %2039 = vmatprep.subr.mxu0 0.0
        %2040 = vmatpush2.msra.mxu0 0.0
        %2041 = vmatprep.mubr.f32.mxu0 0.0
        %2042 = vmatmul.mubr.f32.gmra.mxu0 %v1972
        %v2043 = vpop.f32.mrf.mxu0
        %v2044 = vadd.f32 0.0, %v2043
        %v2045 = vpop.f32.mrf.mxu0
        %2046 = vmatprep.mubr.f32.mxu0 0.0
        %2047 = vmatmul.mubr.f32.gmra.mxu0 %v1975
        %v2048 = vpop.f32.mrf.mxu0
        %v2049 = vadd.f32 0.0, %v2048
        %v2050 = vpop.f32.mrf.mxu0
        %2051 = vdwg.mxu0
        %2054 = vrot.lane.b32.xlu0 %v669, 112
        %v2055 = vpop.permute.xlu0 %2054
        %2056 = vrot.lane.b32.xlu0 %v674, 112
        %v2057 = vpop.permute.xlu0 %2056
        %v2061 = vsel %vm699, %v1957, 0
        %v2064 = vsel %vm699, %v1958, 0
        %2066 = vmatprep.subr.mxu0 0.0
        %2067 = vmatpush1.msra.mxu0 0.0
        %2068 = vmatprep.subr.mxu0 0.0
        %2069 = vmatpush1.msra.mxu0 0.0
        %2070 = vmatprep.subr.mxu0 0.0
        %2071 = vmatpush1.msra.mxu0 0.0
        %2072 = vmatprep.subr.mxu0 0.0
        %2073 = vmatpush1.msra.mxu0 0.0
        %2074 = vmatprep.subr.mxu0 0.0
        %2075 = vmatpush1.msra.mxu0 0.0
        %2076 = vmatprep.subr.mxu0 0.0
        %2077 = vmatpush1.msra.mxu0 0.0
        %2078 = vmatprep.subr.mxu0 0.0
        %2079 = vmatpush1.msra.mxu0 0.0
        %2080 = vmatprep.subr.mxu0 0.0
        %2081 = vmatpush1.msra.mxu0 0.0
        %2082 = vmatprep.subr.mxu0 0.0
        %2083 = vmatpush1.msra.mxu0 0.0
        %2084 = vmatprep.subr.mxu0 0.0
        %2085 = vmatpush1.msra.mxu0 0.0
        %2086 = vmatprep.subr.mxu0 0.0
        %2087 = vmatpush1.msra.mxu0 0.0
        %2088 = vmatprep.subr.mxu0 0.0
        %2089 = vmatpush1.msra.mxu0 0.0
        %2090 = vmatprep.subr.mxu0 0.0
        %2091 = vmatpush1.msra.mxu0 0.0
        %2092 = vmatprep.subr.mxu0 0.0
        %2093 = vmatpush1.msra.mxu0 0.0
        %2094 = vmatprep.subr.mxu0 0.0
        %2095 = vmatpush1.msra.mxu0 %v2057
        %2096 = vmatprep.subr.mxu0 0.0
        %2097 = vmatpush1.msra.mxu0 %v2055
        %2098 = vmatprep.subr.mxu0 0.0
        %2099 = vmatpush2.msra.mxu0 0.0
        %2100 = vmatprep.subr.mxu0 0.0
        %2101 = vmatpush2.msra.mxu0 0.0
        %2102 = vmatprep.subr.mxu0 0.0
        %2103 = vmatpush2.msra.mxu0 0.0
        %2104 = vmatprep.subr.mxu0 0.0
        %2105 = vmatpush2.msra.mxu0 0.0
        %2106 = vmatprep.subr.mxu0 0.0
        %2107 = vmatpush2.msra.mxu0 0.0
        %2108 = vmatprep.subr.mxu0 0.0
        %2109 = vmatpush2.msra.mxu0 0.0
        %2110 = vmatprep.subr.mxu0 0.0
        %2111 = vmatpush2.msra.mxu0 0.0
        %2112 = vmatprep.subr.mxu0 0.0
        %2113 = vmatpush2.msra.mxu0 0.0
        %2114 = vmatprep.subr.mxu0 0.0
        %2115 = vmatpush2.msra.mxu0 0.0
        %2116 = vmatprep.subr.mxu0 0.0
        %2117 = vmatpush2.msra.mxu0 0.0
        %2118 = vmatprep.subr.mxu0 0.0
        %2119 = vmatpush2.msra.mxu0 0.0
        %2120 = vmatprep.subr.mxu0 0.0
        %2121 = vmatpush2.msra.mxu0 0.0
        %2122 = vmatprep.subr.mxu0 0.0
        %2123 = vmatpush2.msra.mxu0 0.0
        %2124 = vmatprep.subr.mxu0 0.0
        %2125 = vmatpush2.msra.mxu0 0.0
        %2126 = vmatprep.subr.mxu0 0.0
        %2127 = vmatpush2.msra.mxu0 0.0
        %2128 = vmatprep.subr.mxu0 0.0
        %2129 = vmatpush2.msra.mxu0 0.0
        %2130 = vmatprep.mubr.f32.mxu0 0.0
        %2131 = vmatmul.mubr.f32.gmra.mxu0 %v2061
        %v2132 = vpop.f32.mrf.mxu0
        %v2133 = vadd.f32 0.0, %v2132
        %v2134 = vpop.f32.mrf.mxu0
        %2135 = vmatprep.mubr.f32.mxu0 0.0
        %2136 = vmatmul.mubr.f32.gmra.mxu0 %v2064
        %v2137 = vpop.f32.mrf.mxu0
        %v2138 = vadd.f32 0.0, %v2137
        %v2139 = vpop.f32.mrf.mxu0
        %2140 = vdwg.mxu0
        %2143 = vrot.lane.b32.xlu0 %v679, 112
        %v2144 = vpop.permute.xlu0 %2143
        %2145 = vrot.lane.b32.xlu0 %v684, 112
        %v2146 = vpop.permute.xlu0 %2145
        %v2150 = vsel %vm699, %v1959, 0
        %v2153 = vsel %vm699, %v1960, 0
        %2155 = vmatprep.subr.mxu0 0.0
        %2156 = vmatpush1.msra.mxu0 0.0
        %2157 = vmatprep.subr.mxu0 0.0
        %2158 = vmatpush1.msra.mxu0 0.0
        %2159 = vmatprep.subr.mxu0 0.0
        %2160 = vmatpush1.msra.mxu0 0.0
        %2161 = vmatprep.subr.mxu0 0.0
        %2162 = vmatpush1.msra.mxu0 0.0
        %2163 = vmatprep.subr.mxu0 0.0
        %2164 = vmatpush1.msra.mxu0 0.0
        %2165 = vmatprep.subr.mxu0 0.0
        %2166 = vmatpush1.msra.mxu0 0.0
        %2167 = vmatprep.subr.mxu0 0.0
        %2168 = vmatpush1.msra.mxu0 0.0
        %2169 = vmatprep.subr.mxu0 0.0
        %2170 = vmatpush1.msra.mxu0 0.0
        %2171 = vmatprep.subr.mxu0 0.0
        %2172 = vmatpush1.msra.mxu0 0.0
        %2173 = vmatprep.subr.mxu0 0.0
        %2174 = vmatpush1.msra.mxu0 0.0
        %2175 = vmatprep.subr.mxu0 0.0
        %2176 = vmatpush1.msra.mxu0 0.0
        %2177 = vmatprep.subr.mxu0 0.0
        %2178 = vmatpush1.msra.mxu0 0.0
        %2179 = vmatprep.subr.mxu0 0.0
        %2180 = vmatpush1.msra.mxu0 0.0
        %2181 = vmatprep.subr.mxu0 0.0
        %2182 = vmatpush1.msra.mxu0 0.0
        %2183 = vmatprep.subr.mxu0 0.0
        %2184 = vmatpush1.msra.mxu0 %v2146
        %2185 = vmatprep.subr.mxu0 0.0
        %2186 = vmatpush1.msra.mxu0 %v2144
        %2187 = vmatprep.subr.mxu0 0.0
        %2188 = vmatpush2.msra.mxu0 0.0
        %2189 = vmatprep.subr.mxu0 0.0
        %2190 = vmatpush2.msra.mxu0 0.0
        %2191 = vmatprep.subr.mxu0 0.0
        %2192 = vmatpush2.msra.mxu0 0.0
        %2193 = vmatprep.subr.mxu0 0.0
        %2194 = vmatpush2.msra.mxu0 0.0
        %2195 = vmatprep.subr.mxu0 0.0
        %2196 = vmatpush2.msra.mxu0 0.0
        %2197 = vmatprep.subr.mxu0 0.0
        %2198 = vmatpush2.msra.mxu0 0.0
        %2199 = vmatprep.subr.mxu0 0.0
        %2200 = vmatpush2.msra.mxu0 0.0
        %2201 = vmatprep.subr.mxu0 0.0
        %2202 = vmatpush2.msra.mxu0 0.0
        %2203 = vmatprep.subr.mxu0 0.0
        %2204 = vmatpush2.msra.mxu0 0.0
        %2205 = vmatprep.subr.mxu0 0.0
        %2206 = vmatpush2.msra.mxu0 0.0
        %2207 = vmatprep.subr.mxu0 0.0
        %2208 = vmatpush2.msra.mxu0 0.0
        %2209 = vmatprep.subr.mxu0 0.0
        %2210 = vmatpush2.msra.mxu0 0.0
        %2211 = vmatprep.subr.mxu0 0.0
        %2212 = vmatpush2.msra.mxu0 0.0
        %2213 = vmatprep.subr.mxu0 0.0
        %2214 = vmatpush2.msra.mxu0 0.0
        %2215 = vmatprep.subr.mxu0 0.0
        %2216 = vmatpush2.msra.mxu0 0.0
        %2217 = vmatprep.subr.mxu0 0.0
        %2218 = vmatpush2.msra.mxu0 0.0
        %2219 = vmatprep.mubr.f32.mxu0 0.0
        %2220 = vmatmul.mubr.f32.gmra.mxu0 %v2150
        %v2221 = vpop.f32.mrf.mxu0
        %v2222 = vadd.f32 0.0, %v2221
        %v2223 = vpop.f32.mrf.mxu0
        %2224 = vmatprep.mubr.f32.mxu0 0.0
        %2225 = vmatmul.mubr.f32.gmra.mxu0 %v2153
        %v2226 = vpop.f32.mrf.mxu0
        %v2227 = vadd.f32 0.0, %v2226
        %v2228 = vpop.f32.mrf.mxu0
        %2229 = vdwg.mxu0
        %2232 = vrot.lane.b32.xlu0 %v689, 112
        %v2233 = vpop.permute.xlu0 %2232
        %2234 = vrot.lane.b32.xlu0 %v694, 112
        %v2235 = vpop.permute.xlu0 %2234
        %v2239 = vsel %vm699, %v1961, 0
        %v2242 = vsel %vm699, %v1962, 0
        %2244 = vmatprep.subr.mxu0 0.0
        %2245 = vmatpush1.msra.mxu0 0.0
        %2246 = vmatprep.subr.mxu0 0.0
        %2247 = vmatpush1.msra.mxu0 0.0
        %2248 = vmatprep.subr.mxu0 0.0
        %2249 = vmatpush1.msra.mxu0 0.0
        %2250 = vmatprep.subr.mxu0 0.0
        %2251 = vmatpush1.msra.mxu0 0.0
        %2252 = vmatprep.subr.mxu0 0.0
        %2253 = vmatpush1.msra.mxu0 0.0
        %2254 = vmatprep.subr.mxu0 0.0
        %2255 = vmatpush1.msra.mxu0 0.0
        %2256 = vmatprep.subr.mxu0 0.0
        %2257 = vmatpush1.msra.mxu0 0.0
        %2258 = vmatprep.subr.mxu0 0.0
        %2259 = vmatpush1.msra.mxu0 0.0
        %2260 = vmatprep.subr.mxu0 0.0
        %2261 = vmatpush1.msra.mxu0 0.0
        %2262 = vmatprep.subr.mxu0 0.0
        %2263 = vmatpush1.msra.mxu0 0.0
        %2264 = vmatprep.subr.mxu0 0.0
        %2265 = vmatpush1.msra.mxu0 0.0
        %2266 = vmatprep.subr.mxu0 0.0
        %2267 = vmatpush1.msra.mxu0 0.0
        %2268 = vmatprep.subr.mxu0 0.0
        %2269 = vmatpush1.msra.mxu0 0.0
        %2270 = vmatprep.subr.mxu0 0.0
        %2271 = vmatpush1.msra.mxu0 0.0
        %2272 = vmatprep.subr.mxu0 0.0
        %2273 = vmatpush1.msra.mxu0 %v2235
        %2274 = vmatprep.subr.mxu0 0.0
        %2275 = vmatpush1.msra.mxu0 %v2233
        %2276 = vmatprep.subr.mxu0 0.0
        %2277 = vmatpush2.msra.mxu0 0.0
        %2278 = vmatprep.subr.mxu0 0.0
        %2279 = vmatpush2.msra.mxu0 0.0
        %2280 = vmatprep.subr.mxu0 0.0
        %2281 = vmatpush2.msra.mxu0 0.0
        %2282 = vmatprep.subr.mxu0 0.0
        %2283 = vmatpush2.msra.mxu0 0.0
        %2284 = vmatprep.subr.mxu0 0.0
        %2285 = vmatpush2.msra.mxu0 0.0
        %2286 = vmatprep.subr.mxu0 0.0
        %2287 = vmatpush2.msra.mxu0 0.0
        %2288 = vmatprep.subr.mxu0 0.0
        %2289 = vmatpush2.msra.mxu0 0.0
        %2290 = vmatprep.subr.mxu0 0.0
        %2291 = vmatpush2.msra.mxu0 0.0
        %2292 = vmatprep.subr.mxu0 0.0
        %2293 = vmatpush2.msra.mxu0 0.0
        %2294 = vmatprep.subr.mxu0 0.0
        %2295 = vmatpush2.msra.mxu0 0.0
        %2296 = vmatprep.subr.mxu0 0.0
        %2297 = vmatpush2.msra.mxu0 0.0
        %2298 = vmatprep.subr.mxu0 0.0
        %2299 = vmatpush2.msra.mxu0 0.0
        %2300 = vmatprep.subr.mxu0 0.0
        %2301 = vmatpush2.msra.mxu0 0.0
        %2302 = vmatprep.subr.mxu0 0.0
        %2303 = vmatpush2.msra.mxu0 0.0
        %2304 = vmatprep.subr.mxu0 0.0
        %2305 = vmatpush2.msra.mxu0 0.0
        %2306 = vmatprep.subr.mxu0 0.0
        %2307 = vmatpush2.msra.mxu0 0.0
        %2308 = vmatprep.mubr.f32.mxu0 0.0
        %2309 = vmatmul.mubr.f32.gmra.mxu0 %v2239
        %v2310 = vpop.f32.mrf.mxu0
        %v2311 = vadd.f32 0.0, %v2310
        %v2312 = vpop.f32.mrf.mxu0
        %2313 = vmatprep.mubr.f32.mxu0 0.0
        %2314 = vmatmul.mubr.f32.gmra.mxu0 %v2242
        %v2315 = vpop.f32.mrf.mxu0
        %v2316 = vadd.f32 0.0, %v2315
        %v2317 = vpop.f32.mrf.mxu0
        %2318 = vdwg.mxu0
        %s2319 = scalar_lea.vmem %s4, 32
        %v2320 = vld [vmem:[%s2319] sm:$0xff]
        %v2321 = vld [vmem:[%s2319 + $0x8] sm:$0xff]
        %2322 = vrot.lane.b32.xlu0 %v471, 96
        %v2323 = vpop.permute.xlu0 %2322
        %2324 = vrot.lane.b32.xlu0 %v472, 96
        %v2325 = vpop.permute.xlu0 %2324
        %2326 = vrot.lane.b32.xlu0 %v550, 96
        %v2327 = vpop.permute.xlu0 %2326
        %2328 = vrot.lane.b32.xlu0 %v555, 96
        %v2329 = vpop.permute.xlu0 %2328
        %v2330 = vsel %vm699, %v2323, 0
        %v2332 = vsel %vm699, %v2325, 0
        %v2334 = vsel %vm699, %v2327, 0
        %v2336 = vsel %vm699, %v2329, 0
        %2338 = vmatprep.subr.mxu0 0.0
        %2339 = vmatpush1.xpose.msra.mxu0 0.0
        %2340 = vmatprep.subr.mxu0 0.0
        %2341 = vmatpush1.xpose.msra.mxu0 0.0
        %2342 = vmatprep.subr.mxu0 0.0
        %2343 = vmatpush1.xpose.msra.mxu0 0.0
        %2344 = vmatprep.subr.mxu0 0.0
        %2345 = vmatpush1.xpose.msra.mxu0 0.0
        %2346 = vmatprep.subr.mxu0 0.0
        %2347 = vmatpush1.xpose.msra.mxu0 0.0
        %2348 = vmatprep.subr.mxu0 0.0
        %2349 = vmatpush1.xpose.msra.mxu0 0.0
        %2350 = vmatprep.subr.mxu0 0.0
        %2351 = vmatpush1.xpose.msra.mxu0 0.0
        %2352 = vmatprep.subr.mxu0 0.0
        %2353 = vmatpush1.xpose.msra.mxu0 0.0
        %2354 = vmatprep.subr.mxu0 0.0
        %2355 = vmatpush1.xpose.msra.mxu0 0.0
        %2356 = vmatprep.subr.mxu0 0.0
        %2357 = vmatpush1.xpose.msra.mxu0 0.0
        %2358 = vmatprep.subr.mxu0 0.0
        %2359 = vmatpush1.xpose.msra.mxu0 0.0
        %2360 = vmatprep.subr.mxu0 0.0
        %2361 = vmatpush1.xpose.msra.mxu0 0.0
        %2362 = vmatprep.subr.mxu0 0.0
        %2363 = vmatpush1.xpose.msra.mxu0 0.0
        %2364 = vmatprep.subr.mxu0 0.0
        %2365 = vmatpush1.xpose.msra.mxu0 0.0
        %2366 = vmatprep.subr.mxu0 0.0
        %2367 = vmatpush1.xpose.msra.mxu0 %v2336
        %2368 = vmatprep.subr.mxu0 0.0
        %2369 = vmatpush1.xpose.msra.mxu0 %v2334
        %2370 = vmatprep.subr.mxu0 0.0
        %2371 = vmatpush2.xpose.msra.mxu0 0.0
        %2372 = vmatprep.subr.mxu0 0.0
        %2373 = vmatpush2.xpose.msra.mxu0 0.0
        %2374 = vmatprep.subr.mxu0 0.0
        %2375 = vmatpush2.xpose.msra.mxu0 0.0
        %2376 = vmatprep.subr.mxu0 0.0
        %2377 = vmatpush2.xpose.msra.mxu0 0.0
        %2378 = vmatprep.subr.mxu0 0.0
        %2379 = vmatpush2.xpose.msra.mxu0 0.0
        %2380 = vmatprep.subr.mxu0 0.0
        %2381 = vmatpush2.xpose.msra.mxu0 0.0
        %2382 = vmatprep.subr.mxu0 0.0
        %2383 = vmatpush2.xpose.msra.mxu0 0.0
        %2384 = vmatprep.subr.mxu0 0.0
        %2385 = vmatpush2.xpose.msra.mxu0 0.0
        %2386 = vmatprep.subr.mxu0 0.0
        %2387 = vmatpush2.xpose.msra.mxu0 0.0
        %2388 = vmatprep.subr.mxu0 0.0
        %2389 = vmatpush2.xpose.msra.mxu0 0.0
        %2390 = vmatprep.subr.mxu0 0.0
        %2391 = vmatpush2.xpose.msra.mxu0 0.0
        %2392 = vmatprep.subr.mxu0 0.0
        %2393 = vmatpush2.xpose.msra.mxu0 0.0
        %2394 = vmatprep.subr.mxu0 0.0
        %2395 = vmatpush2.xpose.msra.mxu0 0.0
        %2396 = vmatprep.subr.mxu0 0.0
        %2397 = vmatpush2.xpose.msra.mxu0 0.0
        %2398 = vmatprep.subr.mxu0 0.0
        %2399 = vmatpush2.xpose.msra.mxu0 0.0
        %2400 = vmatprep.subr.mxu0 0.0
        %2401 = vmatpush2.xpose.msra.mxu0 0.0
        %2402 = vmatprep.mubr.f32.mxu0 0.0
        %2403 = vmatmul.mubr.f32.gmra.mxu0 %v2330
        %v2404 = vpop.f32.mrf.mxu0
        %v2405 = vadd.f32 %v2320, %v2404
        %v2406 = vpop.f32.mrf.mxu0
        %2407 = vmatprep.mubr.f32.mxu0 0.0
        %2408 = vmatmul.mubr.f32.gmra.mxu0 %v2332
        %v2409 = vpop.f32.mrf.mxu0
        %v2410 = vadd.f32 %v2321, %v2409
        %v2411 = vpop.f32.mrf.mxu0
        %2412 = vdwg.mxu0
        %2413 = vrot.lane.b32.xlu0 %v473, 96
        %v2414 = vpop.permute.xlu0 %2413
        %2415 = vrot.lane.b32.xlu0 %v474, 96
        %v2416 = vpop.permute.xlu0 %2415
        %2417 = vrot.lane.b32.xlu0 %v560, 96
        %v2418 = vpop.permute.xlu0 %2417
        %2419 = vrot.lane.b32.xlu0 %v565, 96
        %v2420 = vpop.permute.xlu0 %2419
        %v2421 = vsel %vm699, %v2414, 0
        %v2423 = vsel %vm699, %v2416, 0
        %v2425 = vsel %vm699, %v2418, 0
        %v2427 = vsel %vm699, %v2420, 0
        %2429 = vmatprep.subr.mxu0 0.0
        %2430 = vmatpush1.xpose.msra.mxu0 0.0
        %2431 = vmatprep.subr.mxu0 0.0
        %2432 = vmatpush1.xpose.msra.mxu0 0.0
        %2433 = vmatprep.subr.mxu0 0.0
        %2434 = vmatpush1.xpose.msra.mxu0 0.0
        %2435 = vmatprep.subr.mxu0 0.0
        %2436 = vmatpush1.xpose.msra.mxu0 0.0
        %2437 = vmatprep.subr.mxu0 0.0
        %2438 = vmatpush1.xpose.msra.mxu0 0.0
        %2439 = vmatprep.subr.mxu0 0.0
        %2440 = vmatpush1.xpose.msra.mxu0 0.0
        %2441 = vmatprep.subr.mxu0 0.0
        %2442 = vmatpush1.xpose.msra.mxu0 0.0
        %2443 = vmatprep.subr.mxu0 0.0
        %2444 = vmatpush1.xpose.msra.mxu0 0.0
        %2445 = vmatprep.subr.mxu0 0.0
        %2446 = vmatpush1.xpose.msra.mxu0 0.0
        %2447 = vmatprep.subr.mxu0 0.0
        %2448 = vmatpush1.xpose.msra.mxu0 0.0
        %2449 = vmatprep.subr.mxu0 0.0
        %2450 = vmatpush1.xpose.msra.mxu0 0.0
        %2451 = vmatprep.subr.mxu0 0.0
        %2452 = vmatpush1.xpose.msra.mxu0 0.0
        %2453 = vmatprep.subr.mxu0 0.0
        %2454 = vmatpush1.xpose.msra.mxu0 0.0
        %2455 = vmatprep.subr.mxu0 0.0
        %2456 = vmatpush1.xpose.msra.mxu0 0.0
        %2457 = vmatprep.subr.mxu0 0.0
        %2458 = vmatpush1.xpose.msra.mxu0 %v2427
        %2459 = vmatprep.subr.mxu0 0.0
        %2460 = vmatpush1.xpose.msra.mxu0 %v2425
        %2461 = vmatprep.subr.mxu0 0.0
        %2462 = vmatpush2.xpose.msra.mxu0 0.0
        %2463 = vmatprep.subr.mxu0 0.0
        %2464 = vmatpush2.xpose.msra.mxu0 0.0
        %2465 = vmatprep.subr.mxu0 0.0
        %2466 = vmatpush2.xpose.msra.mxu0 0.0
        %2467 = vmatprep.subr.mxu0 0.0
        %2468 = vmatpush2.xpose.msra.mxu0 0.0
        %2469 = vmatprep.subr.mxu0 0.0
        %2470 = vmatpush2.xpose.msra.mxu0 0.0
        %2471 = vmatprep.subr.mxu0 0.0
        %2472 = vmatpush2.xpose.msra.mxu0 0.0
        %2473 = vmatprep.subr.mxu0 0.0
        %2474 = vmatpush2.xpose.msra.mxu0 0.0
        %2475 = vmatprep.subr.mxu0 0.0
        %2476 = vmatpush2.xpose.msra.mxu0 0.0
        %2477 = vmatprep.subr.mxu0 0.0
        %2478 = vmatpush2.xpose.msra.mxu0 0.0
        %2479 = vmatprep.subr.mxu0 0.0
        %2480 = vmatpush2.xpose.msra.mxu0 0.0
        %2481 = vmatprep.subr.mxu0 0.0
        %2482 = vmatpush2.xpose.msra.mxu0 0.0
        %2483 = vmatprep.subr.mxu0 0.0
        %2484 = vmatpush2.xpose.msra.mxu0 0.0
        %2485 = vmatprep.subr.mxu0 0.0
        %2486 = vmatpush2.xpose.msra.mxu0 0.0
        %2487 = vmatprep.subr.mxu0 0.0
        %2488 = vmatpush2.xpose.msra.mxu0 0.0
        %2489 = vmatprep.subr.mxu0 0.0
        %2490 = vmatpush2.xpose.msra.mxu0 0.0
        %2491 = vmatprep.subr.mxu0 0.0
        %2492 = vmatpush2.xpose.msra.mxu0 0.0
        %2493 = vmatprep.mubr.f32.mxu0 0.0
        %2494 = vmatmul.mubr.f32.gmra.mxu0 %v2421
        %v2495 = vpop.f32.mrf.mxu0
        %v2496 = vadd.f32 %v2320, %v2495
        %v2497 = vpop.f32.mrf.mxu0
        %2498 = vmatprep.mubr.f32.mxu0 0.0
        %2499 = vmatmul.mubr.f32.gmra.mxu0 %v2423
        %v2500 = vpop.f32.mrf.mxu0
        %v2501 = vadd.f32 %v2321, %v2500
        %v2502 = vpop.f32.mrf.mxu0
        %2503 = vdwg.mxu0
        %2504 = vrot.lane.b32.xlu0 %v475, 96
        %v2505 = vpop.permute.xlu0 %2504
        %2506 = vrot.lane.b32.xlu0 %v476, 96
        %v2507 = vpop.permute.xlu0 %2506
        %2508 = vrot.lane.b32.xlu0 %v570, 96
        %v2509 = vpop.permute.xlu0 %2508
        %2510 = vrot.lane.b32.xlu0 %v575, 96
        %v2511 = vpop.permute.xlu0 %2510
        %v2512 = vsel %vm699, %v2505, 0
        %v2514 = vsel %vm699, %v2507, 0
        %v2516 = vsel %vm699, %v2509, 0
        %v2518 = vsel %vm699, %v2511, 0
        %2520 = vmatprep.subr.mxu0 0.0
        %2521 = vmatpush1.xpose.msra.mxu0 0.0
        %2522 = vmatprep.subr.mxu0 0.0
        %2523 = vmatpush1.xpose.msra.mxu0 0.0
        %2524 = vmatprep.subr.mxu0 0.0
        %2525 = vmatpush1.xpose.msra.mxu0 0.0
        %2526 = vmatprep.subr.mxu0 0.0
        %2527 = vmatpush1.xpose.msra.mxu0 0.0
        %2528 = vmatprep.subr.mxu0 0.0
        %2529 = vmatpush1.xpose.msra.mxu0 0.0
        %2530 = vmatprep.subr.mxu0 0.0
        %2531 = vmatpush1.xpose.msra.mxu0 0.0
        %2532 = vmatprep.subr.mxu0 0.0
        %2533 = vmatpush1.xpose.msra.mxu0 0.0
        %2534 = vmatprep.subr.mxu0 0.0
        %2535 = vmatpush1.xpose.msra.mxu0 0.0
        %2536 = vmatprep.subr.mxu0 0.0
        %2537 = vmatpush1.xpose.msra.mxu0 0.0
        %2538 = vmatprep.subr.mxu0 0.0
        %2539 = vmatpush1.xpose.msra.mxu0 0.0
        %2540 = vmatprep.subr.mxu0 0.0
        %2541 = vmatpush1.xpose.msra.mxu0 0.0
        %2542 = vmatprep.subr.mxu0 0.0
        %2543 = vmatpush1.xpose.msra.mxu0 0.0
        %2544 = vmatprep.subr.mxu0 0.0
        %2545 = vmatpush1.xpose.msra.mxu0 0.0
        %2546 = vmatprep.subr.mxu0 0.0
        %2547 = vmatpush1.xpose.msra.mxu0 0.0
        %2548 = vmatprep.subr.mxu0 0.0
        %2549 = vmatpush1.xpose.msra.mxu0 %v2518
        %2550 = vmatprep.subr.mxu0 0.0
        %2551 = vmatpush1.xpose.msra.mxu0 %v2516
        %2552 = vmatprep.subr.mxu0 0.0
        %2553 = vmatpush2.xpose.msra.mxu0 0.0
        %2554 = vmatprep.subr.mxu0 0.0
        %2555 = vmatpush2.xpose.msra.mxu0 0.0
        %2556 = vmatprep.subr.mxu0 0.0
        %2557 = vmatpush2.xpose.msra.mxu0 0.0
        %2558 = vmatprep.subr.mxu0 0.0
        %2559 = vmatpush2.xpose.msra.mxu0 0.0
        %2560 = vmatprep.subr.mxu0 0.0
        %2561 = vmatpush2.xpose.msra.mxu0 0.0
        %2562 = vmatprep.subr.mxu0 0.0
        %2563 = vmatpush2.xpose.msra.mxu0 0.0
        %2564 = vmatprep.subr.mxu0 0.0
        %2565 = vmatpush2.xpose.msra.mxu0 0.0
        %2566 = vmatprep.subr.mxu0 0.0
        %2567 = vmatpush2.xpose.msra.mxu0 0.0
        %2568 = vmatprep.subr.mxu0 0.0
        %2569 = vmatpush2.xpose.msra.mxu0 0.0
        %2570 = vmatprep.subr.mxu0 0.0
        %2571 = vmatpush2.xpose.msra.mxu0 0.0
        %2572 = vmatprep.subr.mxu0 0.0
        %2573 = vmatpush2.xpose.msra.mxu0 0.0
        %2574 = vmatprep.subr.mxu0 0.0
        %2575 = vmatpush2.xpose.msra.mxu0 0.0
        %2576 = vmatprep.subr.mxu0 0.0
        %2577 = vmatpush2.xpose.msra.mxu0 0.0
        %2578 = vmatprep.subr.mxu0 0.0
        %2579 = vmatpush2.xpose.msra.mxu0 0.0
        %2580 = vmatprep.subr.mxu0 0.0
        %2581 = vmatpush2.xpose.msra.mxu0 0.0
        %2582 = vmatprep.subr.mxu0 0.0
        %2583 = vmatpush2.xpose.msra.mxu0 0.0
        %2584 = vmatprep.mubr.f32.mxu0 0.0
        %2585 = vmatmul.mubr.f32.gmra.mxu0 %v2512
        %v2586 = vpop.f32.mrf.mxu0
        %v2587 = vadd.f32 %v2320, %v2586
        %v2588 = vpop.f32.mrf.mxu0
        %2589 = vmatprep.mubr.f32.mxu0 0.0
        %2590 = vmatmul.mubr.f32.gmra.mxu0 %v2514
        %v2591 = vpop.f32.mrf.mxu0
        %v2592 = vadd.f32 %v2321, %v2591
        %v2593 = vpop.f32.mrf.mxu0
        %2594 = vdwg.mxu0
        %2595 = vrot.lane.b32.xlu0 %v477, 96
        %v2596 = vpop.permute.xlu0 %2595
        %2597 = vrot.lane.b32.xlu0 %v478, 96
        %v2598 = vpop.permute.xlu0 %2597
        %2599 = vrot.lane.b32.xlu0 %v580, 96
        %v2600 = vpop.permute.xlu0 %2599
        %2601 = vrot.lane.b32.xlu0 %v585, 96
        %v2602 = vpop.permute.xlu0 %2601
        %v2603 = vsel %vm699, %v2596, 0
        %v2605 = vsel %vm699, %v2598, 0
        %v2607 = vsel %vm699, %v2600, 0
        %v2609 = vsel %vm699, %v2602, 0
        %2611 = vmatprep.subr.mxu0 0.0
        %2612 = vmatpush1.xpose.msra.mxu0 0.0
        %2613 = vmatprep.subr.mxu0 0.0
        %2614 = vmatpush1.xpose.msra.mxu0 0.0
        %2615 = vmatprep.subr.mxu0 0.0
        %2616 = vmatpush1.xpose.msra.mxu0 0.0
        %2617 = vmatprep.subr.mxu0 0.0
        %2618 = vmatpush1.xpose.msra.mxu0 0.0
        %2619 = vmatprep.subr.mxu0 0.0
        %2620 = vmatpush1.xpose.msra.mxu0 0.0
        %2621 = vmatprep.subr.mxu0 0.0
        %2622 = vmatpush1.xpose.msra.mxu0 0.0
        %2623 = vmatprep.subr.mxu0 0.0
        %2624 = vmatpush1.xpose.msra.mxu0 0.0
        %2625 = vmatprep.subr.mxu0 0.0
        %2626 = vmatpush1.xpose.msra.mxu0 0.0
        %2627 = vmatprep.subr.mxu0 0.0
        %2628 = vmatpush1.xpose.msra.mxu0 0.0
        %2629 = vmatprep.subr.mxu0 0.0
        %2630 = vmatpush1.xpose.msra.mxu0 0.0
        %2631 = vmatprep.subr.mxu0 0.0
        %2632 = vmatpush1.xpose.msra.mxu0 0.0
        %2633 = vmatprep.subr.mxu0 0.0
        %2634 = vmatpush1.xpose.msra.mxu0 0.0
        %2635 = vmatprep.subr.mxu0 0.0
        %2636 = vmatpush1.xpose.msra.mxu0 0.0
        %2637 = vmatprep.subr.mxu0 0.0
        %2638 = vmatpush1.xpose.msra.mxu0 0.0
        %2639 = vmatprep.subr.mxu0 0.0
        %2640 = vmatpush1.xpose.msra.mxu0 %v2609
        %2641 = vmatprep.subr.mxu0 0.0
        %2642 = vmatpush1.xpose.msra.mxu0 %v2607
        %2643 = vmatprep.subr.mxu0 0.0
        %2644 = vmatpush2.xpose.msra.mxu0 0.0
        %2645 = vmatprep.subr.mxu0 0.0
        %2646 = vmatpush2.xpose.msra.mxu0 0.0
        %2647 = vmatprep.subr.mxu0 0.0
        %2648 = vmatpush2.xpose.msra.mxu0 0.0
        %2649 = vmatprep.subr.mxu0 0.0
        %2650 = vmatpush2.xpose.msra.mxu0 0.0
        %2651 = vmatprep.subr.mxu0 0.0
        %2652 = vmatpush2.xpose.msra.mxu0 0.0
        %2653 = vmatprep.subr.mxu0 0.0
        %2654 = vmatpush2.xpose.msra.mxu0 0.0
        %2655 = vmatprep.subr.mxu0 0.0
        %2656 = vmatpush2.xpose.msra.mxu0 0.0
        %2657 = vmatprep.subr.mxu0 0.0
        %2658 = vmatpush2.xpose.msra.mxu0 0.0
        %2659 = vmatprep.subr.mxu0 0.0
        %2660 = vmatpush2.xpose.msra.mxu0 0.0
        %2661 = vmatprep.subr.mxu0 0.0
        %2662 = vmatpush2.xpose.msra.mxu0 0.0
        %2663 = vmatprep.subr.mxu0 0.0
        %2664 = vmatpush2.xpose.msra.mxu0 0.0
        %2665 = vmatprep.subr.mxu0 0.0
        %2666 = vmatpush2.xpose.msra.mxu0 0.0
        %2667 = vmatprep.subr.mxu0 0.0
        %2668 = vmatpush2.xpose.msra.mxu0 0.0
        %2669 = vmatprep.subr.mxu0 0.0
        %2670 = vmatpush2.xpose.msra.mxu0 0.0
        %2671 = vmatprep.subr.mxu0 0.0
        %2672 = vmatpush2.xpose.msra.mxu0 0.0
        %2673 = vmatprep.subr.mxu0 0.0
        %2674 = vmatpush2.xpose.msra.mxu0 0.0
        %2675 = vmatprep.mubr.f32.mxu0 0.0
        %2676 = vmatmul.mubr.f32.gmra.mxu0 %v2603
        %v2677 = vpop.f32.mrf.mxu0
        %v2678 = vadd.f32 %v2320, %v2677
        %v2679 = vpop.f32.mrf.mxu0
        %2680 = vmatprep.mubr.f32.mxu0 0.0
        %2681 = vmatmul.mubr.f32.gmra.mxu0 %v2605
        %v2682 = vpop.f32.mrf.mxu0
        %v2683 = vadd.f32 %v2321, %v2682
        %v2684 = vpop.f32.mrf.mxu0
        %2685 = vdwg.mxu0
        %v2686 = vsel %vm699, %v2405, -inf
        %2687 = vmax.xlane.f32.xlu0 %v2686
        %v2688 = vpop.xlane.xlu0 %2687
        %v2689 = vsel %vm699, %v2410, -inf
        %2690 = vmax.xlane.f32.xlu0 %v2689
        %v2691 = vpop.xlane.xlu0 %2690
        %v2692 = vsel %vm699, %v2496, -inf
        %2693 = vmax.xlane.f32.xlu0 %v2692
        %v2694 = vpop.xlane.xlu0 %2693
        %v2695 = vsel %vm699, %v2501, -inf
        %2696 = vmax.xlane.f32.xlu0 %v2695
        %v2697 = vpop.xlane.xlu0 %2696
        %v2698 = vsel %vm699, %v2587, -inf
        %2699 = vmax.xlane.f32.xlu0 %v2698
        %v2700 = vpop.xlane.xlu0 %2699
        %v2701 = vsel %vm699, %v2592, -inf
        %2702 = vmax.xlane.f32.xlu0 %v2701
        %v2703 = vpop.xlane.xlu0 %2702
        %v2704 = vsel %vm699, %v2678, -inf
        %2705 = vmax.xlane.f32.xlu0 %v2704
        %v2706 = vpop.xlane.xlu0 %2705
        %v2707 = vsel %vm699, %v2683, -inf
        %2708 = vmax.xlane.f32.xlu0 %v2707
        %v2709 = vpop.xlane.xlu0 %2708
        %v2710 = vsub.f32 %v2405, %v2688
        %v2711 = vsub.f32 %v2410, %v2691
        %v2712 = vsub.f32 %v2496, %v2694
        %v2713 = vsub.f32 %v2501, %v2697
        %v2714 = vsub.f32 %v2587, %v2700
        %v2715 = vsub.f32 %v2592, %v2703
        %v2716 = vsub.f32 %v2678, %v2706
        %v2717 = vsub.f32 %v2683, %v2709
        %v2718 = vmul.f32 %v2710, 1.442695
        %v2719 = vpow.pop %v2718
        %v2720 = vmul.f32 %v2711, 1.442695
        %v2721 = vpow.pop %v2720
        %v2722 = vmul.f32 %v2712, 1.442695
        %v2723 = vpow.pop %v2722
        %v2724 = vmul.f32 %v2713, 1.442695
        %v2725 = vpow.pop %v2724
        %v2726 = vmul.f32 %v2714, 1.442695
        %v2727 = vpow.pop %v2726
        %v2728 = vmul.f32 %v2715, 1.442695
        %v2729 = vpow.pop %v2728
        %v2730 = vmul.f32 %v2716, 1.442695
        %v2731 = vpow.pop %v2730
        %v2732 = vmul.f32 %v2717, 1.442695
        %v2733 = vpow.pop %v2732
        %v2734 = vsel %vm699, %v2719, 0.0
        %2735 = vadd.xlane.f32.xlu0 %v2734
        %v2736 = vpop.xlane.xlu0 %2735
        %v2737 = vsel %vm699, %v2721, 0.0
        %2738 = vadd.xlane.f32.xlu0 %v2737
        %v2739 = vpop.xlane.xlu0 %2738
        %v2740 = vsel %vm699, %v2723, 0.0
        %2741 = vadd.xlane.f32.xlu0 %v2740
        %v2742 = vpop.xlane.xlu0 %2741
        %v2743 = vsel %vm699, %v2725, 0.0
        %2744 = vadd.xlane.f32.xlu0 %v2743
        %v2745 = vpop.xlane.xlu0 %2744
        %v2746 = vsel %vm699, %v2727, 0.0
        %2747 = vadd.xlane.f32.xlu0 %v2746
        %v2748 = vpop.xlane.xlu0 %2747
        %v2749 = vsel %vm699, %v2729, 0.0
        %2750 = vadd.xlane.f32.xlu0 %v2749
        %v2751 = vpop.xlane.xlu0 %2750
        %v2752 = vsel %vm699, %v2731, 0.0
        %2753 = vadd.xlane.f32.xlu0 %v2752
        %v2754 = vpop.xlane.xlu0 %2753
        %v2755 = vsel %vm699, %v2733, 0.0
        %2756 = vadd.xlane.f32.xlu0 %v2755
        %v2757 = vpop.xlane.xlu0 %2756
        %v2758 = vrcp.pop %v2736
        %v2759 = vrcp.pop %v2739
        %v2760 = vrcp.pop %v2742
        %v2761 = vrcp.pop %v2745
        %v2762 = vrcp.pop %v2748
        %v2763 = vrcp.pop %v2751
        %v2764 = vrcp.pop %v2754
        %v2765 = vrcp.pop %v2757
        %v2766 = vmul.f32 %v2736, %v2758
        %v2767 = vmul.f32 %v2739, %v2759
        %v2768 = vmul.f32 %v2742, %v2760
        %v2769 = vmul.f32 %v2745, %v2761
        %v2770 = vmul.f32 %v2748, %v2762
        %v2771 = vmul.f32 %v2751, %v2763
        %v2772 = vmul.f32 %v2754, %v2764
        %v2773 = vmul.f32 %v2757, %v2765
        %v2774 = vsub.f32 2.0, %v2766
        %v2775 = vsub.f32 2.0, %v2767
        %v2776 = vsub.f32 2.0, %v2768
        %v2777 = vsub.f32 2.0, %v2769
        %v2778 = vsub.f32 2.0, %v2770
        %v2779 = vsub.f32 2.0, %v2771
        %v2780 = vsub.f32 2.0, %v2772
        %v2781 = vsub.f32 2.0, %v2773
        %v2782 = vmul.f32 %v2758, %v2774
        %v2783 = vmul.f32 %v2759, %v2775
        %v2784 = vmul.f32 %v2760, %v2776
        %v2785 = vmul.f32 %v2761, %v2777
        %v2786 = vmul.f32 %v2762, %v2778
        %v2787 = vmul.f32 %v2763, %v2779
        %v2788 = vmul.f32 %v2764, %v2780
        %v2789 = vmul.f32 %v2765, %v2781
        %v2790 = vmul.f32 %v2719, %v2782
        %v2791 = vmul.f32 %v2721, %v2783
        %v2792 = vmul.f32 %v2723, %v2784
        %v2793 = vmul.f32 %v2725, %v2785
        %v2794 = vmul.f32 %v2727, %v2786
        %v2795 = vmul.f32 %v2729, %v2787
        %v2796 = vmul.f32 %v2731, %v2788
        %v2797 = vmul.f32 %v2733, %v2789
        %2798 = vrot.lane.b32.xlu0 %v659, 96
        %v2799 = vpop.permute.xlu0 %2798
        %2800 = vrot.lane.b32.xlu0 %v664, 96
        %v2801 = vpop.permute.xlu0 %2800
        %v2805 = vsel %vm699, %v2790, 0
        %v2808 = vsel %vm699, %v2791, 0
        %2810 = vmatprep.subr.mxu0 0.0
        %2811 = vmatpush1.msra.mxu0 0.0
        %2812 = vmatprep.subr.mxu0 0.0
        %2813 = vmatpush1.msra.mxu0 0.0
        %2814 = vmatprep.subr.mxu0 0.0
        %2815 = vmatpush1.msra.mxu0 0.0
        %2816 = vmatprep.subr.mxu0 0.0
        %2817 = vmatpush1.msra.mxu0 0.0
        %2818 = vmatprep.subr.mxu0 0.0
        %2819 = vmatpush1.msra.mxu0 0.0
        %2820 = vmatprep.subr.mxu0 0.0
        %2821 = vmatpush1.msra.mxu0 0.0
        %2822 = vmatprep.subr.mxu0 0.0
        %2823 = vmatpush1.msra.mxu0 0.0
        %2824 = vmatprep.subr.mxu0 0.0
        %2825 = vmatpush1.msra.mxu0 0.0
        %2826 = vmatprep.subr.mxu0 0.0
        %2827 = vmatpush1.msra.mxu0 0.0
        %2828 = vmatprep.subr.mxu0 0.0
        %2829 = vmatpush1.msra.mxu0 0.0
        %2830 = vmatprep.subr.mxu0 0.0
        %2831 = vmatpush1.msra.mxu0 0.0
        %2832 = vmatprep.subr.mxu0 0.0
        %2833 = vmatpush1.msra.mxu0 0.0
        %2834 = vmatprep.subr.mxu0 0.0
        %2835 = vmatpush1.msra.mxu0 0.0
        %2836 = vmatprep.subr.mxu0 0.0
        %2837 = vmatpush1.msra.mxu0 0.0
        %2838 = vmatprep.subr.mxu0 0.0
        %2839 = vmatpush1.msra.mxu0 %v2801
        %2840 = vmatprep.subr.mxu0 0.0
        %2841 = vmatpush1.msra.mxu0 %v2799
        %2842 = vmatprep.subr.mxu0 0.0
        %2843 = vmatpush2.msra.mxu0 0.0
        %2844 = vmatprep.subr.mxu0 0.0
        %2845 = vmatpush2.msra.mxu0 0.0
        %2846 = vmatprep.subr.mxu0 0.0
        %2847 = vmatpush2.msra.mxu0 0.0
        %2848 = vmatprep.subr.mxu0 0.0
        %2849 = vmatpush2.msra.mxu0 0.0
        %2850 = vmatprep.subr.mxu0 0.0
        %2851 = vmatpush2.msra.mxu0 0.0
        %2852 = vmatprep.subr.mxu0 0.0
        %2853 = vmatpush2.msra.mxu0 0.0
        %2854 = vmatprep.subr.mxu0 0.0
        %2855 = vmatpush2.msra.mxu0 0.0
        %2856 = vmatprep.subr.mxu0 0.0
        %2857 = vmatpush2.msra.mxu0 0.0
        %2858 = vmatprep.subr.mxu0 0.0
        %2859 = vmatpush2.msra.mxu0 0.0
        %2860 = vmatprep.subr.mxu0 0.0
        %2861 = vmatpush2.msra.mxu0 0.0
        %2862 = vmatprep.subr.mxu0 0.0
        %2863 = vmatpush2.msra.mxu0 0.0
        %2864 = vmatprep.subr.mxu0 0.0
        %2865 = vmatpush2.msra.mxu0 0.0
        %2866 = vmatprep.subr.mxu0 0.0
        %2867 = vmatpush2.msra.mxu0 0.0
        %2868 = vmatprep.subr.mxu0 0.0
        %2869 = vmatpush2.msra.mxu0 0.0
        %2870 = vmatprep.subr.mxu0 0.0
        %2871 = vmatpush2.msra.mxu0 0.0
        %2872 = vmatprep.subr.mxu0 0.0
        %2873 = vmatpush2.msra.mxu0 0.0
        %2874 = vmatprep.mubr.f32.mxu0 0.0
        %2875 = vmatmul.mubr.f32.gmra.mxu0 %v2805
        %v2876 = vpop.f32.mrf.mxu0
        %v2877 = vadd.f32 0.0, %v2876
        %v2878 = vpop.f32.mrf.mxu0
        %2879 = vmatprep.mubr.f32.mxu0 0.0
        %2880 = vmatmul.mubr.f32.gmra.mxu0 %v2808
        %v2881 = vpop.f32.mrf.mxu0
        %v2882 = vadd.f32 0.0, %v2881
        %v2883 = vpop.f32.mrf.mxu0
        %2884 = vdwg.mxu0
        %2885 = vrot.lane.b32.xlu0 %v669, 96
        %v2886 = vpop.permute.xlu0 %2885
        %2887 = vrot.lane.b32.xlu0 %v674, 96
        %v2888 = vpop.permute.xlu0 %2887
        %v2892 = vsel %vm699, %v2792, 0
        %v2895 = vsel %vm699, %v2793, 0
        %2897 = vmatprep.subr.mxu0 0.0
        %2898 = vmatpush1.msra.mxu0 0.0
        %2899 = vmatprep.subr.mxu0 0.0
        %2900 = vmatpush1.msra.mxu0 0.0
        %2901 = vmatprep.subr.mxu0 0.0
        %2902 = vmatpush1.msra.mxu0 0.0
        %2903 = vmatprep.subr.mxu0 0.0
        %2904 = vmatpush1.msra.mxu0 0.0
        %2905 = vmatprep.subr.mxu0 0.0
        %2906 = vmatpush1.msra.mxu0 0.0
        %2907 = vmatprep.subr.mxu0 0.0
        %2908 = vmatpush1.msra.mxu0 0.0
        %2909 = vmatprep.subr.mxu0 0.0
        %2910 = vmatpush1.msra.mxu0 0.0
        %2911 = vmatprep.subr.mxu0 0.0
        %2912 = vmatpush1.msra.mxu0 0.0
        %2913 = vmatprep.subr.mxu0 0.0
        %2914 = vmatpush1.msra.mxu0 0.0
        %2915 = vmatprep.subr.mxu0 0.0
        %2916 = vmatpush1.msra.mxu0 0.0
        %2917 = vmatprep.subr.mxu0 0.0
        %2918 = vmatpush1.msra.mxu0 0.0
        %2919 = vmatprep.subr.mxu0 0.0
        %2920 = vmatpush1.msra.mxu0 0.0
        %2921 = vmatprep.subr.mxu0 0.0
        %2922 = vmatpush1.msra.mxu0 0.0
        %2923 = vmatprep.subr.mxu0 0.0
        %2924 = vmatpush1.msra.mxu0 0.0
        %2925 = vmatprep.subr.mxu0 0.0
        %2926 = vmatpush1.msra.mxu0 %v2888
        %2927 = vmatprep.subr.mxu0 0.0
        %2928 = vmatpush1.msra.mxu0 %v2886
        %2929 = vmatprep.subr.mxu0 0.0
        %2930 = vmatpush2.msra.mxu0 0.0
        %2931 = vmatprep.subr.mxu0 0.0
        %2932 = vmatpush2.msra.mxu0 0.0
        %2933 = vmatprep.subr.mxu0 0.0
        %2934 = vmatpush2.msra.mxu0 0.0
        %2935 = vmatprep.subr.mxu0 0.0
        %2936 = vmatpush2.msra.mxu0 0.0
        %2937 = vmatprep.subr.mxu0 0.0
        %2938 = vmatpush2.msra.mxu0 0.0
        %2939 = vmatprep.subr.mxu0 0.0
        %2940 = vmatpush2.msra.mxu0 0.0
        %2941 = vmatprep.subr.mxu0 0.0
        %2942 = vmatpush2.msra.mxu0 0.0
        %2943 = vmatprep.subr.mxu0 0.0
        %2944 = vmatpush2.msra.mxu0 0.0
        %2945 = vmatprep.subr.mxu0 0.0
        %2946 = vmatpush2.msra.mxu0 0.0
        %2947 = vmatprep.subr.mxu0 0.0
        %2948 = vmatpush2.msra.mxu0 0.0
        %2949 = vmatprep.subr.mxu0 0.0
        %2950 = vmatpush2.msra.mxu0 0.0
        %2951 = vmatprep.subr.mxu0 0.0
        %2952 = vmatpush2.msra.mxu0 0.0
        %2953 = vmatprep.subr.mxu0 0.0
        %2954 = vmatpush2.msra.mxu0 0.0
        %2955 = vmatprep.subr.mxu0 0.0
        %2956 = vmatpush2.msra.mxu0 0.0
        %2957 = vmatprep.subr.mxu0 0.0
        %2958 = vmatpush2.msra.mxu0 0.0
        %2959 = vmatprep.subr.mxu0 0.0
        %2960 = vmatpush2.msra.mxu0 0.0
        %2961 = vmatprep.mubr.f32.mxu0 0.0
        %2962 = vmatmul.mubr.f32.gmra.mxu0 %v2892
        %v2963 = vpop.f32.mrf.mxu0
        %v2964 = vadd.f32 0.0, %v2963
        %v2965 = vpop.f32.mrf.mxu0
        %2966 = vmatprep.mubr.f32.mxu0 0.0
        %2967 = vmatmul.mubr.f32.gmra.mxu0 %v2895
        %v2968 = vpop.f32.mrf.mxu0
        %v2969 = vadd.f32 0.0, %v2968
        %v2970 = vpop.f32.mrf.mxu0
        %2971 = vdwg.mxu0
        %2972 = vrot.lane.b32.xlu0 %v679, 96
        %v2973 = vpop.permute.xlu0 %2972
        %2974 = vrot.lane.b32.xlu0 %v684, 96
        %v2975 = vpop.permute.xlu0 %2974
        %v2979 = vsel %vm699, %v2794, 0
        %v2982 = vsel %vm699, %v2795, 0
        %2984 = vmatprep.subr.mxu0 0.0
        %2985 = vmatpush1.msra.mxu0 0.0
        %2986 = vmatprep.subr.mxu0 0.0
        %2987 = vmatpush1.msra.mxu0 0.0
        %2988 = vmatprep.subr.mxu0 0.0
        %2989 = vmatpush1.msra.mxu0 0.0
        %2990 = vmatprep.subr.mxu0 0.0
        %2991 = vmatpush1.msra.mxu0 0.0
        %2992 = vmatprep.subr.mxu0 0.0
        %2993 = vmatpush1.msra.mxu0 0.0
        %2994 = vmatprep.subr.mxu0 0.0
        %2995 = vmatpush1.msra.mxu0 0.0
        %2996 = vmatprep.subr.mxu0 0.0
        %2997 = vmatpush1.msra.mxu0 0.0
        %2998 = vmatprep.subr.mxu0 0.0
        %2999 = vmatpush1.msra.mxu0 0.0
        %3000 = vmatprep.subr.mxu0 0.0
        %3001 = vmatpush1.msra.mxu0 0.0
        %3002 = vmatprep.subr.mxu0 0.0
        %3003 = vmatpush1.msra.mxu0 0.0
        %3004 = vmatprep.subr.mxu0 0.0
        %3005 = vmatpush1.msra.mxu0 0.0
        %3006 = vmatprep.subr.mxu0 0.0
        %3007 = vmatpush1.msra.mxu0 0.0
        %3008 = vmatprep.subr.mxu0 0.0
        %3009 = vmatpush1.msra.mxu0 0.0
        %3010 = vmatprep.subr.mxu0 0.0
        %3011 = vmatpush1.msra.mxu0 0.0
        %3012 = vmatprep.subr.mxu0 0.0
        %3013 = vmatpush1.msra.mxu0 %v2975
        %3014 = vmatprep.subr.mxu0 0.0
        %3015 = vmatpush1.msra.mxu0 %v2973
        %3016 = vmatprep.subr.mxu0 0.0
        %3017 = vmatpush2.msra.mxu0 0.0
        %3018 = vmatprep.subr.mxu0 0.0
        %3019 = vmatpush2.msra.mxu0 0.0
        %3020 = vmatprep.subr.mxu0 0.0
        %3021 = vmatpush2.msra.mxu0 0.0
        %3022 = vmatprep.subr.mxu0 0.0
        %3023 = vmatpush2.msra.mxu0 0.0
        %3024 = vmatprep.subr.mxu0 0.0
        %3025 = vmatpush2.msra.mxu0 0.0
        %3026 = vmatprep.subr.mxu0 0.0
        %3027 = vmatpush2.msra.mxu0 0.0
        %3028 = vmatprep.subr.mxu0 0.0
        %3029 = vmatpush2.msra.mxu0 0.0
        %3030 = vmatprep.subr.mxu0 0.0
        %3031 = vmatpush2.msra.mxu0 0.0
        %3032 = vmatprep.subr.mxu0 0.0
        %3033 = vmatpush2.msra.mxu0 0.0
        %3034 = vmatprep.subr.mxu0 0.0
        %3035 = vmatpush2.msra.mxu0 0.0
        %3036 = vmatprep.subr.mxu0 0.0
        %3037 = vmatpush2.msra.mxu0 0.0
        %3038 = vmatprep.subr.mxu0 0.0
        %3039 = vmatpush2.msra.mxu0 0.0
        %3040 = vmatprep.subr.mxu0 0.0
        %3041 = vmatpush2.msra.mxu0 0.0
        %3042 = vmatprep.subr.mxu0 0.0
        %3043 = vmatpush2.msra.mxu0 0.0
        %3044 = vmatprep.subr.mxu0 0.0
        %3045 = vmatpush2.msra.mxu0 0.0
        %3046 = vmatprep.subr.mxu0 0.0
        %3047 = vmatpush2.msra.mxu0 0.0
        %3048 = vmatprep.mubr.f32.mxu0 0.0
        %3049 = vmatmul.mubr.f32.gmra.mxu0 %v2979
        %v3050 = vpop.f32.mrf.mxu0
        %v3051 = vadd.f32 0.0, %v3050
        %v3052 = vpop.f32.mrf.mxu0
        %3053 = vmatprep.mubr.f32.mxu0 0.0
        %3054 = vmatmul.mubr.f32.gmra.mxu0 %v2982
        %v3055 = vpop.f32.mrf.mxu0
        %v3056 = vadd.f32 0.0, %v3055
        %v3057 = vpop.f32.mrf.mxu0
        %3058 = vdwg.mxu0
        %3059 = vrot.lane.b32.xlu0 %v689, 96
        %v3060 = vpop.permute.xlu0 %3059
        %3061 = vrot.lane.b32.xlu0 %v694, 96
        %v3062 = vpop.permute.xlu0 %3061
        %v3066 = vsel %vm699, %v2796, 0
        %v3069 = vsel %vm699, %v2797, 0
        %3071 = vmatprep.subr.mxu0 0.0
        %3072 = vmatpush1.msra.mxu0 0.0
        %3073 = vmatprep.subr.mxu0 0.0
        %3074 = vmatpush1.msra.mxu0 0.0
        %3075 = vmatprep.subr.mxu0 0.0
        %3076 = vmatpush1.msra.mxu0 0.0
        %3077 = vmatprep.subr.mxu0 0.0
        %3078 = vmatpush1.msra.mxu0 0.0
        %3079 = vmatprep.subr.mxu0 0.0
        %3080 = vmatpush1.msra.mxu0 0.0
        %3081 = vmatprep.subr.mxu0 0.0
        %3082 = vmatpush1.msra.mxu0 0.0
        %3083 = vmatprep.subr.mxu0 0.0
        %3084 = vmatpush1.msra.mxu0 0.0
        %3085 = vmatprep.subr.mxu0 0.0
        %3086 = vmatpush1.msra.mxu0 0.0
        %3087 = vmatprep.subr.mxu0 0.0
        %3088 = vmatpush1.msra.mxu0 0.0
        %3089 = vmatprep.subr.mxu0 0.0
        %3090 = vmatpush1.msra.mxu0 0.0
        %3091 = vmatprep.subr.mxu0 0.0
        %3092 = vmatpush1.msra.mxu0 0.0
        %3093 = vmatprep.subr.mxu0 0.0
        %3094 = vmatpush1.msra.mxu0 0.0
        %3095 = vmatprep.subr.mxu0 0.0
        %3096 = vmatpush1.msra.mxu0 0.0
        %3097 = vmatprep.subr.mxu0 0.0
        %3098 = vmatpush1.msra.mxu0 0.0
        %3099 = vmatprep.subr.mxu0 0.0
        %3100 = vmatpush1.msra.mxu0 %v3062
        %3101 = vmatprep.subr.mxu0 0.0
        %3102 = vmatpush1.msra.mxu0 %v3060
        %3103 = vmatprep.subr.mxu0 0.0
        %3104 = vmatpush2.msra.mxu0 0.0
        %3105 = vmatprep.subr.mxu0 0.0
        %3106 = vmatpush2.msra.mxu0 0.0
        %3107 = vmatprep.subr.mxu0 0.0
        %3108 = vmatpush2.msra.mxu0 0.0
        %3109 = vmatprep.subr.mxu0 0.0
        %3110 = vmatpush2.msra.mxu0 0.0
        %3111 = vmatprep.subr.mxu0 0.0
        %3112 = vmatpush2.msra.mxu0 0.0
        %3113 = vmatprep.subr.mxu0 0.0
        %3114 = vmatpush2.msra.mxu0 0.0
        %3115 = vmatprep.subr.mxu0 0.0
        %3116 = vmatpush2.msra.mxu0 0.0
        %3117 = vmatprep.subr.mxu0 0.0
        %3118 = vmatpush2.msra.mxu0 0.0
        %3119 = vmatprep.subr.mxu0 0.0
        %3120 = vmatpush2.msra.mxu0 0.0
        %3121 = vmatprep.subr.mxu0 0.0
        %3122 = vmatpush2.msra.mxu0 0.0
        %3123 = vmatprep.subr.mxu0 0.0
        %3124 = vmatpush2.msra.mxu0 0.0
        %3125 = vmatprep.subr.mxu0 0.0
        %3126 = vmatpush2.msra.mxu0 0.0
        %3127 = vmatprep.subr.mxu0 0.0
        %3128 = vmatpush2.msra.mxu0 0.0
        %3129 = vmatprep.subr.mxu0 0.0
        %3130 = vmatpush2.msra.mxu0 0.0
        %3131 = vmatprep.subr.mxu0 0.0
        %3132 = vmatpush2.msra.mxu0 0.0
        %3133 = vmatprep.subr.mxu0 0.0
        %3134 = vmatpush2.msra.mxu0 0.0
        %3135 = vmatprep.mubr.f32.mxu0 0.0
        %3136 = vmatmul.mubr.f32.gmra.mxu0 %v3066
        %v3137 = vpop.f32.mrf.mxu0
        %v3138 = vadd.f32 0.0, %v3137
        %v3139 = vpop.f32.mrf.mxu0
        %3140 = vmatprep.mubr.f32.mxu0 0.0
        %3141 = vmatmul.mubr.f32.gmra.mxu0 %v3069
        %v3142 = vpop.f32.mrf.mxu0
        %v3143 = vadd.f32 0.0, %v3142
        %v3144 = vpop.f32.mrf.mxu0
        %3145 = vdwg.mxu0
        %s3146 = scalar_lea.vmem %s4, 48
        %v3147 = vld [vmem:[%s3146] sm:$0xff]
        %v3148 = vld [vmem:[%s3146 + $0x8] sm:$0xff]
        %3149 = vrot.lane.b32.xlu0 %v471, 80
        %v3150 = vpop.permute.xlu0 %3149
        %3151 = vrot.lane.b32.xlu0 %v472, 80
        %v3152 = vpop.permute.xlu0 %3151
        %3153 = vrot.lane.b32.xlu0 %v550, 80
        %v3154 = vpop.permute.xlu0 %3153
        %3155 = vrot.lane.b32.xlu0 %v555, 80
        %v3156 = vpop.permute.xlu0 %3155
        %v3157 = vsel %vm699, %v3150, 0
        %v3159 = vsel %vm699, %v3152, 0
        %v3161 = vsel %vm699, %v3154, 0
        %v3163 = vsel %vm699, %v3156, 0
        %3165 = vmatprep.subr.mxu0 0.0
        %3166 = vmatpush1.xpose.msra.mxu0 0.0
        %3167 = vmatprep.subr.mxu0 0.0
        %3168 = vmatpush1.xpose.msra.mxu0 0.0
        %3169 = vmatprep.subr.mxu0 0.0
        %3170 = vmatpush1.xpose.msra.mxu0 0.0
        %3171 = vmatprep.subr.mxu0 0.0
        %3172 = vmatpush1.xpose.msra.mxu0 0.0
        %3173 = vmatprep.subr.mxu0 0.0
        %3174 = vmatpush1.xpose.msra.mxu0 0.0
        %3175 = vmatprep.subr.mxu0 0.0
        %3176 = vmatpush1.xpose.msra.mxu0 0.0
        %3177 = vmatprep.subr.mxu0 0.0
        %3178 = vmatpush1.xpose.msra.mxu0 0.0
        %3179 = vmatprep.subr.mxu0 0.0
        %3180 = vmatpush1.xpose.msra.mxu0 0.0
        %3181 = vmatprep.subr.mxu0 0.0
        %3182 = vmatpush1.xpose.msra.mxu0 0.0
        %3183 = vmatprep.subr.mxu0 0.0
        %3184 = vmatpush1.xpose.msra.mxu0 0.0
        %3185 = vmatprep.subr.mxu0 0.0
        %3186 = vmatpush1.xpose.msra.mxu0 0.0
        %3187 = vmatprep.subr.mxu0 0.0
        %3188 = vmatpush1.xpose.msra.mxu0 0.0
        %3189 = vmatprep.subr.mxu0 0.0
        %3190 = vmatpush1.xpose.msra.mxu0 0.0
        %3191 = vmatprep.subr.mxu0 0.0
        %3192 = vmatpush1.xpose.msra.mxu0 0.0
        %3193 = vmatprep.subr.mxu0 0.0
        %3194 = vmatpush1.xpose.msra.mxu0 %v3163
        %3195 = vmatprep.subr.mxu0 0.0
        %3196 = vmatpush1.xpose.msra.mxu0 %v3161
        %3197 = vmatprep.subr.mxu0 0.0
        %3198 = vmatpush2.xpose.msra.mxu0 0.0
        %3199 = vmatprep.subr.mxu0 0.0
        %3200 = vmatpush2.xpose.msra.mxu0 0.0
        %3201 = vmatprep.subr.mxu0 0.0
        %3202 = vmatpush2.xpose.msra.mxu0 0.0
        %3203 = vmatprep.subr.mxu0 0.0
        %3204 = vmatpush2.xpose.msra.mxu0 0.0
        %3205 = vmatprep.subr.mxu0 0.0
        %3206 = vmatpush2.xpose.msra.mxu0 0.0
        %3207 = vmatprep.subr.mxu0 0.0
        %3208 = vmatpush2.xpose.msra.mxu0 0.0
        %3209 = vmatprep.subr.mxu0 0.0
        %3210 = vmatpush2.xpose.msra.mxu0 0.0
        %3211 = vmatprep.subr.mxu0 0.0
        %3212 = vmatpush2.xpose.msra.mxu0 0.0
        %3213 = vmatprep.subr.mxu0 0.0
        %3214 = vmatpush2.xpose.msra.mxu0 0.0
        %3215 = vmatprep.subr.mxu0 0.0
        %3216 = vmatpush2.xpose.msra.mxu0 0.0
        %3217 = vmatprep.subr.mxu0 0.0
        %3218 = vmatpush2.xpose.msra.mxu0 0.0
        %3219 = vmatprep.subr.mxu0 0.0
        %3220 = vmatpush2.xpose.msra.mxu0 0.0
        %3221 = vmatprep.subr.mxu0 0.0
        %3222 = vmatpush2.xpose.msra.mxu0 0.0
        %3223 = vmatprep.subr.mxu0 0.0
        %3224 = vmatpush2.xpose.msra.mxu0 0.0
        %3225 = vmatprep.subr.mxu0 0.0
        %3226 = vmatpush2.xpose.msra.mxu0 0.0
        %3227 = vmatprep.subr.mxu0 0.0
        %3228 = vmatpush2.xpose.msra.mxu0 0.0
        %3229 = vmatprep.mubr.f32.mxu0 0.0
        %3230 = vmatmul.mubr.f32.gmra.mxu0 %v3157
        %v3231 = vpop.f32.mrf.mxu0
        %v3232 = vadd.f32 %v3147, %v3231
        %v3233 = vpop.f32.mrf.mxu0
        %3234 = vmatprep.mubr.f32.mxu0 0.0
        %3235 = vmatmul.mubr.f32.gmra.mxu0 %v3159
        %v3236 = vpop.f32.mrf.mxu0
        %v3237 = vadd.f32 %v3148, %v3236
        %v3238 = vpop.f32.mrf.mxu0
        %3239 = vdwg.mxu0
        %3240 = vrot.lane.b32.xlu0 %v473, 80
        %v3241 = vpop.permute.xlu0 %3240
        %3242 = vrot.lane.b32.xlu0 %v474, 80
        %v3243 = vpop.permute.xlu0 %3242
        %3244 = vrot.lane.b32.xlu0 %v560, 80
        %v3245 = vpop.permute.xlu0 %3244
        %3246 = vrot.lane.b32.xlu0 %v565, 80
        %v3247 = vpop.permute.xlu0 %3246
        %v3248 = vsel %vm699, %v3241, 0
        %v3250 = vsel %vm699, %v3243, 0
        %v3252 = vsel %vm699, %v3245, 0
        %v3254 = vsel %vm699, %v3247, 0
        %3256 = vmatprep.subr.mxu0 0.0
        %3257 = vmatpush1.xpose.msra.mxu0 0.0
        %3258 = vmatprep.subr.mxu0 0.0
        %3259 = vmatpush1.xpose.msra.mxu0 0.0
        %3260 = vmatprep.subr.mxu0 0.0
        %3261 = vmatpush1.xpose.msra.mxu0 0.0
        %3262 = vmatprep.subr.mxu0 0.0
        %3263 = vmatpush1.xpose.msra.mxu0 0.0
        %3264 = vmatprep.subr.mxu0 0.0
        %3265 = vmatpush1.xpose.msra.mxu0 0.0
        %3266 = vmatprep.subr.mxu0 0.0
        %3267 = vmatpush1.xpose.msra.mxu0 0.0
        %3268 = vmatprep.subr.mxu0 0.0
        %3269 = vmatpush1.xpose.msra.mxu0 0.0
        %3270 = vmatprep.subr.mxu0 0.0
        %3271 = vmatpush1.xpose.msra.mxu0 0.0
        %3272 = vmatprep.subr.mxu0 0.0
        %3273 = vmatpush1.xpose.msra.mxu0 0.0
        %3274 = vmatprep.subr.mxu0 0.0
        %3275 = vmatpush1.xpose.msra.mxu0 0.0
        %3276 = vmatprep.subr.mxu0 0.0
        %3277 = vmatpush1.xpose.msra.mxu0 0.0
        %3278 = vmatprep.subr.mxu0 0.0
        %3279 = vmatpush1.xpose.msra.mxu0 0.0
        %3280 = vmatprep.subr.mxu0 0.0
        %3281 = vmatpush1.xpose.msra.mxu0 0.0
        %3282 = vmatprep.subr.mxu0 0.0
        %3283 = vmatpush1.xpose.msra.mxu0 0.0
        %3284 = vmatprep.subr.mxu0 0.0
        %3285 = vmatpush1.xpose.msra.mxu0 %v3254
        %3286 = vmatprep.subr.mxu0 0.0
        %3287 = vmatpush1.xpose.msra.mxu0 %v3252
        %3288 = vmatprep.subr.mxu0 0.0
        %3289 = vmatpush2.xpose.msra.mxu0 0.0
        %3290 = vmatprep.subr.mxu0 0.0
        %3291 = vmatpush2.xpose.msra.mxu0 0.0
        %3292 = vmatprep.subr.mxu0 0.0
        %3293 = vmatpush2.xpose.msra.mxu0 0.0
        %3294 = vmatprep.subr.mxu0 0.0
        %3295 = vmatpush2.xpose.msra.mxu0 0.0
        %3296 = vmatprep.subr.mxu0 0.0
        %3297 = vmatpush2.xpose.msra.mxu0 0.0
        %3298 = vmatprep.subr.mxu0 0.0
        %3299 = vmatpush2.xpose.msra.mxu0 0.0
        %3300 = vmatprep.subr.mxu0 0.0
        %3301 = vmatpush2.xpose.msra.mxu0 0.0
        %3302 = vmatprep.subr.mxu0 0.0
        %3303 = vmatpush2.xpose.msra.mxu0 0.0
        %3304 = vmatprep.subr.mxu0 0.0
        %3305 = vmatpush2.xpose.msra.mxu0 0.0
        %3306 = vmatprep.subr.mxu0 0.0
        %3307 = vmatpush2.xpose.msra.mxu0 0.0
        %3308 = vmatprep.subr.mxu0 0.0
        %3309 = vmatpush2.xpose.msra.mxu0 0.0
        %3310 = vmatprep.subr.mxu0 0.0
        %3311 = vmatpush2.xpose.msra.mxu0 0.0
        %3312 = vmatprep.subr.mxu0 0.0
        %3313 = vmatpush2.xpose.msra.mxu0 0.0
        %3314 = vmatprep.subr.mxu0 0.0
        %3315 = vmatpush2.xpose.msra.mxu0 0.0
        %3316 = vmatprep.subr.mxu0 0.0
        %3317 = vmatpush2.xpose.msra.mxu0 0.0
        %3318 = vmatprep.subr.mxu0 0.0
        %3319 = vmatpush2.xpose.msra.mxu0 0.0
        %3320 = vmatprep.mubr.f32.mxu0 0.0
        %3321 = vmatmul.mubr.f32.gmra.mxu0 %v3248
        %v3322 = vpop.f32.mrf.mxu0
        %v3323 = vadd.f32 %v3147, %v3322
        %v3324 = vpop.f32.mrf.mxu0
        %3325 = vmatprep.mubr.f32.mxu0 0.0
        %3326 = vmatmul.mubr.f32.gmra.mxu0 %v3250
        %v3327 = vpop.f32.mrf.mxu0
        %v3328 = vadd.f32 %v3148, %v3327
        %v3329 = vpop.f32.mrf.mxu0
        %3330 = vdwg.mxu0
        %3331 = vrot.lane.b32.xlu0 %v475, 80
        %v3332 = vpop.permute.xlu0 %3331
        %3333 = vrot.lane.b32.xlu0 %v476, 80
        %v3334 = vpop.permute.xlu0 %3333
        %3335 = vrot.lane.b32.xlu0 %v570, 80
        %v3336 = vpop.permute.xlu0 %3335
        %3337 = vrot.lane.b32.xlu0 %v575, 80
        %v3338 = vpop.permute.xlu0 %3337
        %v3339 = vsel %vm699, %v3332, 0
        %v3341 = vsel %vm699, %v3334, 0
        %v3343 = vsel %vm699, %v3336, 0
        %v3345 = vsel %vm699, %v3338, 0
        %3347 = vmatprep.subr.mxu0 0.0
        %3348 = vmatpush1.xpose.msra.mxu0 0.0
        %3349 = vmatprep.subr.mxu0 0.0
        %3350 = vmatpush1.xpose.msra.mxu0 0.0
        %3351 = vmatprep.subr.mxu0 0.0
        %3352 = vmatpush1.xpose.msra.mxu0 0.0
        %3353 = vmatprep.subr.mxu0 0.0
        %3354 = vmatpush1.xpose.msra.mxu0 0.0
        %3355 = vmatprep.subr.mxu0 0.0
        %3356 = vmatpush1.xpose.msra.mxu0 0.0
        %3357 = vmatprep.subr.mxu0 0.0
        %3358 = vmatpush1.xpose.msra.mxu0 0.0
        %3359 = vmatprep.subr.mxu0 0.0
        %3360 = vmatpush1.xpose.msra.mxu0 0.0
        %3361 = vmatprep.subr.mxu0 0.0
        %3362 = vmatpush1.xpose.msra.mxu0 0.0
        %3363 = vmatprep.subr.mxu0 0.0
        %3364 = vmatpush1.xpose.msra.mxu0 0.0
        %3365 = vmatprep.subr.mxu0 0.0
        %3366 = vmatpush1.xpose.msra.mxu0 0.0
        %3367 = vmatprep.subr.mxu0 0.0
        %3368 = vmatpush1.xpose.msra.mxu0 0.0
        %3369 = vmatprep.subr.mxu0 0.0
        %3370 = vmatpush1.xpose.msra.mxu0 0.0
        %3371 = vmatprep.subr.mxu0 0.0
        %3372 = vmatpush1.xpose.msra.mxu0 0.0
        %3373 = vmatprep.subr.mxu0 0.0
        %3374 = vmatpush1.xpose.msra.mxu0 0.0
        %3375 = vmatprep.subr.mxu0 0.0
        %3376 = vmatpush1.xpose.msra.mxu0 %v3345
        %3377 = vmatprep.subr.mxu0 0.0
        %3378 = vmatpush1.xpose.msra.mxu0 %v3343
        %3379 = vmatprep.subr.mxu0 0.0
        %3380 = vmatpush2.xpose.msra.mxu0 0.0
        %3381 = vmatprep.subr.mxu0 0.0
        %3382 = vmatpush2.xpose.msra.mxu0 0.0
        %3383 = vmatprep.subr.mxu0 0.0
        %3384 = vmatpush2.xpose.msra.mxu0 0.0
        %3385 = vmatprep.subr.mxu0 0.0
        %3386 = vmatpush2.xpose.msra.mxu0 0.0
        %3387 = vmatprep.subr.mxu0 0.0
        %3388 = vmatpush2.xpose.msra.mxu0 0.0
        %3389 = vmatprep.subr.mxu0 0.0
        %3390 = vmatpush2.xpose.msra.mxu0 0.0
        %3391 = vmatprep.subr.mxu0 0.0
        %3392 = vmatpush2.xpose.msra.mxu0 0.0
        %3393 = vmatprep.subr.mxu0 0.0
        %3394 = vmatpush2.xpose.msra.mxu0 0.0
        %3395 = vmatprep.subr.mxu0 0.0
        %3396 = vmatpush2.xpose.msra.mxu0 0.0
        %3397 = vmatprep.subr.mxu0 0.0
        %3398 = vmatpush2.xpose.msra.mxu0 0.0
        %3399 = vmatprep.subr.mxu0 0.0
        %3400 = vmatpush2.xpose.msra.mxu0 0.0
        %3401 = vmatprep.subr.mxu0 0.0
        %3402 = vmatpush2.xpose.msra.mxu0 0.0
        %3403 = vmatprep.subr.mxu0 0.0
        %3404 = vmatpush2.xpose.msra.mxu0 0.0
        %3405 = vmatprep.subr.mxu0 0.0
        %3406 = vmatpush2.xpose.msra.mxu0 0.0
        %3407 = vmatprep.subr.mxu0 0.0
        %3408 = vmatpush2.xpose.msra.mxu0 0.0
        %3409 = vmatprep.subr.mxu0 0.0
        %3410 = vmatpush2.xpose.msra.mxu0 0.0
        %3411 = vmatprep.mubr.f32.mxu0 0.0
        %3412 = vmatmul.mubr.f32.gmra.mxu0 %v3339
        %v3413 = vpop.f32.mrf.mxu0
        %v3414 = vadd.f32 %v3147, %v3413
        %v3415 = vpop.f32.mrf.mxu0
        %3416 = vmatprep.mubr.f32.mxu0 0.0
        %3417 = vmatmul.mubr.f32.gmra.mxu0 %v3341
        %v3418 = vpop.f32.mrf.mxu0
        %v3419 = vadd.f32 %v3148, %v3418
        %v3420 = vpop.f32.mrf.mxu0
        %3421 = vdwg.mxu0
        %3422 = vrot.lane.b32.xlu0 %v477, 80
        %v3423 = vpop.permute.xlu0 %3422
        %3424 = vrot.lane.b32.xlu0 %v478, 80
        %v3425 = vpop.permute.xlu0 %3424
        %3426 = vrot.lane.b32.xlu0 %v580, 80
        %v3427 = vpop.permute.xlu0 %3426
        %3428 = vrot.lane.b32.xlu0 %v585, 80
        %v3429 = vpop.permute.xlu0 %3428
        %v3430 = vsel %vm699, %v3423, 0
        %v3432 = vsel %vm699, %v3425, 0
        %v3434 = vsel %vm699, %v3427, 0
        %v3436 = vsel %vm699, %v3429, 0
        %3438 = vmatprep.subr.mxu0 0.0
        %3439 = vmatpush1.xpose.msra.mxu0 0.0
        %3440 = vmatprep.subr.mxu0 0.0
        %3441 = vmatpush1.xpose.msra.mxu0 0.0
        %3442 = vmatprep.subr.mxu0 0.0
        %3443 = vmatpush1.xpose.msra.mxu0 0.0
        %3444 = vmatprep.subr.mxu0 0.0
        %3445 = vmatpush1.xpose.msra.mxu0 0.0
        %3446 = vmatprep.subr.mxu0 0.0
        %3447 = vmatpush1.xpose.msra.mxu0 0.0
        %3448 = vmatprep.subr.mxu0 0.0
        %3449 = vmatpush1.xpose.msra.mxu0 0.0
        %3450 = vmatprep.subr.mxu0 0.0
        %3451 = vmatpush1.xpose.msra.mxu0 0.0
        %3452 = vmatprep.subr.mxu0 0.0
        %3453 = vmatpush1.xpose.msra.mxu0 0.0
        %3454 = vmatprep.subr.mxu0 0.0
        %3455 = vmatpush1.xpose.msra.mxu0 0.0
        %3456 = vmatprep.subr.mxu0 0.0
        %3457 = vmatpush1.xpose.msra.mxu0 0.0
        %3458 = vmatprep.subr.mxu0 0.0
        %3459 = vmatpush1.xpose.msra.mxu0 0.0
        %3460 = vmatprep.subr.mxu0 0.0
        %3461 = vmatpush1.xpose.msra.mxu0 0.0
        %3462 = vmatprep.subr.mxu0 0.0
        %3463 = vmatpush1.xpose.msra.mxu0 0.0
        %3464 = vmatprep.subr.mxu0 0.0
        %3465 = vmatpush1.xpose.msra.mxu0 0.0
        %3466 = vmatprep.subr.mxu0 0.0
        %3467 = vmatpush1.xpose.msra.mxu0 %v3436
        %3468 = vmatprep.subr.mxu0 0.0
        %3469 = vmatpush1.xpose.msra.mxu0 %v3434
        %3470 = vmatprep.subr.mxu0 0.0
        %3471 = vmatpush2.xpose.msra.mxu0 0.0
        %3472 = vmatprep.subr.mxu0 0.0
        %3473 = vmatpush2.xpose.msra.mxu0 0.0
        %3474 = vmatprep.subr.mxu0 0.0
        %3475 = vmatpush2.xpose.msra.mxu0 0.0
        %3476 = vmatprep.subr.mxu0 0.0
        %3477 = vmatpush2.xpose.msra.mxu0 0.0
        %3478 = vmatprep.subr.mxu0 0.0
        %3479 = vmatpush2.xpose.msra.mxu0 0.0
        %3480 = vmatprep.subr.mxu0 0.0
        %3481 = vmatpush2.xpose.msra.mxu0 0.0
        %3482 = vmatprep.subr.mxu0 0.0
        %3483 = vmatpush2.xpose.msra.mxu0 0.0
        %3484 = vmatprep.subr.mxu0 0.0
        %3485 = vmatpush2.xpose.msra.mxu0 0.0
        %3486 = vmatprep.subr.mxu0 0.0
        %3487 = vmatpush2.xpose.msra.mxu0 0.0
        %3488 = vmatprep.subr.mxu0 0.0
        %3489 = vmatpush2.xpose.msra.mxu0 0.0
        %3490 = vmatprep.subr.mxu0 0.0
        %3491 = vmatpush2.xpose.msra.mxu0 0.0
        %3492 = vmatprep.subr.mxu0 0.0
        %3493 = vmatpush2.xpose.msra.mxu0 0.0
        %3494 = vmatprep.subr.mxu0 0.0
        %3495 = vmatpush2.xpose.msra.mxu0 0.0
        %3496 = vmatprep.subr.mxu0 0.0
        %3497 = vmatpush2.xpose.msra.mxu0 0.0
        %3498 = vmatprep.subr.mxu0 0.0
        %3499 = vmatpush2.xpose.msra.mxu0 0.0
        %3500 = vmatprep.subr.mxu0 0.0
        %3501 = vmatpush2.xpose.msra.mxu0 0.0
        %3502 = vmatprep.mubr.f32.mxu0 0.0
        %3503 = vmatmul.mubr.f32.gmra.mxu0 %v3430
        %v3504 = vpop.f32.mrf.mxu0
        %v3505 = vadd.f32 %v3147, %v3504
        %v3506 = vpop.f32.mrf.mxu0
        %3507 = vmatprep.mubr.f32.mxu0 0.0
        %3508 = vmatmul.mubr.f32.gmra.mxu0 %v3432
        %v3509 = vpop.f32.mrf.mxu0
        %v3510 = vadd.f32 %v3148, %v3509
        %v3511 = vpop.f32.mrf.mxu0
        %3512 = vdwg.mxu0
        %v3513 = vsel %vm699, %v3232, -inf
        %3514 = vmax.xlane.f32.xlu0 %v3513
        %v3515 = vpop.xlane.xlu0 %3514
        %v3516 = vsel %vm699, %v3237, -inf
        %3517 = vmax.xlane.f32.xlu0 %v3516
        %v3518 = vpop.xlane.xlu0 %3517
        %v3519 = vsel %vm699, %v3323, -inf
        %3520 = vmax.xlane.f32.xlu0 %v3519
        %v3521 = vpop.xlane.xlu0 %3520
        %v3522 = vsel %vm699, %v3328, -inf
        %3523 = vmax.xlane.f32.xlu0 %v3522
        %v3524 = vpop.xlane.xlu0 %3523
        %v3525 = vsel %vm699, %v3414, -inf
        %3526 = vmax.xlane.f32.xlu0 %v3525
        %v3527 = vpop.xlane.xlu0 %3526
        %v3528 = vsel %vm699, %v3419, -inf
        %3529 = vmax.xlane.f32.xlu0 %v3528
        %v3530 = vpop.xlane.xlu0 %3529
        %v3531 = vsel %vm699, %v3505, -inf
        %3532 = vmax.xlane.f32.xlu0 %v3531
        %v3533 = vpop.xlane.xlu0 %3532
        %v3534 = vsel %vm699, %v3510, -inf
        %3535 = vmax.xlane.f32.xlu0 %v3534
        %v3536 = vpop.xlane.xlu0 %3535
        %v3537 = vsub.f32 %v3232, %v3515
        %v3538 = vsub.f32 %v3237, %v3518
        %v3539 = vsub.f32 %v3323, %v3521
        %v3540 = vsub.f32 %v3328, %v3524
        %v3541 = vsub.f32 %v3414, %v3527
        %v3542 = vsub.f32 %v3419, %v3530
        %v3543 = vsub.f32 %v3505, %v3533
        %v3544 = vsub.f32 %v3510, %v3536
        %v3545 = vmul.f32 %v3537, 1.442695
        %v3546 = vpow.pop %v3545
        %v3547 = vmul.f32 %v3538, 1.442695
        %v3548 = vpow.pop %v3547
        %v3549 = vmul.f32 %v3539, 1.442695
        %v3550 = vpow.pop %v3549
        %v3551 = vmul.f32 %v3540, 1.442695
        %v3552 = vpow.pop %v3551
        %v3553 = vmul.f32 %v3541, 1.442695
        %v3554 = vpow.pop %v3553
        %v3555 = vmul.f32 %v3542, 1.442695
        %v3556 = vpow.pop %v3555
        %v3557 = vmul.f32 %v3543, 1.442695
        %v3558 = vpow.pop %v3557
        %v3559 = vmul.f32 %v3544, 1.442695
        %v3560 = vpow.pop %v3559
        %v3561 = vsel %vm699, %v3546, 0.0
        %3562 = vadd.xlane.f32.xlu0 %v3561
        %v3563 = vpop.xlane.xlu0 %3562
        %v3564 = vsel %vm699, %v3548, 0.0
        %3565 = vadd.xlane.f32.xlu0 %v3564
        %v3566 = vpop.xlane.xlu0 %3565
        %v3567 = vsel %vm699, %v3550, 0.0
        %3568 = vadd.xlane.f32.xlu0 %v3567
        %v3569 = vpop.xlane.xlu0 %3568
        %v3570 = vsel %vm699, %v3552, 0.0
        %3571 = vadd.xlane.f32.xlu0 %v3570
        %v3572 = vpop.xlane.xlu0 %3571
        %v3573 = vsel %vm699, %v3554, 0.0
        %3574 = vadd.xlane.f32.xlu0 %v3573
        %v3575 = vpop.xlane.xlu0 %3574
        %v3576 = vsel %vm699, %v3556, 0.0
        %3577 = vadd.xlane.f32.xlu0 %v3576
        %v3578 = vpop.xlane.xlu0 %3577
        %v3579 = vsel %vm699, %v3558, 0.0
        %3580 = vadd.xlane.f32.xlu0 %v3579
        %v3581 = vpop.xlane.xlu0 %3580
        %v3582 = vsel %vm699, %v3560, 0.0
        %3583 = vadd.xlane.f32.xlu0 %v3582
        %v3584 = vpop.xlane.xlu0 %3583
        %v3585 = vrcp.pop %v3563
        %v3586 = vrcp.pop %v3566
        %v3587 = vrcp.pop %v3569
        %v3588 = vrcp.pop %v3572
        %v3589 = vrcp.pop %v3575
        %v3590 = vrcp.pop %v3578
        %v3591 = vrcp.pop %v3581
        %v3592 = vrcp.pop %v3584
        %v3593 = vmul.f32 %v3563, %v3585
        %v3594 = vmul.f32 %v3566, %v3586
        %v3595 = vmul.f32 %v3569, %v3587
        %v3596 = vmul.f32 %v3572, %v3588
        %v3597 = vmul.f32 %v3575, %v3589
        %v3598 = vmul.f32 %v3578, %v3590
        %v3599 = vmul.f32 %v3581, %v3591
        %v3600 = vmul.f32 %v3584, %v3592
        %v3601 = vsub.f32 2.0, %v3593
        %v3602 = vsub.f32 2.0, %v3594
        %v3603 = vsub.f32 2.0, %v3595
        %v3604 = vsub.f32 2.0, %v3596
        %v3605 = vsub.f32 2.0, %v3597
        %v3606 = vsub.f32 2.0, %v3598
        %v3607 = vsub.f32 2.0, %v3599
        %v3608 = vsub.f32 2.0, %v3600
        %v3609 = vmul.f32 %v3585, %v3601
        %v3610 = vmul.f32 %v3586, %v3602
        %v3611 = vmul.f32 %v3587, %v3603
        %v3612 = vmul.f32 %v3588, %v3604
        %v3613 = vmul.f32 %v3589, %v3605
        %v3614 = vmul.f32 %v3590, %v3606
        %v3615 = vmul.f32 %v3591, %v3607
        %v3616 = vmul.f32 %v3592, %v3608
        %v3617 = vmul.f32 %v3546, %v3609
        %v3618 = vmul.f32 %v3548, %v3610
        %v3619 = vmul.f32 %v3550, %v3611
        %v3620 = vmul.f32 %v3552, %v3612
        %v3621 = vmul.f32 %v3554, %v3613
        %v3622 = vmul.f32 %v3556, %v3614
        %v3623 = vmul.f32 %v3558, %v3615
        %v3624 = vmul.f32 %v3560, %v3616
        %3625 = vrot.lane.b32.xlu0 %v659, 80
        %v3626 = vpop.permute.xlu0 %3625
        %3627 = vrot.lane.b32.xlu0 %v664, 80
        %v3628 = vpop.permute.xlu0 %3627
        %v3632 = vsel %vm699, %v3617, 0
        %v3635 = vsel %vm699, %v3618, 0
        %3637 = vmatprep.subr.mxu0 0.0
        %3638 = vmatpush1.msra.mxu0 0.0
        %3639 = vmatprep.subr.mxu0 0.0
        %3640 = vmatpush1.msra.mxu0 0.0
        %3641 = vmatprep.subr.mxu0 0.0
        %3642 = vmatpush1.msra.mxu0 0.0
        %3643 = vmatprep.subr.mxu0 0.0
        %3644 = vmatpush1.msra.mxu0 0.0
        %3645 = vmatprep.subr.mxu0 0.0
        %3646 = vmatpush1.msra.mxu0 0.0
        %3647 = vmatprep.subr.mxu0 0.0
        %3648 = vmatpush1.msra.mxu0 0.0
        %3649 = vmatprep.subr.mxu0 0.0
        %3650 = vmatpush1.msra.mxu0 0.0
        %3651 = vmatprep.subr.mxu0 0.0
        %3652 = vmatpush1.msra.mxu0 0.0
        %3653 = vmatprep.subr.mxu0 0.0
        %3654 = vmatpush1.msra.mxu0 0.0
        %3655 = vmatprep.subr.mxu0 0.0
        %3656 = vmatpush1.msra.mxu0 0.0
        %3657 = vmatprep.subr.mxu0 0.0
        %3658 = vmatpush1.msra.mxu0 0.0
        %3659 = vmatprep.subr.mxu0 0.0
        %3660 = vmatpush1.msra.mxu0 0.0
        %3661 = vmatprep.subr.mxu0 0.0
        %3662 = vmatpush1.msra.mxu0 0.0
        %3663 = vmatprep.subr.mxu0 0.0
        %3664 = vmatpush1.msra.mxu0 0.0
        %3665 = vmatprep.subr.mxu0 0.0
        %3666 = vmatpush1.msra.mxu0 %v3628
        %3667 = vmatprep.subr.mxu0 0.0
        %3668 = vmatpush1.msra.mxu0 %v3626
        %3669 = vmatprep.subr.mxu0 0.0
        %3670 = vmatpush2.msra.mxu0 0.0
        %3671 = vmatprep.subr.mxu0 0.0
        %3672 = vmatpush2.msra.mxu0 0.0
        %3673 = vmatprep.subr.mxu0 0.0
        %3674 = vmatpush2.msra.mxu0 0.0
        %3675 = vmatprep.subr.mxu0 0.0
        %3676 = vmatpush2.msra.mxu0 0.0
        %3677 = vmatprep.subr.mxu0 0.0
        %3678 = vmatpush2.msra.mxu0 0.0
        %3679 = vmatprep.subr.mxu0 0.0
        %3680 = vmatpush2.msra.mxu0 0.0
        %3681 = vmatprep.subr.mxu0 0.0
        %3682 = vmatpush2.msra.mxu0 0.0
        %3683 = vmatprep.subr.mxu0 0.0
        %3684 = vmatpush2.msra.mxu0 0.0
        %3685 = vmatprep.subr.mxu0 0.0
        %3686 = vmatpush2.msra.mxu0 0.0
        %3687 = vmatprep.subr.mxu0 0.0
        %3688 = vmatpush2.msra.mxu0 0.0
        %3689 = vmatprep.subr.mxu0 0.0
        %3690 = vmatpush2.msra.mxu0 0.0
        %3691 = vmatprep.subr.mxu0 0.0
        %3692 = vmatpush2.msra.mxu0 0.0
        %3693 = vmatprep.subr.mxu0 0.0
        %3694 = vmatpush2.msra.mxu0 0.0
        %3695 = vmatprep.subr.mxu0 0.0
        %3696 = vmatpush2.msra.mxu0 0.0
        %3697 = vmatprep.subr.mxu0 0.0
        %3698 = vmatpush2.msra.mxu0 0.0
        %3699 = vmatprep.subr.mxu0 0.0
        %3700 = vmatpush2.msra.mxu0 0.0
        %3701 = vmatprep.mubr.f32.mxu0 0.0
        %3702 = vmatmul.mubr.f32.gmra.mxu0 %v3632
        %v3703 = vpop.f32.mrf.mxu0
        %v3704 = vadd.f32 0.0, %v3703
        %v3705 = vpop.f32.mrf.mxu0
        %3706 = vmatprep.mubr.f32.mxu0 0.0
        %3707 = vmatmul.mubr.f32.gmra.mxu0 %v3635
        %v3708 = vpop.f32.mrf.mxu0
        %v3709 = vadd.f32 0.0, %v3708
        %v3710 = vpop.f32.mrf.mxu0
        %3711 = vdwg.mxu0
        %3712 = vrot.lane.b32.xlu0 %v669, 80
        %v3713 = vpop.permute.xlu0 %3712
        %3714 = vrot.lane.b32.xlu0 %v674, 80
        %v3715 = vpop.permute.xlu0 %3714
        %v3719 = vsel %vm699, %v3619, 0
        %v3722 = vsel %vm699, %v3620, 0
        %3724 = vmatprep.subr.mxu0 0.0
        %3725 = vmatpush1.msra.mxu0 0.0
        %3726 = vmatprep.subr.mxu0 0.0
        %3727 = vmatpush1.msra.mxu0 0.0
        %3728 = vmatprep.subr.mxu0 0.0
        %3729 = vmatpush1.msra.mxu0 0.0
        %3730 = vmatprep.subr.mxu0 0.0
        %3731 = vmatpush1.msra.mxu0 0.0
        %3732 = vmatprep.subr.mxu0 0.0
        %3733 = vmatpush1.msra.mxu0 0.0
        %3734 = vmatprep.subr.mxu0 0.0
        %3735 = vmatpush1.msra.mxu0 0.0
        %3736 = vmatprep.subr.mxu0 0.0
        %3737 = vmatpush1.msra.mxu0 0.0
        %3738 = vmatprep.subr.mxu0 0.0
        %3739 = vmatpush1.msra.mxu0 0.0
        %3740 = vmatprep.subr.mxu0 0.0
        %3741 = vmatpush1.msra.mxu0 0.0
        %3742 = vmatprep.subr.mxu0 0.0
        %3743 = vmatpush1.msra.mxu0 0.0
        %3744 = vmatprep.subr.mxu0 0.0
        %3745 = vmatpush1.msra.mxu0 0.0
        %3746 = vmatprep.subr.mxu0 0.0
        %3747 = vmatpush1.msra.mxu0 0.0
        %3748 = vmatprep.subr.mxu0 0.0
        %3749 = vmatpush1.msra.mxu0 0.0
        %3750 = vmatprep.subr.mxu0 0.0
        %3751 = vmatpush1.msra.mxu0 0.0
        %3752 = vmatprep.subr.mxu0 0.0
        %3753 = vmatpush1.msra.mxu0 %v3715
        %3754 = vmatprep.subr.mxu0 0.0
        %3755 = vmatpush1.msra.mxu0 %v3713
        %3756 = vmatprep.subr.mxu0 0.0
        %3757 = vmatpush2.msra.mxu0 0.0
        %3758 = vmatprep.subr.mxu0 0.0
        %3759 = vmatpush2.msra.mxu0 0.0
        %3760 = vmatprep.subr.mxu0 0.0
        %3761 = vmatpush2.msra.mxu0 0.0
        %3762 = vmatprep.subr.mxu0 0.0
        %3763 = vmatpush2.msra.mxu0 0.0
        %3764 = vmatprep.subr.mxu0 0.0
        %3765 = vmatpush2.msra.mxu0 0.0
        %3766 = vmatprep.subr.mxu0 0.0
        %3767 = vmatpush2.msra.mxu0 0.0
        %3768 = vmatprep.subr.mxu0 0.0
        %3769 = vmatpush2.msra.mxu0 0.0
        %3770 = vmatprep.subr.mxu0 0.0
        %3771 = vmatpush2.msra.mxu0 0.0
        %3772 = vmatprep.subr.mxu0 0.0
        %3773 = vmatpush2.msra.mxu0 0.0
        %3774 = vmatprep.subr.mxu0 0.0
        %3775 = vmatpush2.msra.mxu0 0.0
        %3776 = vmatprep.subr.mxu0 0.0
        %3777 = vmatpush2.msra.mxu0 0.0
        %3778 = vmatprep.subr.mxu0 0.0
        %3779 = vmatpush2.msra.mxu0 0.0
        %3780 = vmatprep.subr.mxu0 0.0
        %3781 = vmatpush2.msra.mxu0 0.0
        %3782 = vmatprep.subr.mxu0 0.0
        %3783 = vmatpush2.msra.mxu0 0.0
        %3784 = vmatprep.subr.mxu0 0.0
        %3785 = vmatpush2.msra.mxu0 0.0
        %3786 = vmatprep.subr.mxu0 0.0
        %3787 = vmatpush2.msra.mxu0 0.0
        %3788 = vmatprep.mubr.f32.mxu0 0.0
        %3789 = vmatmul.mubr.f32.gmra.mxu0 %v3719
        %v3790 = vpop.f32.mrf.mxu0
        %v3791 = vadd.f32 0.0, %v3790
        %v3792 = vpop.f32.mrf.mxu0
        %3793 = vmatprep.mubr.f32.mxu0 0.0
        %3794 = vmatmul.mubr.f32.gmra.mxu0 %v3722
        %v3795 = vpop.f32.mrf.mxu0
        %v3796 = vadd.f32 0.0, %v3795
        %v3797 = vpop.f32.mrf.mxu0
        %3798 = vdwg.mxu0
        %3799 = vrot.lane.b32.xlu0 %v679, 80
        %v3800 = vpop.permute.xlu0 %3799
        %3801 = vrot.lane.b32.xlu0 %v684, 80
        %v3802 = vpop.permute.xlu0 %3801
        %v3806 = vsel %vm699, %v3621, 0
        %v3809 = vsel %vm699, %v3622, 0
        %3811 = vmatprep.subr.mxu0 0.0
        %3812 = vmatpush1.msra.mxu0 0.0
        %3813 = vmatprep.subr.mxu0 0.0
        %3814 = vmatpush1.msra.mxu0 0.0
        %3815 = vmatprep.subr.mxu0 0.0
        %3816 = vmatpush1.msra.mxu0 0.0
        %3817 = vmatprep.subr.mxu0 0.0
        %3818 = vmatpush1.msra.mxu0 0.0
        %3819 = vmatprep.subr.mxu0 0.0
        %3820 = vmatpush1.msra.mxu0 0.0
        %3821 = vmatprep.subr.mxu0 0.0
        %3822 = vmatpush1.msra.mxu0 0.0
        %3823 = vmatprep.subr.mxu0 0.0
        %3824 = vmatpush1.msra.mxu0 0.0
        %3825 = vmatprep.subr.mxu0 0.0
        %3826 = vmatpush1.msra.mxu0 0.0
        %3827 = vmatprep.subr.mxu0 0.0
        %3828 = vmatpush1.msra.mxu0 0.0
        %3829 = vmatprep.subr.mxu0 0.0
        %3830 = vmatpush1.msra.mxu0 0.0
        %3831 = vmatprep.subr.mxu0 0.0
        %3832 = vmatpush1.msra.mxu0 0.0
        %3833 = vmatprep.subr.mxu0 0.0
        %3834 = vmatpush1.msra.mxu0 0.0
        %3835 = vmatprep.subr.mxu0 0.0
        %3836 = vmatpush1.msra.mxu0 0.0
        %3837 = vmatprep.subr.mxu0 0.0
        %3838 = vmatpush1.msra.mxu0 0.0
        %3839 = vmatprep.subr.mxu0 0.0
        %3840 = vmatpush1.msra.mxu0 %v3802
        %3841 = vmatprep.subr.mxu0 0.0
        %3842 = vmatpush1.msra.mxu0 %v3800
        %3843 = vmatprep.subr.mxu0 0.0
        %3844 = vmatpush2.msra.mxu0 0.0
        %3845 = vmatprep.subr.mxu0 0.0
        %3846 = vmatpush2.msra.mxu0 0.0
        %3847 = vmatprep.subr.mxu0 0.0
        %3848 = vmatpush2.msra.mxu0 0.0
        %3849 = vmatprep.subr.mxu0 0.0
        %3850 = vmatpush2.msra.mxu0 0.0
        %3851 = vmatprep.subr.mxu0 0.0
        %3852 = vmatpush2.msra.mxu0 0.0
        %3853 = vmatprep.subr.mxu0 0.0
        %3854 = vmatpush2.msra.mxu0 0.0
        %3855 = vmatprep.subr.mxu0 0.0
        %3856 = vmatpush2.msra.mxu0 0.0
        %3857 = vmatprep.subr.mxu0 0.0
        %3858 = vmatpush2.msra.mxu0 0.0
        %3859 = vmatprep.subr.mxu0 0.0
        %3860 = vmatpush2.msra.mxu0 0.0
        %3861 = vmatprep.subr.mxu0 0.0
        %3862 = vmatpush2.msra.mxu0 0.0
        %3863 = vmatprep.subr.mxu0 0.0
        %3864 = vmatpush2.msra.mxu0 0.0
        %3865 = vmatprep.subr.mxu0 0.0
        %3866 = vmatpush2.msra.mxu0 0.0
        %3867 = vmatprep.subr.mxu0 0.0
        %3868 = vmatpush2.msra.mxu0 0.0
        %3869 = vmatprep.subr.mxu0 0.0
        %3870 = vmatpush2.msra.mxu0 0.0
        %3871 = vmatprep.subr.mxu0 0.0
        %3872 = vmatpush2.msra.mxu0 0.0
        %3873 = vmatprep.subr.mxu0 0.0
        %3874 = vmatpush2.msra.mxu0 0.0
        %3875 = vmatprep.mubr.f32.mxu0 0.0
        %3876 = vmatmul.mubr.f32.gmra.mxu0 %v3806
        %v3877 = vpop.f32.mrf.mxu0
        %v3878 = vadd.f32 0.0, %v3877
        %v3879 = vpop.f32.mrf.mxu0
        %3880 = vmatprep.mubr.f32.mxu0 0.0
        %3881 = vmatmul.mubr.f32.gmra.mxu0 %v3809
        %v3882 = vpop.f32.mrf.mxu0
        %v3883 = vadd.f32 0.0, %v3882
        %v3884 = vpop.f32.mrf.mxu0
        %3885 = vdwg.mxu0
        %3886 = vrot.lane.b32.xlu0 %v689, 80
        %v3887 = vpop.permute.xlu0 %3886
        %3888 = vrot.lane.b32.xlu0 %v694, 80
        %v3889 = vpop.permute.xlu0 %3888
        %v3893 = vsel %vm699, %v3623, 0
        %v3896 = vsel %vm699, %v3624, 0
        %3898 = vmatprep.subr.mxu0 0.0
        %3899 = vmatpush1.msra.mxu0 0.0
        %3900 = vmatprep.subr.mxu0 0.0
        %3901 = vmatpush1.msra.mxu0 0.0
        %3902 = vmatprep.subr.mxu0 0.0
        %3903 = vmatpush1.msra.mxu0 0.0
        %3904 = vmatprep.subr.mxu0 0.0
        %3905 = vmatpush1.msra.mxu0 0.0
        %3906 = vmatprep.subr.mxu0 0.0
        %3907 = vmatpush1.msra.mxu0 0.0
        %3908 = vmatprep.subr.mxu0 0.0
        %3909 = vmatpush1.msra.mxu0 0.0
        %3910 = vmatprep.subr.mxu0 0.0
        %3911 = vmatpush1.msra.mxu0 0.0
        %3912 = vmatprep.subr.mxu0 0.0
        %3913 = vmatpush1.msra.mxu0 0.0
        %3914 = vmatprep.subr.mxu0 0.0
        %3915 = vmatpush1.msra.mxu0 0.0
        %3916 = vmatprep.subr.mxu0 0.0
        %3917 = vmatpush1.msra.mxu0 0.0
        %3918 = vmatprep.subr.mxu0 0.0
        %3919 = vmatpush1.msra.mxu0 0.0
        %3920 = vmatprep.subr.mxu0 0.0
        %3921 = vmatpush1.msra.mxu0 0.0
        %3922 = vmatprep.subr.mxu0 0.0
        %3923 = vmatpush1.msra.mxu0 0.0
        %3924 = vmatprep.subr.mxu0 0.0
        %3925 = vmatpush1.msra.mxu0 0.0
        %3926 = vmatprep.subr.mxu0 0.0
        %3927 = vmatpush1.msra.mxu0 %v3889
        %3928 = vmatprep.subr.mxu0 0.0
        %3929 = vmatpush1.msra.mxu0 %v3887
        %3930 = vmatprep.subr.mxu0 0.0
        %3931 = vmatpush2.msra.mxu0 0.0
        %3932 = vmatprep.subr.mxu0 0.0
        %3933 = vmatpush2.msra.mxu0 0.0
        %3934 = vmatprep.subr.mxu0 0.0
        %3935 = vmatpush2.msra.mxu0 0.0
        %3936 = vmatprep.subr.mxu0 0.0
        %3937 = vmatpush2.msra.mxu0 0.0
        %3938 = vmatprep.subr.mxu0 0.0
        %3939 = vmatpush2.msra.mxu0 0.0
        %3940 = vmatprep.subr.mxu0 0.0
        %3941 = vmatpush2.msra.mxu0 0.0
        %3942 = vmatprep.subr.mxu0 0.0
        %3943 = vmatpush2.msra.mxu0 0.0
        %3944 = vmatprep.subr.mxu0 0.0
        %3945 = vmatpush2.msra.mxu0 0.0
        %3946 = vmatprep.subr.mxu0 0.0
        %3947 = vmatpush2.msra.mxu0 0.0
        %3948 = vmatprep.subr.mxu0 0.0
        %3949 = vmatpush2.msra.mxu0 0.0
        %3950 = vmatprep.subr.mxu0 0.0
        %3951 = vmatpush2.msra.mxu0 0.0
        %3952 = vmatprep.subr.mxu0 0.0
        %3953 = vmatpush2.msra.mxu0 0.0
        %3954 = vmatprep.subr.mxu0 0.0
        %3955 = vmatpush2.msra.mxu0 0.0
        %3956 = vmatprep.subr.mxu0 0.0
        %3957 = vmatpush2.msra.mxu0 0.0
        %3958 = vmatprep.subr.mxu0 0.0
        %3959 = vmatpush2.msra.mxu0 0.0
        %3960 = vmatprep.subr.mxu0 0.0
        %3961 = vmatpush2.msra.mxu0 0.0
        %3962 = vmatprep.mubr.f32.mxu0 0.0
        %3963 = vmatmul.mubr.f32.gmra.mxu0 %v3893
        %v3964 = vpop.f32.mrf.mxu0
        %v3965 = vadd.f32 0.0, %v3964
        %v3966 = vpop.f32.mrf.mxu0
        %3967 = vmatprep.mubr.f32.mxu0 0.0
        %3968 = vmatmul.mubr.f32.gmra.mxu0 %v3896
        %v3969 = vpop.f32.mrf.mxu0
        %v3970 = vadd.f32 0.0, %v3969
        %v3971 = vpop.f32.mrf.mxu0
        %3972 = vdwg.mxu0
        %3981 = vrot.lane.b32.xlu0 %v2044, 16
        %v3982 = vpop.permute.xlu0 %3981
        %3983 = vrot.lane.b32.xlu0 %v2049, 16
        %v3984 = vpop.permute.xlu0 %3983
        %3985 = vrot.lane.b32.xlu0 %v2133, 16
        %v3986 = vpop.permute.xlu0 %3985
        %3987 = vrot.lane.b32.xlu0 %v2138, 16
        %v3988 = vpop.permute.xlu0 %3987
        %3989 = vrot.lane.b32.xlu0 %v2222, 16
        %v3990 = vpop.permute.xlu0 %3989
        %3991 = vrot.lane.b32.xlu0 %v2227, 16
        %v3992 = vpop.permute.xlu0 %3991
        %3993 = vrot.lane.b32.xlu0 %v2311, 16
        %v3994 = vpop.permute.xlu0 %3993
        %3995 = vrot.lane.b32.xlu0 %v2316, 16
        %v3996 = vpop.permute.xlu0 %3995
        %4013 = vrot.lane.b32.xlu0 %v2877, 32
        %v4014 = vpop.permute.xlu0 %4013
        %4015 = vrot.lane.b32.xlu0 %v2882, 32
        %v4016 = vpop.permute.xlu0 %4015
        %4017 = vrot.lane.b32.xlu0 %v2964, 32
        %v4018 = vpop.permute.xlu0 %4017
        %4019 = vrot.lane.b32.xlu0 %v2969, 32
        %v4020 = vpop.permute.xlu0 %4019
        %4021 = vrot.lane.b32.xlu0 %v3051, 32
        %v4022 = vpop.permute.xlu0 %4021
        %4023 = vrot.lane.b32.xlu0 %v3056, 32
        %v4024 = vpop.permute.xlu0 %4023
        %4025 = vrot.lane.b32.xlu0 %v3138, 32
        %v4026 = vpop.permute.xlu0 %4025
        %4027 = vrot.lane.b32.xlu0 %v3143, 32
        %v4028 = vpop.permute.xlu0 %4027
        %4045 = vrot.lane.b32.xlu0 %v3704, 48
        %v4046 = vpop.permute.xlu0 %4045
        %4047 = vrot.lane.b32.xlu0 %v3709, 48
        %v4048 = vpop.permute.xlu0 %4047
        %4049 = vrot.lane.b32.xlu0 %v3791, 48
        %v4050 = vpop.permute.xlu0 %4049
        %4051 = vrot.lane.b32.xlu0 %v3796, 48
        %v4052 = vpop.permute.xlu0 %4051
        %4053 = vrot.lane.b32.xlu0 %v3878, 48
        %v4054 = vpop.permute.xlu0 %4053
        %4055 = vrot.lane.b32.xlu0 %v3883, 48
        %v4056 = vpop.permute.xlu0 %4055
        %4057 = vrot.lane.b32.xlu0 %v3965, 48
        %v4058 = vpop.permute.xlu0 %4057
        %4059 = vrot.lane.b32.xlu0 %v3970, 48
        %v4060 = vpop.permute.xlu0 %4059
        %v4069 = vsel %vm699, %v1233, %v3982
        %v4070 = vsel %vm699, %v1238, %v3984
        %v4071 = vsel %vm699, %v1314, %v3986
        %v4072 = vsel %vm699, %v1319, %v3988
        %v4073 = vsel %vm699, %v1395, %v3990
        %v4074 = vsel %vm699, %v1400, %v3992
        %v4075 = vsel %vm699, %v1476, %v3994
        %v4076 = vsel %vm699, %v1481, %v3996
        %v4077 = vsel %vm341, %v4069, %v4014
        %v4078 = vsel %vm341, %v4070, %v4016
        %v4079 = vsel %vm341, %v4071, %v4018
        %v4080 = vsel %vm341, %v4072, %v4020
        %v4081 = vsel %vm341, %v4073, %v4022
        %v4082 = vsel %vm341, %v4074, %v4024
        %v4083 = vsel %vm341, %v4075, %v4026
        %v4084 = vsel %vm341, %v4076, %v4028
        %vm4085 = vcmask 392192
        %v4086 = vsel %vm4085, %v4077, %v4046
        %v4087 = vsel %vm4085, %v4078, %v4048
        %v4088 = vsel %vm4085, %v4079, %v4050
        %v4089 = vsel %vm4085, %v4080, %v4052
        %v4090 = vsel %vm4085, %v4081, %v4054
        %v4091 = vsel %vm4085, %v4082, %v4056
        %v4092 = vsel %vm4085, %v4083, %v4058
        %v4093 = vsel %vm4085, %v4084, %v4060
        %v4094 = vld [vmem:[%s5] sm:$0xff]
        %v4095 = vld [vmem:[%s5 + $0x8] sm:$0xff]
        %v4096 = vld [vmem:[%s5 + $0x10] sm:$0xff]
        %v4097 = vld [vmem:[%s5 + $0x18] sm:$0xff]
        %v4098 = vld [vmem:[%s5 + $0x20] sm:$0xff]
        %v4099 = vld [vmem:[%s5 + $0x28] sm:$0xff]
        %v4100 = vld [vmem:[%s5 + $0x30] sm:$0xff]
        %v4101 = vld [vmem:[%s5 + $0x38] sm:$0xff]
        %v4102 = vld [vmem:[%s6] sm:$0x1]
        %v4104 = vlaneseq
        %v4105 = vshrl.u32 %v4104, 7
        %v4106 = vsub.s32 0, %v4105
        %v4107 = vrot.slane %v4102, %v4106
        %vm4109 = vcmask 523264
        %v4111 = vsel %vm4109, %v4086, 0
        %v4114 = vsel %vm4109, %v4087, 0
        %v4117 = vsel %vm4109, %v4088, 0
        %v4120 = vsel %vm4109, %v4089, 0
        %v4123 = vsel %vm4109, %v4090, 0
        %v4126 = vsel %vm4109, %v4091, 0
        %v4129 = vsel %vm4109, %v4092, 0
        %v4132 = vsel %vm4109, %v4093, 0
        %4134 = vmatprep.subr.mxu0 0.0
        %4135 = vmatpush1.msra.mxu0 0.0
        %4136 = vmatprep.subr.mxu0 0.0
        %4137 = vmatpush1.msra.mxu0 0.0
        %4138 = vmatprep.subr.mxu0 0.0
        %4139 = vmatpush1.msra.mxu0 0.0
        %4140 = vmatprep.subr.mxu0 0.0
        %4141 = vmatpush1.msra.mxu0 0.0
        %4142 = vmatprep.subr.mxu0 0.0
        %4143 = vmatpush1.msra.mxu0 0.0
        %4144 = vmatprep.subr.mxu0 0.0
        %4145 = vmatpush1.msra.mxu0 0.0
        %4146 = vmatprep.subr.mxu0 0.0
        %4147 = vmatpush1.msra.mxu0 0.0
        %4148 = vmatprep.subr.mxu0 0.0
        %4149 = vmatpush1.msra.mxu0 0.0
        %4150 = vmatprep.subr.mxu0 0.0
        %4151 = vmatpush1.msra.mxu0 %v4101
        %4152 = vmatprep.subr.mxu0 0.0
        %4153 = vmatpush1.msra.mxu0 %v4100
        %4154 = vmatprep.subr.mxu0 0.0
        %4155 = vmatpush1.msra.mxu0 %v4099
        %4156 = vmatprep.subr.mxu0 0.0
        %4157 = vmatpush1.msra.mxu0 %v4098
        %4158 = vmatprep.subr.mxu0 0.0
        %4159 = vmatpush1.msra.mxu0 %v4097
        %4160 = vmatprep.subr.mxu0 0.0
        %4161 = vmatpush1.msra.mxu0 %v4096
        %4162 = vmatprep.subr.mxu0 0.0
        %4163 = vmatpush1.msra.mxu0 %v4095
        %4164 = vmatprep.subr.mxu0 0.0
        %4165 = vmatpush1.msra.mxu0 %v4094
        %4166 = vmatprep.subr.mxu0 0.0
        %4167 = vmatpush2.msra.mxu0 0.0
        %4168 = vmatprep.subr.mxu0 0.0
        %4169 = vmatpush2.msra.mxu0 0.0
        %4170 = vmatprep.subr.mxu0 0.0
        %4171 = vmatpush2.msra.mxu0 0.0
        %4172 = vmatprep.subr.mxu0 0.0
        %4173 = vmatpush2.msra.mxu0 0.0
        %4174 = vmatprep.subr.mxu0 0.0
        %4175 = vmatpush2.msra.mxu0 0.0
        %4176 = vmatprep.subr.mxu0 0.0
        %4177 = vmatpush2.msra.mxu0 0.0
        %4178 = vmatprep.subr.mxu0 0.0
        %4179 = vmatpush2.msra.mxu0 0.0
        %4180 = vmatprep.subr.mxu0 0.0
        %4181 = vmatpush2.msra.mxu0 0.0
        %4182 = vmatprep.subr.mxu0 0.0
        %4183 = vmatpush2.msra.mxu0 0.0
        %4184 = vmatprep.subr.mxu0 0.0
        %4185 = vmatpush2.msra.mxu0 0.0
        %4186 = vmatprep.subr.mxu0 0.0
        %4187 = vmatpush2.msra.mxu0 0.0
        %4188 = vmatprep.subr.mxu0 0.0
        %4189 = vmatpush2.msra.mxu0 0.0
        %4190 = vmatprep.subr.mxu0 0.0
        %4191 = vmatpush2.msra.mxu0 0.0
        %4192 = vmatprep.subr.mxu0 0.0
        %4193 = vmatpush2.msra.mxu0 0.0
        %4194 = vmatprep.subr.mxu0 0.0
        %4195 = vmatpush2.msra.mxu0 0.0
        %4196 = vmatprep.subr.mxu0 0.0
        %4197 = vmatpush2.msra.mxu0 0.0
        %4198 = vmatprep.mubr.f32.mxu0 0.0
        %4199 = vmatmul.mubr.f32.gmra.mxu0 %v4111
        %v4200 = vpop.f32.mrf.mxu0
        %v4201 = vadd.f32 %v4107, %v4200
        %v4202 = vpop.f32.mrf.mxu0
        %4203 = vmatprep.mubr.f32.mxu0 0.0
        %4204 = vmatmul.mubr.f32.gmra.mxu0 %v4114
        %v4205 = vpop.f32.mrf.mxu0
        %v4206 = vadd.f32 %v4107, %v4205
        %v4207 = vpop.f32.mrf.mxu0
        %4208 = vmatprep.mubr.f32.mxu0 0.0
        %4209 = vmatmul.mubr.f32.gmra.mxu0 %v4117
        %v4210 = vpop.f32.mrf.mxu0
        %v4211 = vadd.f32 %v4107, %v4210
        %v4212 = vpop.f32.mrf.mxu0
        %4213 = vmatprep.mubr.f32.mxu0 0.0
        %4214 = vmatmul.mubr.f32.gmra.mxu0 %v4120
        %v4215 = vpop.f32.mrf.mxu0
        %v4216 = vadd.f32 %v4107, %v4215
        %v4217 = vpop.f32.mrf.mxu0
        %4218 = vmatprep.mubr.f32.mxu0 0.0
        %4219 = vmatmul.mubr.f32.gmra.mxu0 %v4123
        %v4220 = vpop.f32.mrf.mxu0
        %v4221 = vadd.f32 %v4107, %v4220
        %v4222 = vpop.f32.mrf.mxu0
        %4223 = vmatprep.mubr.f32.mxu0 0.0
        %4224 = vmatmul.mubr.f32.gmra.mxu0 %v4126
        %v4225 = vpop.f32.mrf.mxu0
        %v4226 = vadd.f32 %v4107, %v4225
        %v4227 = vpop.f32.mrf.mxu0
        %4228 = vmatprep.mubr.f32.mxu0 0.0
        %4229 = vmatmul.mubr.f32.gmra.mxu0 %v4129
        %v4230 = vpop.f32.mrf.mxu0
        %v4231 = vadd.f32 %v4107, %v4230
        %v4232 = vpop.f32.mrf.mxu0
        %4233 = vmatprep.mubr.f32.mxu0 0.0
        %4234 = vmatmul.mubr.f32.gmra.mxu0 %v4132
        %v4235 = vpop.f32.mrf.mxu0
        %v4236 = vadd.f32 %v4107, %v4235
        %v4237 = vpop.f32.mrf.mxu0
        %4238 = vdwg.mxu0
        %4239 = vst.msk [vmem:[%s326] sm:$0xff] %vm341, %v4201
        %4240 = vst.msk [vmem:[%s326 + $0x8] sm:$0xff] %vm341, %v4206
        %4241 = vst.msk [vmem:[%s326 + $0x10] sm:$0xff] %vm341, %v4211
        %4242 = vst.msk [vmem:[%s326 + $0x18] sm:$0xff] %vm341, %v4216
        %4243 = vst.msk [vmem:[%s326 + $0x20] sm:$0xff] %vm341, %v4221
        %4244 = vst.msk [vmem:[%s326 + $0x28] sm:$0xff] %vm341, %v4226
        %4245 = vst.msk [vmem:[%s326 + $0x30] sm:$0xff] %vm341, %v4231
        %4246 = vst.msk [vmem:[%s326 + $0x38] sm:$0xff] %vm341, %v4236
        %s4247 = sand.u32 %s185, 1
        %s4248 = scalar_lea.sflag [#allocation4], %s4247
        %s4249 = sand.u32 %s185, 1
        %s4250 = smul.addr %s4249, 64
        %s4251 = scalar_lea.vmem [#allocation8], %s4250
        // Predicated region
        $region61: #{tpu_custom_call.1} parent=47 // pred_check
          %p4252 = pneg %p195
        $region62: #{tpu_custom_call.1} parent=47 // pred_check_branch
          %4254 = sbr.rel (%p4252) target = $region64
        $region63: #{tpu_custom_call.1} parent=47 // pred_region
          %s4255 = smul.u32 4, %s25
          %s4257 = ssub.s32 1024, 1024
          %4258 = vsyncadd %s4248, %s4257
          %s4259 = smul.addr %s4255, 2
          %s4260 = smul.addr %s4259, 128
          %s4261 = scalar_lea.hbm %s7, %s4260
          %s4262 = sshll.u32 %s4251, 4
          %s4263 = int_to_ptr.vmem [resolvable:$true] %s4262
          %4268 = dma.vmem_to_hbm [thread:$0]  %s4263, 1024, %s4261, %s4248, 128, 128, 8
        $region64: #{tpu_custom_call.1} parent=47 // pred_fallthru
          _
      $region48: #{tpu_custom_call.1} parent=5 // pred_fallthru
        _
      %p4269 = scmp.le.s32.totalorder 2, %s20
      // Predicated region
      $region65: #{tpu_custom_call.1} parent=5 // pred_check
        %p4270 = pneg %p4269
      $region66: #{tpu_custom_call.1} parent=5 // pred_check_branch
        %4272 = sbr.rel (%p4270) target = $region68
      $region67: #{tpu_custom_call.1} parent=5 // pred_region
        %s4273 = ssub.s32 %s20, 2
        // Predicated region
        $region69: #{tpu_custom_call.1} parent=67 // pred_check
          %p4274 = pneg %p201
        $region70: #{tpu_custom_call.1} parent=67 // pred_check_branch
          %4276 = sbr.rel (%p4274) target = $region72
        $region71: #{tpu_custom_call.1} parent=67 // pred_region
          %s4277 = sand.u32 %s186, 1
          %s4278 = scalar_lea.sflag [#allocation4], %s4277
          %s4279 = sand.u32 %s186, 1
          %s4280 = smul.addr %s4279, 64
          %s4281 = scalar_lea.vmem [#allocation8], %s4280
          %4282 = dma.done %s4278, 1024
        $region72: #{tpu_custom_call.1} parent=67 // pred_fallthru
          _
      $region68: #{tpu_custom_call.1} parent=5 // pred_fallthru
        _
    $region6: #{tpu_custom_call.1} parent=1 // loop_footer
      %s24 = sadd.s32 1, %s20
    $region7: #{tpu_custom_call.1} parent=1 // loop_footer_branch
      %19 = sbr.rel target = $region3
    $region8: #{tpu_custom_call.1} parent=1 // loop_exit
      _
    %4283 = vsyncpa [#allocation3], 1
    %s4284 = scalar_lea.sflag [#allocation3], 1
    %4285 = vsyncpa %s4284, 1
    %4286 = vsyncpa [#allocation6], 1
    %4287 = vsyncpa [#allocation4], 1
    %s4288 = scalar_lea.sflag [#allocation4], 1
    %4289 = vsyncpa %s4288, 1

</llo_original>
